<compile_context>
chip_gen: v5e
topology: v5e:2x2
jax: 0.10.0
libtpu: 0.0.40
codegen_flags: <defaults>
</compile_context>

<pallas_src>
import functools

import jax
import jax.numpy as jnp
from jax import lax
from jax.experimental import pallas as pl
from jax.experimental.pallas import tpu as pltpu


# ---------------------------------------------------------------------------
# Kernels
# ---------------------------------------------------------------------------

def pam_proj_kernel(x_ref, wq_ref, bq_ref, wk_ref, bk_ref, wv_ref, bv_ref,
                    q_ref, k_ref, v_ref):
    """1x1-conv projections for one (batch, row-tile) block."""
    x = x_ref[0]                                                   # (tr, Cp)
    q = jnp.dot(x, wq_ref[...], preferred_element_type=jnp.float32) + bq_ref[...]
    k = jnp.dot(x, wk_ref[...], preferred_element_type=jnp.float32) + bk_ref[...]
    v = jnp.dot(x, wv_ref[...], preferred_element_type=jnp.float32) + bv_ref[...]
    q_ref[0] = q.astype(q_ref.dtype)
    k_ref[0] = k.astype(k_ref.dtype)
    v_ref[0] = v.astype(v_ref.dtype)


def pam_attn_kernel(gamma_ref, q_ref, k_ref, v_ref, x_ref, out_ref,
                    m_sc, l_sc, acc_sc):
    """Flash-attention-style online-softmax attention + residual."""
    ki = pl.program_id(2)

    @pl.when(ki == 0)
    def _():
        m_sc[...] = jnp.full_like(m_sc, -jnp.inf)
        l_sc[...] = jnp.zeros_like(l_sc)
        acc_sc[...] = jnp.zeros_like(acc_sc)

    q = q_ref[0]                                                   # (tq, C4p)
    k = k_ref[0]                                                   # (tk, C4p)
    v = v_ref[0]                                                   # (tk, Cp)

    # energy tile: contract last dims of q and k directly (no explicit k.T).
    s = lax.dot_general(q, k, dimension_numbers=(((1,), (1,)), ((), ())),
                        preferred_element_type=jnp.float32)        # (tq, tk)

    m_prev = m_sc[...]
    m_new = jnp.maximum(m_prev, jnp.max(s, axis=-1, keepdims=True))
    alpha = jnp.exp(m_prev - m_new)                                # f32
    p = jnp.exp(s - m_new)                                         # f32 (tq, tk)
    l_sc[...] = alpha * l_sc[...] + jnp.sum(p, axis=-1, keepdims=True)
    acc_sc[...] = alpha * acc_sc[...] + jnp.dot(
        p.astype(v.dtype), v, preferred_element_type=jnp.float32)
    m_sc[...] = m_new

    @pl.when(ki == pl.num_programs(2) - 1)
    def _():
        # Deferred softmax normalization: one EUP reciprocal per query row.
        o = acc_sc[...] * pl.reciprocal(l_sc[...], approx=True)    # (tq, Cp)
        out_ref[0] = (gamma_ref[0] * o + x_ref[0]).astype(out_ref.dtype)


# ---------------------------------------------------------------------------
# Wrapper
# ---------------------------------------------------------------------------

def _round_up(a, m):
    return ((a + m - 1) // m) * m


def _pick_tile(n, target):
    """Largest multiple-of-8 divisor of n that is <= target; fallback n."""
    c = (min(target, n) // 8) * 8
    while c >= 8:
        if n % c == 0:
            return c
        c -= 8
    return n


def _clamp_vmem(estimate_bytes):
    # 2x headroom over the tile-derived estimate, clamped to [8 MiB, 64 MiB]
    # (64 MiB = v7x physical VMEM; well above v5e/v6e scoped defaults).
    return int(min(max(2 * estimate_bytes, 8 * 1024 * 1024), 64 * 1024 * 1024))


@functools.partial(jax.jit, static_argnames=("compute_dtype", "q_tile",
                                             "kv_tile", "proj_tile"))
def pam_forward(x_nchw, wq, bq, wk, bk, wv, bv, gamma, *,
                compute_dtype=jnp.bfloat16, q_tile=256, kv_tile=256,
                proj_tile=512):
    """x_nchw: (B, C, H, W). wq/wk: (C, C//4), wv: (C, C) as (in, out) matrices
    (PyTorch Conv2d (out, in, 1, 1) weights must be transposed by the caller).
    Matmul operands run in `compute_dtype`; softmax stats, accumulation and
    the residual path are float32."""
    B, C, H, W = x_nchw.shape
    N = H * W
    C4 = wq.shape[1]

    Cp = _round_up(C, 128)       # lane-dense channel dims
    C4p = _round_up(C4, 128)
    tq = _pick_tile(N, q_tile)
    tk = _pick_tile(N, kv_tile)
    tr = _pick_tile(N, proj_tile)
    # TODO(synk): spatial sizes N with no multiple-of-8 divisor fall back to a
    # single full-N tile instead of padded/masked KV tiles.

    # NCHW -> (B, N, Cp), zero-padded channels. f32 copy for the residual,
    # compute_dtype copy for the matmul operands.
    x = jnp.transpose(x_nchw.reshape(B, C, N), (0, 2, 1)).astype(jnp.float32)
    x = jnp.pad(x, ((0, 0), (0, 0), (0, Cp - C)))
    x_c = x.astype(compute_dtype)

    def pad_w(w, ci, co):
        w = jnp.pad(w.astype(jnp.float32),
                    ((0, ci - w.shape[0]), (0, co - w.shape[1])))
        return w.astype(compute_dtype)

    def pad_b(b, co):
        return jnp.pad(b.astype(jnp.float32), ((0, co - b.shape[0]),)).reshape(1, co)

    wq_p = pad_w(wq, Cp, C4p)
    wk_p = pad_w(wk, Cp, C4p)
    wv_p = pad_w(wv, Cp, Cp)
    bq_p = pad_b(bq, C4p)
    bk_p = pad_b(bk, C4p)
    bv_p = pad_b(bv, Cp)

    cb = jnp.dtype(compute_dtype).itemsize

    # ---- projection pass (hoisted: K/V projected exactly once) -------------
    proj_est = (2 * (tr * Cp * cb                      # x block (dbl-buffered)
                     + 2 * Cp * C4p * cb               # wq, wk
                     + Cp * Cp * cb                    # wv
                     + (2 * C4p + Cp) * 4              # biases
                     + 2 * tr * C4p * cb               # q, k outputs
                     + tr * Cp * cb)                   # v output
                + 3 * tr * max(Cp, C4p) * 4)           # f32 temporaries
    q, k, v = pl.pallas_call(
        pam_proj_kernel,
        out_shape=(jax.ShapeDtypeStruct((B, N, C4p), compute_dtype),
                   jax.ShapeDtypeStruct((B, N, C4p), compute_dtype),
                   jax.ShapeDtypeStruct((B, N, Cp), compute_dtype)),
        grid=(B, N // tr),
        in_specs=[
            pl.BlockSpec((1, tr, Cp), lambda b, r: (b, r, 0)),     # x
            pl.BlockSpec((Cp, C4p),   lambda b, r: (0, 0)),        # wq
            pl.BlockSpec((1, C4p),    lambda b, r: (0, 0)),        # bq
            pl.BlockSpec((Cp, C4p),   lambda b, r: (0, 0)),        # wk
            pl.BlockSpec((1, C4p),    lambda b, r: (0, 0)),        # bk
            pl.BlockSpec((Cp, Cp),    lambda b, r: (0, 0)),        # wv
            pl.BlockSpec((1, Cp),     lambda b, r: (0, 0)),        # bv
        ],
        out_specs=(
            pl.BlockSpec((1, tr, C4p), lambda b, r: (b, r, 0)),    # q
            pl.BlockSpec((1, tr, C4p), lambda b, r: (b, r, 0)),    # k
            pl.BlockSpec((1, tr, Cp),  lambda b, r: (b, r, 0)),    # v
        ),
        compiler_params=pltpu.CompilerParams(
            dimension_semantics=("parallel", "parallel"),
            vmem_limit_bytes=_clamp_vmem(proj_est)),
    )(x_c, wq_p, bq_p, wk_p, bk_p, wv_p, bv_p)

    # ---- tiled attention + residual (online softmax over KV tiles) ---------
    gamma1 = jnp.asarray(gamma, jnp.float32).reshape(1)
    attn_est = (2 * (tq * C4p * cb                     # q block
                     + tk * C4p * cb                   # k block
                     + tk * Cp * cb                    # v block
                     + tq * Cp * 4                     # x residual block
                     + tq * Cp * 4)                    # out block
                + 2 * tq * 4 + tq * Cp * 4             # m/l/acc scratch
                + 3 * tq * tk * 4 + 2 * tq * Cp * 4)   # f32 temporaries
    out = pl.pallas_call(
        pam_attn_kernel,
        out_shape=jax.ShapeDtypeStruct((B, N, Cp), jnp.float32),
        grid=(B, N // tq, N // tk),
        in_specs=[
            pl.BlockSpec(memory_space=pltpu.SMEM),                 # gamma (1,)
            pl.BlockSpec((1, tq, C4p), lambda b, i, j: (b, i, 0)), # q
            pl.BlockSpec((1, tk, C4p), lambda b, i, j: (b, j, 0)), # k
            pl.BlockSpec((1, tk, Cp),  lambda b, i, j: (b, j, 0)), # v
            pl.BlockSpec((1, tq, Cp),  lambda b, i, j: (b, i, 0)), # x residual
        ],
        out_specs=pl.BlockSpec((1, tq, Cp), lambda b, i, j: (b, i, 0)),
        scratch_shapes=[
            pltpu.VMEM((tq, 1), jnp.float32),                      # m
            pltpu.VMEM((tq, 1), jnp.float32),                      # l
            pltpu.VMEM((tq, Cp), jnp.float32),                     # acc
        ],
        compiler_params=pltpu.CompilerParams(
            dimension_semantics=("parallel", "parallel", "arbitrary"),
            vmem_limit_bytes=_clamp_vmem(attn_est)),
    )(gamma1, q, k, v, x)

    # (B, N, Cp) -> strip channel padding -> NCHW
    return jnp.transpose(out[:, :, :C], (0, 2, 1)).reshape(B, C, H, W)


# ---------------------------------------------------------------------------
# Pure-JAX reference (mirrors the PyTorch forward) and a small test
# ---------------------------------------------------------------------------

def pam_reference(x_nchw, wq, bq, wk, bk, wv, bv, gamma):
    B, C, H, W = x_nchw.shape
    N = H * W
    x = jnp.transpose(x_nchw.reshape(B, C, N), (0, 2, 1))          # (B, N, C)
    q = x @ wq + bq                                                # (B, N, C4)
    k = x @ wk + bk
    v = x @ wv + bv
    energy = jnp.einsum("bnc,bmc->bnm", q, k)
    attn = jax.nn.softmax(energy, axis=-1)
    o = jnp.einsum("bnm,bmc->bnc", attn, v)
    out = jnp.asarray(gamma).reshape(()) * o + x
    return jnp.transpose(out, (0, 2, 1)).reshape(B, C, H, W)


if __name__ == "__main__":
    # Small shapes consistent with the module (in_dim divisible by 4).
    B, C, H, W = 2, 16, 16, 16
    C4 = C // 4

    key = jax.random.PRNGKey(0)
    kx, kq, kbq, kk, kbk, kv_, kbv = jax.random.split(key, 7)

    x = jax.random.normal(kx, (B, C, H, W), dtype=jnp.float32)
    # 1x1 conv weights stored as (in, out) matrices.
    wq = 0.1 * jax.random.normal(kq,  (C, C4), dtype=jnp.float32)
    bq = 0.1 * jax.random.normal(kbq, (C4,),   dtype=jnp.float32)
    wk = 0.1 * jax.random.normal(kk,  (C, C4), dtype=jnp.float32)
    bk = 0.1 * jax.random.normal(kbk, (C4,),   dtype=jnp.float32)
    wv = 0.1 * jax.random.normal(kv_, (C, C),  dtype=jnp.float32)
    bv = 0.1 * jax.random.normal(kbv, (C,),    dtype=jnp.float32)
    gamma = jnp.array([0.5], dtype=jnp.float32)

    ref = pam_reference(x, wq, bq, wk, bk, wv, bv, gamma)

    # float32 compute path: tight agreement (approx reciprocal is ~1e-3 rel).
    out_f32 = jax.block_until_ready(
        pam_forward(x, wq, bq, wk, bk, wv, bv, gamma,
                    compute_dtype=jnp.float32))
    assert out_f32.shape == (B, C, H, W)
    assert jnp.allclose(out_f32, ref, atol=5e-3, rtol=5e-3), "f32 mismatch"

    # bf16 matmul operands (production path); f32 softmax stats / accumulation.
    out_bf16 = jax.block_until_ready(
        pam_forward(x, wq, bq, wk, bk, wv, bv, gamma,
                    compute_dtype=jnp.bfloat16))
    assert jnp.allclose(out_bf16, ref, atol=5e-2, rtol=5e-2), "bf16 mismatch"

    # gamma = 0 (module init): output must equal the input (pure residual).
    gamma0 = jnp.zeros((1,), dtype=jnp.float32)
    out0 = jax.block_until_ready(
        pam_forward(x, wq, bq, wk, bk, wv, bv, gamma0))
    assert jnp.allclose(out0, x, atol=1e-6), "gamma=0 should return x"

    print("KERNEL_OK")
</pallas_src>

<mosaic_0001>
module attributes {stable_mosaic.version = 11 : i64} {
  func.func @pam_proj_kernel(%arg0: i32, %arg1: i32, %arg2: memref<1x256x128xf32, #tpu.memory_space<vmem>>, %arg3: memref<128x128xf32, #tpu.memory_space<vmem>>, %arg4: memref<1x128xf32, #tpu.memory_space<vmem>>, %arg5: memref<128x128xf32, #tpu.memory_space<vmem>>, %arg6: memref<1x128xf32, #tpu.memory_space<vmem>>, %arg7: memref<128x128xf32, #tpu.memory_space<vmem>>, %arg8: memref<1x128xf32, #tpu.memory_space<vmem>>, %arg9: memref<1x256x128xf32, #tpu.memory_space<vmem>>, %arg10: memref<1x256x128xf32, #tpu.memory_space<vmem>>, %arg11: memref<1x256x128xf32, #tpu.memory_space<vmem>>) attributes {dimension_semantics = [#tpu.dimension_semantics<parallel>, #tpu.dimension_semantics<parallel>], iteration_bounds = array<i64: 2, 1>, scalar_prefetch = 0 : i64, scratch_operands = 0 : i64, tpu.core_type = #tpu.core_type<tc>, window_params = [{transform_indices = @transform_0, window_bounds = array<i64: 1, 256, 128>}, {pipeline_mode = #tpu.pipeline_mode<synchronous>, transform_indices = @transform_1, window_bounds = array<i64: 128, 128>}, {pipeline_mode = #tpu.pipeline_mode<synchronous>, transform_indices = @transform_2, window_bounds = array<i64: 1, 128>}, {pipeline_mode = #tpu.pipeline_mode<synchronous>, transform_indices = @transform_3, window_bounds = array<i64: 128, 128>}, {pipeline_mode = #tpu.pipeline_mode<synchronous>, transform_indices = @transform_4, window_bounds = array<i64: 1, 128>}, {pipeline_mode = #tpu.pipeline_mode<synchronous>, transform_indices = @transform_5, window_bounds = array<i64: 128, 128>}, {pipeline_mode = #tpu.pipeline_mode<synchronous>, transform_indices = @transform_6, window_bounds = array<i64: 1, 128>}, {transform_indices = @transform_7, window_bounds = array<i64: 1, 256, 128>}, {transform_indices = @transform_8, window_bounds = array<i64: 1, 256, 128>}, {transform_indices = @transform_9, window_bounds = array<i64: 1, 256, 128>}]} {
    %c0 = arith.constant 0 : index
    %c0_0 = arith.constant 0 : index
    %c0_1 = arith.constant 0 : index
    %0 = vector.load %arg2[%c0, %c0_0, %c0_1] : memref<1x256x128xf32, #tpu.memory_space<vmem>>, vector<1x256x128xf32>
    %1 = vector.shape_cast %0 : vector<1x256x128xf32> to vector<256x128xf32>
    %c0_2 = arith.constant 0 : index
    %c0_3 = arith.constant 0 : index
    %2 = vector.load %arg3[%c0_2, %c0_3] : memref<128x128xf32, #tpu.memory_space<vmem>>, vector<128x128xf32>
    %cst = arith.constant dense<0.000000e+00> : vector<256x128xf32>
    %3 = tpu.matmul %1, %2, %cst {dimension_numbers = #tpu.dot_dimension_numbers<[1], [0], [0], [1], [0, 0, 1, 1], [], []>} : vector<256x128xf32>, vector<128x128xf32>, vector<256x128xf32> -> vector<256x128xf32>
    %c0_4 = arith.constant 0 : index
    %c0_5 = arith.constant 0 : index
    %4 = vector.load %arg4[%c0_4, %c0_5] : memref<1x128xf32, #tpu.memory_space<vmem>>, vector<1x128xf32>
    %5 = vector.broadcast %4 : vector<1x128xf32> to vector<256x128xf32>
    %6 = arith.addf %3, %5 : vector<256x128xf32>
    %c0_6 = arith.constant 0 : index
    %c0_7 = arith.constant 0 : index
    %7 = vector.load %arg5[%c0_6, %c0_7] : memref<128x128xf32, #tpu.memory_space<vmem>>, vector<128x128xf32>
    %cst_8 = arith.constant dense<0.000000e+00> : vector<256x128xf32>
    %8 = tpu.matmul %1, %7, %cst_8 {dimension_numbers = #tpu.dot_dimension_numbers<[1], [0], [0], [1], [0, 0, 1, 1], [], []>} : vector<256x128xf32>, vector<128x128xf32>, vector<256x128xf32> -> vector<256x128xf32>
    %c0_9 = arith.constant 0 : index
    %c0_10 = arith.constant 0 : index
    %9 = vector.load %arg6[%c0_9, %c0_10] : memref<1x128xf32, #tpu.memory_space<vmem>>, vector<1x128xf32>
    %10 = vector.broadcast %9 : vector<1x128xf32> to vector<256x128xf32>
    %11 = arith.addf %8, %10 : vector<256x128xf32>
    %c0_11 = arith.constant 0 : index
    %c0_12 = arith.constant 0 : index
    %12 = vector.load %arg7[%c0_11, %c0_12] : memref<128x128xf32, #tpu.memory_space<vmem>>, vector<128x128xf32>
    %cst_13 = arith.constant dense<0.000000e+00> : vector<256x128xf32>
    %13 = tpu.matmul %1, %12, %cst_13 {dimension_numbers = #tpu.dot_dimension_numbers<[1], [0], [0], [1], [0, 0, 1, 1], [], []>} : vector<256x128xf32>, vector<128x128xf32>, vector<256x128xf32> -> vector<256x128xf32>
    %c0_14 = arith.constant 0 : index
    %c0_15 = arith.constant 0 : index
    %14 = vector.load %arg8[%c0_14, %c0_15] : memref<1x128xf32, #tpu.memory_space<vmem>>, vector<1x128xf32>
    %15 = vector.broadcast %14 : vector<1x128xf32> to vector<256x128xf32>
    %16 = arith.addf %13, %15 : vector<256x128xf32>
    %c0_16 = arith.constant 0 : index
    %c0_17 = arith.constant 0 : index
    %c0_18 = arith.constant 0 : index
    %17 = vector.load %arg9[%c0_16, %c0_17, %c0_18] : memref<1x256x128xf32, #tpu.memory_space<vmem>>, vector<1x256x128xf32>
    %18 = vector.shape_cast %17 : vector<1x256x128xf32> to vector<256x128xf32>
    %19 = vector.shape_cast %6 : vector<256x128xf32> to vector<1x256x128xf32>
    tpu.vector_store %arg9[%c0_16, %c0_17, %c0_18], %19 {strides = array<i32>} : memref<1x256x128xf32, #tpu.memory_space<vmem>>, vector<1x256x128xf32>,
    %c0_19 = arith.constant 0 : index
    %c0_20 = arith.constant 0 : index
    %c0_21 = arith.constant 0 : index
    %20 = vector.load %arg10[%c0_19, %c0_20, %c0_21] : memref<1x256x128xf32, #tpu.memory_space<vmem>>, vector<1x256x128xf32>
    %21 = vector.shape_cast %20 : vector<1x256x128xf32> to vector<256x128xf32>
    %22 = vector.shape_cast %11 : vector<256x128xf32> to vector<1x256x128xf32>
    tpu.vector_store %arg10[%c0_19, %c0_20, %c0_21], %22 {strides = array<i32>} : memref<1x256x128xf32, #tpu.memory_space<vmem>>, vector<1x256x128xf32>,
    %c0_22 = arith.constant 0 : index
    %c0_23 = arith.constant 0 : index
    %c0_24 = arith.constant 0 : index
    %23 = vector.load %arg11[%c0_22, %c0_23, %c0_24] : memref<1x256x128xf32, #tpu.memory_space<vmem>>, vector<1x256x128xf32>
    %24 = vector.shape_cast %23 : vector<1x256x128xf32> to vector<256x128xf32>
    %25 = vector.shape_cast %16 : vector<256x128xf32> to vector<1x256x128xf32>
    tpu.vector_store %arg11[%c0_22, %c0_23, %c0_24], %25 {strides = array<i32>} : memref<1x256x128xf32, #tpu.memory_space<vmem>>, vector<1x256x128xf32>,
    return
  }
  func.func @transform_0(%arg0: i32, %arg1: i32) -> (i32, i32, i32) {
    %c0_i32 = arith.constant 0 : i32
    %c0_i32_0 = arith.constant 0 : i32
    return %arg0, %arg1, %c0_i32 : i32, i32, i32
  }
  func.func @transform_1(%arg0: i32, %arg1: i32) -> (i32, i32) {
    %c0_i32 = arith.constant 0 : i32
    %c0_i32_0 = arith.constant 0 : i32
    %c0_i32_1 = arith.constant 0 : i32
    return %c0_i32, %c0_i32_0 : i32, i32
  }
  func.func @transform_2(%arg0: i32, %arg1: i32) -> (i32, i32) {
    %c0_i32 = arith.constant 0 : i32
    %c0_i32_0 = arith.constant 0 : i32
    %c0_i32_1 = arith.constant 0 : i32
    return %c0_i32, %c0_i32_0 : i32, i32
  }
  func.func @transform_3(%arg0: i32, %arg1: i32) -> (i32, i32) {
    %c0_i32 = arith.constant 0 : i32
    %c0_i32_0 = arith.constant 0 : i32
    %c0_i32_1 = arith.constant 0 : i32
    return %c0_i32, %c0_i32_0 : i32, i32
  }
  func.func @transform_4(%arg0: i32, %arg1: i32) -> (i32, i32) {
    %c0_i32 = arith.constant 0 : i32
    %c0_i32_0 = arith.constant 0 : i32
    %c0_i32_1 = arith.constant 0 : i32
    return %c0_i32, %c0_i32_0 : i32, i32
  }
  func.func @transform_5(%arg0: i32, %arg1: i32) -> (i32, i32) {
    %c0_i32 = arith.constant 0 : i32
    %c0_i32_0 = arith.constant 0 : i32
    %c0_i32_1 = arith.constant 0 : i32
    return %c0_i32, %c0_i32_0 : i32, i32
  }
  func.func @transform_6(%arg0: i32, %arg1: i32) -> (i32, i32) {
    %c0_i32 = arith.constant 0 : i32
    %c0_i32_0 = arith.constant 0 : i32
    %c0_i32_1 = arith.constant 0 : i32
    return %c0_i32, %c0_i32_0 : i32, i32
  }
  func.func @transform_7(%arg0: i32, %arg1: i32) -> (i32, i32, i32) {
    %c0_i32 = arith.constant 0 : i32
    %c0_i32_0 = arith.constant 0 : i32
    return %arg0, %arg1, %c0_i32 : i32, i32, i32
  }
  func.func @transform_8(%arg0: i32, %arg1: i32) -> (i32, i32, i32) {
    %c0_i32 = arith.constant 0 : i32
    %c0_i32_0 = arith.constant 0 : i32
    return %arg0, %arg1, %c0_i32 : i32, i32, i32
  }
  func.func @transform_9(%arg0: i32, %arg1: i32) -> (i32, i32, i32) {
    %c0_i32 = arith.constant 0 : i32
    %c0_i32_0 = arith.constant 0 : i32
    return %arg0, %arg1, %c0_i32 : i32, i32, i32
  }
}

module attributes {stable_mosaic.version = 11 : i64} {
  func.func @pam_attn_kernel(%arg0: i32, %arg1: i32, %arg2: i32, %arg3: memref<1xf32, #tpu.memory_space<smem>>, %arg4: memref<1x256x128xf32, #tpu.memory_space<vmem>>, %arg5: memref<1x256x128xf32, #tpu.memory_space<vmem>>, %arg6: memref<1x256x128xf32, #tpu.memory_space<vmem>>, %arg7: memref<1x256x128xf32, #tpu.memory_space<vmem>>, %arg8: memref<1x256x128xf32, #tpu.memory_space<vmem>>, %arg9: memref<256x1xf32, #tpu.memory_space<vmem>>, %arg10: memref<256x1xf32, #tpu.memory_space<vmem>>, %arg11: memref<256x128xf32, #tpu.memory_space<vmem>>) attributes {dimension_semantics = [#tpu.dimension_semantics<parallel>, #tpu.dimension_semantics<parallel>, #tpu.dimension_semantics<arbitrary>], iteration_bounds = array<i64: 2, 1, 1>, scalar_prefetch = 0 : i64, scratch_operands = 3 : i64, tpu.core_type = #tpu.core_type<tc>, window_params = [{transform_indices = @transform_0, window_bounds = array<i64: 1>}, {transform_indices = @transform_1, window_bounds = array<i64: 1, 256, 128>}, {transform_indices = @transform_2, window_bounds = array<i64: 1, 256, 128>}, {transform_indices = @transform_3, window_bounds = array<i64: 1, 256, 128>}, {transform_indices = @transform_4, window_bounds = array<i64: 1, 256, 128>}, {transform_indices = @transform_5, window_bounds = array<i64: 1, 256, 128>}]} {
    %c0_i32 = arith.constant 0 : i32
    %0 = arith.cmpi eq, %arg2, %c0_i32 : i32
    %1 = arith.extui %0 : i1 to i32
    %c0_i32_0 = arith.constant 0 : i32
    %2 = arith.cmpi ne, %1, %c0_i32_0 : i32
    scf.if %2 {
      %cst_26 = arith.constant 0xFF800000 : f32
      %35 = vector.broadcast %cst_26 : f32 to vector<256x1xf32>
      %c0_27 = arith.constant 0 : index
      %c0_28 = arith.constant 0 : index
      %36 = vector.load %arg9[%c0_27, %c0_28] : memref<256x1xf32, #tpu.memory_space<vmem>>, vector<256x1xf32>
      tpu.vector_store %arg9[%c0_27, %c0_28], %35 {strides = array<i32>} : memref<256x1xf32, #tpu.memory_space<vmem>>, vector<256x1xf32>,
      %cst_29 = arith.constant 0.000000e+00 : f32
      %37 = vector.broadcast %cst_29 : f32 to vector<256x1xf32>
      %c0_30 = arith.constant 0 : index
      %c0_31 = arith.constant 0 : index
      %38 = vector.load %arg10[%c0_30, %c0_31] : memref<256x1xf32, #tpu.memory_space<vmem>>, vector<256x1xf32>
      tpu.vector_store %arg10[%c0_30, %c0_31], %37 {strides = array<i32>} : memref<256x1xf32, #tpu.memory_space<vmem>>, vector<256x1xf32>,
      %cst_32 = arith.constant 0.000000e+00 : f32
      %39 = vector.broadcast %cst_32 : f32 to vector<256x128xf32>
      %c0_33 = arith.constant 0 : index
      %c0_34 = arith.constant 0 : index
      %40 = vector.load %arg11[%c0_33, %c0_34] : memref<256x128xf32, #tpu.memory_space<vmem>>, vector<256x128xf32>
      tpu.vector_store %arg11[%c0_33, %c0_34], %39 {strides = array<i32>} : memref<256x128xf32, #tpu.memory_space<vmem>>, vector<256x128xf32>,
    } else {
    }
    %c0 = arith.constant 0 : index
    %c0_1 = arith.constant 0 : index
    %c0_2 = arith.constant 0 : index
    %3 = vector.load %arg4[%c0, %c0_1, %c0_2] : memref<1x256x128xf32, #tpu.memory_space<vmem>>, vector<1x256x128xf32>
    %4 = vector.shape_cast %3 : vector<1x256x128xf32> to vector<256x128xf32>
    %c0_3 = arith.constant 0 : index
    %c0_4 = arith.constant 0 : index
    %c0_5 = arith.constant 0 : index
    %5 = vector.load %arg5[%c0_3, %c0_4, %c0_5] : memref<1x256x128xf32, #tpu.memory_space<vmem>>, vector<1x256x128xf32>
    %6 = vector.shape_cast %5 : vector<1x256x128xf32> to vector<256x128xf32>
    %c0_6 = arith.constant 0 : index
    %c0_7 = arith.constant 0 : index
    %c0_8 = arith.constant 0 : index
    %7 = vector.load %arg6[%c0_6, %c0_7, %c0_8] : memref<1x256x128xf32, #tpu.memory_space<vmem>>, vector<1x256x128xf32>
    %8 = vector.shape_cast %7 : vector<1x256x128xf32> to vector<256x128xf32>
    %cst = arith.constant dense<0.000000e+00> : vector<256x256xf32>
    %9 = tpu.matmul %4, %6, %cst {dimension_numbers = #tpu.dot_dimension_numbers<[1], [1], [0], [0], [0, 0, 1, 0], [], []>} : vector<256x128xf32>, vector<256x128xf32>, vector<256x256xf32> -> vector<256x256xf32>
    %c0_9 = arith.constant 0 : index
    %c0_10 = arith.constant 0 : index
    %10 = vector.load %arg9[%c0_9, %c0_10] : memref<256x1xf32, #tpu.memory_space<vmem>>, vector<256x1xf32>
    %cst_11 = arith.constant dense<0xFF800000> : vector<256xf32>
    %11 = vector.multi_reduction <maximumf>, %9, %cst_11 [1] : vector<256x256xf32> to vector<256xf32>
    %12 = vector.shape_cast %11 : vector<256xf32> to vector<256x1xf32>
    %13 = arith.maximumf %10, %12 : vector<256x1xf32>
    %14 = arith.subf %10, %13 : vector<256x1xf32>
    %15 = math.exp %14 : vector<256x1xf32>
    %16 = vector.broadcast %13 : vector<256x1xf32> to vector<256x256xf32>
    %17 = arith.subf %9, %16 : vector<256x256xf32>
    %18 = math.exp %17 : vector<256x256xf32>
    %c0_12 = arith.constant 0 : index
    %c0_13 = arith.constant 0 : index
    %19 = vector.load %arg10[%c0_12, %c0_13] : memref<256x1xf32, #tpu.memory_space<vmem>>, vector<256x1xf32>
    %20 = arith.mulf %15, %19 : vector<256x1xf32>
    %cst_14 = arith.constant dense<0.000000e+00> : vector<256xf32>
    %21 = vector.multi_reduction <add>, %18, %cst_14 [1] : vector<256x256xf32> to vector<256xf32>
    %22 = vector.shape_cast %21 : vector<256xf32> to vector<256x1xf32>
    %23 = arith.addf %20, %22 : vector<256x1xf32>
    %c0_15 = arith.constant 0 : index
    %c0_16 = arith.constant 0 : index
    %24 = vector.load %arg10[%c0_15, %c0_16] : memref<256x1xf32, #tpu.memory_space<vmem>>, vector<256x1xf32>
    tpu.vector_store %arg10[%c0_15, %c0_16], %23 {strides = array<i32>} : memref<256x1xf32, #tpu.memory_space<vmem>>, vector<256x1xf32>,
    %c0_17 = arith.constant 0 : index
    %c0_18 = arith.constant 0 : index
    %25 = vector.load %arg11[%c0_17, %c0_18] : memref<256x128xf32, #tpu.memory_space<vmem>>, vector<256x128xf32>
    %26 = vector.broadcast %15 : vector<256x1xf32> to vector<256x128xf32>
    %27 = arith.mulf %26, %25 : vector<256x128xf32>
    %cst_19 = arith.constant dense<0.000000e+00> : vector<256x128xf32>
    %28 = tpu.matmul %18, %8, %cst_19 {dimension_numbers = #tpu.dot_dimension_numbers<[1], [0], [0], [1], [0, 0, 1, 1], [], []>} : vector<256x256xf32>, vector<256x128xf32>, vector<256x128xf32> -> vector<256x128xf32>
    %29 = arith.addf %27, %28 : vector<256x128xf32>
    %c0_20 = arith.constant 0 : index
    %c0_21 = arith.constant 0 : index
    %30 = vector.load %arg11[%c0_20, %c0_21] : memref<256x128xf32, #tpu.memory_space<vmem>>, vector<256x128xf32>
    tpu.vector_store %arg11[%c0_20, %c0_21], %29 {strides = array<i32>} : memref<256x128xf32, #tpu.memory_space<vmem>>, vector<256x128xf32>,
    %c0_22 = arith.constant 0 : index
    %c0_23 = arith.constant 0 : index
    %31 = vector.load %arg9[%c0_22, %c0_23] : memref<256x1xf32, #tpu.memory_space<vmem>>, vector<256x1xf32>
    tpu.vector_store %arg9[%c0_22, %c0_23], %13 {strides = array<i32>} : memref<256x1xf32, #tpu.memory_space<vmem>>, vector<256x1xf32>,
    %c0_i32_24 = arith.constant 0 : i32
    %32 = arith.cmpi eq, %arg2, %c0_i32_24 : i32
    %33 = arith.extui %32 : i1 to i32
    %c0_i32_25 = arith.constant 0 : i32
    %34 = arith.cmpi ne, %33, %c0_i32_25 : i32
    scf.if %34 {
      %c0_26 = arith.constant 0 : index
      %c0_27 = arith.constant 0 : index
      %35 = vector.load %arg11[%c0_26, %c0_27] : memref<256x128xf32, #tpu.memory_space<vmem>>, vector<256x128xf32>
      %c0_28 = arith.constant 0 : index
      %c0_29 = arith.constant 0 : index
      %36 = vector.load %arg10[%c0_28, %c0_29] : memref<256x1xf32, #tpu.memory_space<vmem>>, vector<256x1xf32>
      %37 = tpu.reciprocal %36 {approx = true} : vector<256x1xf32> -> vector<256x1xf32>
      %38 = vector.broadcast %37 : vector<256x1xf32> to vector<256x128xf32>
      %39 = arith.mulf %35, %38 : vector<256x128xf32>
      %c0_30 = arith.constant 0 : index
      %40 = memref.load %arg3[%c0_30] : memref<1xf32, #tpu.memory_space<smem>>
      %41 = vector.broadcast %40 : f32 to vector<256x128xf32>
      %42 = arith.mulf %41, %39 : vector<256x128xf32>
      %c0_31 = arith.constant 0 : index
      %c0_32 = arith.constant 0 : index
      %c0_33 = arith.constant 0 : index
      %43 = vector.load %arg7[%c0_31, %c0_32, %c0_33] : memref<1x256x128xf32, #tpu.memory_space<vmem>>, vector<1x256x128xf32>
      %44 = vector.shape_cast %43 : vector<1x256x128xf32> to vector<256x128xf32>
      %45 = arith.addf %42, %44 : vector<256x128xf32>
      %c0_34 = arith.constant 0 : index
      %c0_35 = arith.constant 0 : index
      %c0_36 = arith.constant 0 : index
      %46 = vector.load %arg8[%c0_34, %c0_35, %c0_36] : memref<1x256x128xf32, #tpu.memory_space<vmem>>, vector<1x256x128xf32>
      %47 = vector.shape_cast %46 : vector<1x256x128xf32> to vector<256x128xf32>
      %48 = vector.shape_cast %45 : vector<256x128xf32> to vector<1x256x128xf32>
      tpu.vector_store %arg8[%c0_34, %c0_35, %c0_36], %48 {strides = array<i32>} : memref<1x256x128xf32, #tpu.memory_space<vmem>>, vector<1x256x128xf32>,
    } else {
    }
    return
  }
  func.func @transform_0(%arg0: i32, %arg1: i32, %arg2: i32) -> i32 {
    %c0_i32 = arith.constant 0 : i32
    %c0_i32_0 = arith.constant 0 : i32
    return %c0_i32 : i32
  }
  func.func @transform_1(%arg0: i32, %arg1: i32, %arg2: i32) -> (i32, i32, i32) {
    %c0_i32 = arith.constant 0 : i32
    %c0_i32_0 = arith.constant 0 : i32
    return %arg0, %arg1, %c0_i32 : i32, i32, i32
  }
  func.func @transform_2(%arg0: i32, %arg1: i32, %arg2: i32) -> (i32, i32, i32) {
    %c0_i32 = arith.constant 0 : i32
    %c0_i32_0 = arith.constant 0 : i32
    return %arg0, %arg2, %c0_i32 : i32, i32, i32
  }
  func.func @transform_3(%arg0: i32, %arg1: i32, %arg2: i32) -> (i32, i32, i32) {
    %c0_i32 = arith.constant 0 : i32
    %c0_i32_0 = arith.constant 0 : i32
    return %arg0, %arg2, %c0_i32 : i32, i32, i32
  }
  func.func @transform_4(%arg0: i32, %arg1: i32, %arg2: i32) -> (i32, i32, i32) {
    %c0_i32 = arith.constant 0 : i32
    %c0_i32_0 = arith.constant 0 : i32
    return %arg0, %arg1, %c0_i32 : i32, i32, i32
  }
  func.func @transform_5(%arg0: i32, %arg1: i32, %arg2: i32) -> (i32, i32, i32) {
    %c0_i32 = arith.constant 0 : i32
    %c0_i32_0 = arith.constant 0 : i32
    return %arg0, %arg1, %c0_i32 : i32, i32, i32
  }
}

</mosaic_0001>

<llo_original>
// kernel: pam_forward.2
$region0: #{pam_forward.2}
  #allocation0 [shape = 'u32[]', space=smem, size = 0x4, offset = 0x4, fixed_abs, tag = 'smem constant byte address 0x4 - core index']
  #allocation1 [shape = 'u32[72,128]{1,0:T(1,128)}', space=vmem, size = 0x9000, scoped, tag = 'internal scratch']
  %s0 = inlined_call_operand.vmem [shape: f32[2,256,128], index: 0, kind: input, shape index: {}]
  %s1 = inlined_call_operand.vmem [shape: f32[128,128], index: 1, kind: input, shape index: {}]
  %s2 = inlined_call_operand.vmem [shape: f32[1,128], index: 2, kind: input, shape index: {}]
  %s3 = inlined_call_operand.vmem [shape: f32[128,128], index: 3, kind: input, shape index: {}]
  %s4 = inlined_call_operand.vmem [shape: f32[1,128], index: 4, kind: input, shape index: {}]
  %s5 = inlined_call_operand.vmem [shape: f32[128,128], index: 5, kind: input, shape index: {}]
  %s6 = inlined_call_operand.vmem [shape: f32[1,128], index: 6, kind: input, shape index: {}]
  %s7 = inlined_call_operand.vmem [shape: f32[2,256,128], index: 7, kind: output, shape index: {0}]
  %s8 = inlined_call_operand.vmem [shape: f32[2,256,128], index: 8, kind: output, shape index: {1}]
  %s9 = inlined_call_operand.vmem [shape: f32[2,256,128], index: 9, kind: output, shape index: {2}]
  %10 = xla_tuple %s7, %s8, %s9
  %s11 = sld [smem:[#allocation0]]
  $region77: #{pam_forward.2} parent=0
    _
  %s13 = ssub.s32 1, %s11
  %s14 = scalar_select 0, %s13, %s11
  loop: start=0, step=1, limit=4
  $region2: #{pam_forward.2} parent=0 // loop_pre_header
    _
  $region3: #{pam_forward.2} parent=0 // loop_header
    %s16 = sphi 0, %s20
    %p17 = scmp.ge.s32.totalorder %s16, 4
    %s23 = sphi 0, %s35
    %s24 = sphi 0, %s31
    %s25 = sphi 0, %s23
    %s26 = sphi 0, %s24
    %s27 = sphi 0, %s25
    %s28 = sphi 0, %s26
    %s40 = sphi 0, %s42
    %s43 = sphi 0, %s40
    %s44 = sphi 0, %s43
    %s60 = sphi 0, %s44
    %s64 = sphi 0, %s64
    %s66 = sphi 0, %s64
    %s67 = sphi 0, %s66
    %s81 = sphi 0, %s67
    %s85 = sphi 0, %s85
    %s87 = sphi 0, %s85
    %s88 = sphi 0, %s87
    %s102 = sphi 0, %s88
    %s106 = sphi 0, %s106
    %s108 = sphi 0, %s106
    %s109 = sphi 0, %s108
    %s123 = sphi 0, %s109
    %s127 = sphi 0, %s127
    %s129 = sphi 0, %s127
    %s130 = sphi 0, %s129
    %s144 = sphi 0, %s130
    %s148 = sphi 0, %s148
    %s150 = sphi 0, %s148
    %s151 = sphi 0, %s150
    %s165 = sphi 0, %s151
    %s169 = sphi 0, %s169
    %s171 = sphi 0, %s169
    %s172 = sphi 0, %s171
    %s186 = sphi 0, %s172
    %s194 = sphi 0, %s196
    %s197 = sphi 0, %s194
    %s198 = sphi 0, %s197
    %s214 = sphi 0, %s198
    %s222 = sphi 0, %s224
    %s225 = sphi 0, %s222
    %s226 = sphi 0, %s225
    %s242 = sphi 0, %s226
    %s250 = sphi 0, %s252
    %s253 = sphi 0, %s250
    %s254 = sphi 0, %s253
    %s270 = sphi 0, %s254
  $region4: #{pam_forward.2} parent=0 // loop_header_branch
    %19 = sbr.rel (%p17) target = $region8
  $region5: #{pam_forward.2} parent=0 // loop_body
    %s21 = ssub.s32 %s16, 1
    %s22 = ssub.s32 %s16, 2
    %s29 = sadd.s32 1, %s24
    %p30 = scmp.ge.s32.totalorder %s29, 1
    %s31 = scalar_select %p30, 0, %s29
    %s32 = sadd.s32 1, %s23
    %s33 = scalar_select %p30, %s32, %s23
    %p34 = scmp.ge.s32.totalorder %s33, 2
    %s35 = scalar_select %p34, 0, %s33
    %s36 = ssub.s32 %s23, %s35
    %s37 = ssub.s32 %s24, %s31
    %s38 = sor.u32 %s36, %s37
    %p39 = scmp.eq.s32.totalorder %s38, 0
    %s41 = sadd.s32 %s40, 1
    %s42 = scalar_select %p39, %s40, %s41
    %p45 = pneg %p39
    %p46 = scmp.eq.s32.totalorder %s16, 1
    %p47 = por %p45, %p46
    %p48 = scmp.ne.s32.totalorder %s40, %s43
    %p49 = scmp.eq.s32.totalorder %s16, 0
    %p50 = por %p48, %p49
    %p51 = scmp.ne.s32.totalorder %s40, %s43
    %p52 = scmp.eq.s32.totalorder %s21, 1
    %p53 = por %p51, %p52
    %p54 = scmp.ne.s32.totalorder %s43, %s44
    %p55 = scmp.eq.s32.totalorder %s21, 0
    %p56 = por %p54, %p55
    %p57 = scmp.ne.s32.totalorder %s43, %s44
    %p58 = scmp.eq.s32.totalorder %s22, 1
    %p59 = por %p57, %p58
    %p61 = scmp.ne.s32.totalorder %s44, %s60
    %p62 = scmp.eq.s32.totalorder %s22, 0
    %p63 = por %p61, %p62
    %s65 = sadd.s32 %s64, 1
    %p68 = scmp.eq.s32.totalorder %s16, 1
    %p69 = scmp.ne.s32.totalorder %s64, %s66
    %p70 = scmp.eq.s32.totalorder %s16, 0
    %p71 = por %p69, %p70
    %p72 = scmp.ne.s32.totalorder %s64, %s66
    %p73 = scmp.eq.s32.totalorder %s21, 1
    %p74 = por %p72, %p73
    %p75 = scmp.ne.s32.totalorder %s66, %s67
    %p76 = scmp.eq.s32.totalorder %s21, 0
    %p77 = por %p75, %p76
    %p78 = scmp.ne.s32.totalorder %s66, %s67
    %p79 = scmp.eq.s32.totalorder %s22, 1
    %p80 = por %p78, %p79
    %p82 = scmp.ne.s32.totalorder %s67, %s81
    %p83 = scmp.eq.s32.totalorder %s22, 0
    %p84 = por %p82, %p83
    %s86 = sadd.s32 %s85, 1
    %p89 = scmp.eq.s32.totalorder %s16, 1
    %p90 = scmp.ne.s32.totalorder %s85, %s87
    %p91 = scmp.eq.s32.totalorder %s16, 0
    %p92 = por %p90, %p91
    %p93 = scmp.ne.s32.totalorder %s85, %s87
    %p94 = scmp.eq.s32.totalorder %s21, 1
    %p95 = por %p93, %p94
    %p96 = scmp.ne.s32.totalorder %s87, %s88
    %p97 = scmp.eq.s32.totalorder %s21, 0
    %p98 = por %p96, %p97
    %p99 = scmp.ne.s32.totalorder %s87, %s88
    %p100 = scmp.eq.s32.totalorder %s22, 1
    %p101 = por %p99, %p100
    %p103 = scmp.ne.s32.totalorder %s88, %s102
    %p104 = scmp.eq.s32.totalorder %s22, 0
    %p105 = por %p103, %p104
    %s107 = sadd.s32 %s106, 1
    %p110 = scmp.eq.s32.totalorder %s16, 1
    %p111 = scmp.ne.s32.totalorder %s106, %s108
    %p112 = scmp.eq.s32.totalorder %s16, 0
    %p113 = por %p111, %p112
    %p114 = scmp.ne.s32.totalorder %s106, %s108
    %p115 = scmp.eq.s32.totalorder %s21, 1
    %p116 = por %p114, %p115
    %p117 = scmp.ne.s32.totalorder %s108, %s109
    %p118 = scmp.eq.s32.totalorder %s21, 0
    %p119 = por %p117, %p118
    %p120 = scmp.ne.s32.totalorder %s108, %s109
    %p121 = scmp.eq.s32.totalorder %s22, 1
    %p122 = por %p120, %p121
    %p124 = scmp.ne.s32.totalorder %s109, %s123
    %p125 = scmp.eq.s32.totalorder %s22, 0
    %p126 = por %p124, %p125
    %s128 = sadd.s32 %s127, 1
    %p131 = scmp.eq.s32.totalorder %s16, 1
    %p132 = scmp.ne.s32.totalorder %s127, %s129
    %p133 = scmp.eq.s32.totalorder %s16, 0
    %p134 = por %p132, %p133
    %p135 = scmp.ne.s32.totalorder %s127, %s129
    %p136 = scmp.eq.s32.totalorder %s21, 1
    %p137 = por %p135, %p136
    %p138 = scmp.ne.s32.totalorder %s129, %s130
    %p139 = scmp.eq.s32.totalorder %s21, 0
    %p140 = por %p138, %p139
    %p141 = scmp.ne.s32.totalorder %s129, %s130
    %p142 = scmp.eq.s32.totalorder %s22, 1
    %p143 = por %p141, %p142
    %p145 = scmp.ne.s32.totalorder %s130, %s144
    %p146 = scmp.eq.s32.totalorder %s22, 0
    %p147 = por %p145, %p146
    %s149 = sadd.s32 %s148, 1
    %p152 = scmp.eq.s32.totalorder %s16, 1
    %p153 = scmp.ne.s32.totalorder %s148, %s150
    %p154 = scmp.eq.s32.totalorder %s16, 0
    %p155 = por %p153, %p154
    %p156 = scmp.ne.s32.totalorder %s148, %s150
    %p157 = scmp.eq.s32.totalorder %s21, 1
    %p158 = por %p156, %p157
    %p159 = scmp.ne.s32.totalorder %s150, %s151
    %p160 = scmp.eq.s32.totalorder %s21, 0
    %p161 = por %p159, %p160
    %p162 = scmp.ne.s32.totalorder %s150, %s151
    %p163 = scmp.eq.s32.totalorder %s22, 1
    %p164 = por %p162, %p163
    %p166 = scmp.ne.s32.totalorder %s151, %s165
    %p167 = scmp.eq.s32.totalorder %s22, 0
    %p168 = por %p166, %p167
    %s170 = sadd.s32 %s169, 1
    %p173 = scmp.eq.s32.totalorder %s16, 1
    %p174 = scmp.ne.s32.totalorder %s169, %s171
    %p175 = scmp.eq.s32.totalorder %s16, 0
    %p176 = por %p174, %p175
    %p177 = scmp.ne.s32.totalorder %s169, %s171
    %p178 = scmp.eq.s32.totalorder %s21, 1
    %p179 = por %p177, %p178
    %p180 = scmp.ne.s32.totalorder %s171, %s172
    %p181 = scmp.eq.s32.totalorder %s21, 0
    %p182 = por %p180, %p181
    %p183 = scmp.ne.s32.totalorder %s171, %s172
    %p184 = scmp.eq.s32.totalorder %s22, 1
    %p185 = por %p183, %p184
    %p187 = scmp.ne.s32.totalorder %s172, %s186
    %p188 = scmp.eq.s32.totalorder %s22, 0
    %p189 = por %p187, %p188
    %s190 = ssub.s32 %s23, %s35
    %s191 = ssub.s32 %s24, %s31
    %s192 = sor.u32 %s190, %s191
    %p193 = scmp.eq.s32.totalorder %s192, 0
    %s195 = sadd.s32 %s194, 1
    %s196 = scalar_select %p193, %s194, %s195
    %p199 = pneg %p193
    %p200 = scmp.eq.s32.totalorder %s16, 1
    %p201 = por %p199, %p200
    %p202 = scmp.ne.s32.totalorder %s194, %s197
    %p203 = scmp.eq.s32.totalorder %s16, 0
    %p204 = por %p202, %p203
    %p205 = scmp.ne.s32.totalorder %s194, %s197
    %p206 = scmp.eq.s32.totalorder %s21, 1
    %p207 = por %p205, %p206
    %p208 = scmp.ne.s32.totalorder %s197, %s198
    %p209 = scmp.eq.s32.totalorder %s21, 0
    %p210 = por %p208, %p209
    %p211 = scmp.ne.s32.totalorder %s197, %s198
    %p212 = scmp.eq.s32.totalorder %s22, 1
    %p213 = por %p211, %p212
    %p215 = scmp.ne.s32.totalorder %s198, %s214
    %p216 = scmp.eq.s32.totalorder %s22, 0
    %p217 = por %p215, %p216
    %s218 = ssub.s32 %s23, %s35
    %s219 = ssub.s32 %s24, %s31
    %s220 = sor.u32 %s218, %s219
    %p221 = scmp.eq.s32.totalorder %s220, 0
    %s223 = sadd.s32 %s222, 1
    %s224 = scalar_select %p221, %s222, %s223
    %p227 = pneg %p221
    %p228 = scmp.eq.s32.totalorder %s16, 1
    %p229 = por %p227, %p228
    %p230 = scmp.ne.s32.totalorder %s222, %s225
    %p231 = scmp.eq.s32.totalorder %s16, 0
    %p232 = por %p230, %p231
    %p233 = scmp.ne.s32.totalorder %s222, %s225
    %p234 = scmp.eq.s32.totalorder %s21, 1
    %p235 = por %p233, %p234
    %p236 = scmp.ne.s32.totalorder %s225, %s226
    %p237 = scmp.eq.s32.totalorder %s21, 0
    %p238 = por %p236, %p237
    %p239 = scmp.ne.s32.totalorder %s225, %s226
    %p240 = scmp.eq.s32.totalorder %s22, 1
    %p241 = por %p239, %p240
    %p243 = scmp.ne.s32.totalorder %s226, %s242
    %p244 = scmp.eq.s32.totalorder %s22, 0
    %p245 = por %p243, %p244
    %s246 = ssub.s32 %s23, %s35
    %s247 = ssub.s32 %s24, %s31
    %s248 = sor.u32 %s246, %s247
    %p249 = scmp.eq.s32.totalorder %s248, 0
    %s251 = sadd.s32 %s250, 1
    %s252 = scalar_select %p249, %s250, %s251
    %p255 = pneg %p249
    %p256 = scmp.eq.s32.totalorder %s16, 1
    %p257 = por %p255, %p256
    %p258 = scmp.ne.s32.totalorder %s250, %s253
    %p259 = scmp.eq.s32.totalorder %s16, 0
    %p260 = por %p258, %p259
    %p261 = scmp.ne.s32.totalorder %s250, %s253
    %p262 = scmp.eq.s32.totalorder %s21, 1
    %p263 = por %p261, %p262
    %p264 = scmp.ne.s32.totalorder %s253, %s254
    %p265 = scmp.eq.s32.totalorder %s21, 0
    %p266 = por %p264, %p265
    %p267 = scmp.ne.s32.totalorder %s253, %s254
    %p268 = scmp.eq.s32.totalorder %s22, 1
    %p269 = por %p267, %p268
    %p271 = scmp.ne.s32.totalorder %s254, %s270
    %p272 = scmp.eq.s32.totalorder %s22, 0
    %p273 = por %p271, %p272
    %p274 = scmp.le.s32.totalorder 1, %s16
    %p275 = scmp.lt.s32.totalorder %s16, 3
    %p276 = pnand %p274, %p275
    %p277 = pneg %p276
    // Predicated region
    $region9: #{pam_forward.2} parent=5 // pred_check
      _
    $region10: #{pam_forward.2} parent=5 // pred_check_branch
      %279 = sbr.rel (%p276) target = $region12
    $region11: #{pam_forward.2} parent=5 // pred_region
      %s280 = ssub.s32 %s16, 1
      // Predicated region
      $region13: #{pam_forward.2} parent=11 // pred_check
        %p281 = pneg %p77
      $region14: #{pam_forward.2} parent=11 // pred_check_branch
        %283 = sbr.rel (%p281) target = $region16
      $region15: #{pam_forward.2} parent=11 // pred_region
        _
      $region16: #{pam_forward.2} parent=11 // pred_fallthru
        _
      // Predicated region
      $region17: #{pam_forward.2} parent=11 // pred_check
        %p284 = pneg %p98
      $region18: #{pam_forward.2} parent=11 // pred_check_branch
        %286 = sbr.rel (%p284) target = $region20
      $region19: #{pam_forward.2} parent=11 // pred_region
        _
      $region20: #{pam_forward.2} parent=11 // pred_fallthru
        _
      // Predicated region
      $region21: #{pam_forward.2} parent=11 // pred_check
        %p287 = pneg %p119
      $region22: #{pam_forward.2} parent=11 // pred_check_branch
        %289 = sbr.rel (%p287) target = $region24
      $region23: #{pam_forward.2} parent=11 // pred_region
        _
      $region24: #{pam_forward.2} parent=11 // pred_fallthru
        _
      // Predicated region
      $region25: #{pam_forward.2} parent=11 // pred_check
        %p290 = pneg %p140
      $region26: #{pam_forward.2} parent=11 // pred_check_branch
        %292 = sbr.rel (%p290) target = $region28
      $region27: #{pam_forward.2} parent=11 // pred_region
        _
      $region28: #{pam_forward.2} parent=11 // pred_fallthru
        _
      // Predicated region
      $region29: #{pam_forward.2} parent=11 // pred_check
        %p293 = pneg %p161
      $region30: #{pam_forward.2} parent=11 // pred_check_branch
        %295 = sbr.rel (%p293) target = $region32
      $region31: #{pam_forward.2} parent=11 // pred_region
        _
      $region32: #{pam_forward.2} parent=11 // pred_fallthru
        _
      // Predicated region
      $region33: #{pam_forward.2} parent=11 // pred_check
        %p296 = pneg %p182
      $region34: #{pam_forward.2} parent=11 // pred_check_branch
        %298 = sbr.rel (%p296) target = $region36
      $region35: #{pam_forward.2} parent=11 // pred_region
        _
      $region36: #{pam_forward.2} parent=11 // pred_fallthru
        _
    $region12: #{pam_forward.2} parent=5 // pred_fallthru
      _
    %p299 = scmp.lt.s32.totalorder %s16, 2
    // Predicated region
    $region37: #{pam_forward.2} parent=5 // pred_check
      %p300 = pneg %p299
    $region38: #{pam_forward.2} parent=5 // pred_check_branch
      %302 = sbr.rel (%p300) target = $region40
    $region39: #{pam_forward.2} parent=5 // pred_region
      // Predicated region
      $region41: #{pam_forward.2} parent=39 // pred_check
        %p303 = pneg %p50
      $region42: #{pam_forward.2} parent=39 // pred_check_branch
        %305 = sbr.rel (%p303) target = $region44
      $region43: #{pam_forward.2} parent=39 // pred_region
        %s306 = smul.u32 32, %s24
        %p307 = scmp.lt.s32.totalorder %s23, 1
        %s308 = scalar_select %p307, %s23, 1
        %p309 = scmp.lt.s32.totalorder %s306, 31
        %s310 = scalar_select %p309, %s306, 31
        %s311 = smul.addr %s308, 32
        %s312 = sadd.s32 %s310, %s311
        %s313 = smul.addr %s312, 8
        %s314 = scalar_lea.vmem %s0, %s313
        %s315 = smul.u32 32, %s24
      $region44: #{pam_forward.2} parent=39 // pred_fallthru
        _
    $region40: #{pam_forward.2} parent=5 // pred_fallthru
      _
    %p316 = scmp.le.s32.totalorder 1, %s16
    %p317 = scmp.lt.s32.totalorder %s16, 3
    %p318 = pnand %p316, %p317
    %p319 = pneg %p318
    // Predicated region
    $region45: #{pam_forward.2} parent=5 // pred_check
      _
    $region46: #{pam_forward.2} parent=5 // pred_check_branch
      %321 = sbr.rel (%p318) target = $region48
    $region47: #{pam_forward.2} parent=5 // pred_region
      %s322 = ssub.s32 %s16, 1
      %s323 = smul.u32 32, %s26
      %p324 = scmp.lt.s32.totalorder %s25, 1
      %s325 = scalar_select %p324, %s25, 1
      %p326 = scmp.lt.s32.totalorder %s323, 31
      %s327 = scalar_select %p326, %s323, 31
      %s328 = smul.addr %s325, 32
      %s329 = sadd.s32 %s327, %s328
      %s330 = smul.addr %s329, 8
      %s331 = scalar_lea.vmem %s0, %s330
      %p332 = pneg %p56
      %p333 = pneg %p53
      %p334 = pneg %p77
      %p335 = pneg %p74
      %p336 = pneg %p98
      %p337 = pneg %p95
      %p338 = pneg %p119
      %p339 = pneg %p116
      %p340 = pneg %p140
      %p341 = pneg %p137
      %p342 = pneg %p161
      %p343 = pneg %p158
      %p344 = pneg %p182
      %p345 = pneg %p179
      %p346 = pneg %p210
      %p347 = pneg %p207
      %s348 = smul.u32 32, %s26
      %p349 = scmp.lt.s32.totalorder %s25, 1
      %s350 = scalar_select %p349, %s25, 1
      %p351 = scmp.lt.s32.totalorder %s348, 31
      %s352 = scalar_select %p351, %s348, 31
      %s353 = smul.addr %s350, 32
      %s354 = sadd.s32 %s352, %s353
      %s355 = smul.addr %s354, 8
      %s356 = scalar_lea.vmem %s7, %s355
      %p357 = pneg %p238
      %p358 = pneg %p235
      %s359 = smul.u32 32, %s26
      %p360 = scmp.lt.s32.totalorder %s25, 1
      %s361 = scalar_select %p360, %s25, 1
      %p362 = scmp.lt.s32.totalorder %s359, 31
      %s363 = scalar_select %p362, %s359, 31
      %s364 = smul.addr %s361, 32
      %s365 = sadd.s32 %s363, %s364
      %s366 = smul.addr %s365, 8
      %s367 = scalar_lea.vmem %s8, %s366
      %p368 = pneg %p266
      %p369 = pneg %p263
      %s370 = smul.u32 32, %s26
      %p371 = scmp.lt.s32.totalorder %s25, 1
      %s372 = scalar_select %p371, %s25, 1
      %p373 = scmp.lt.s32.totalorder %s370, 31
      %s374 = scalar_select %p373, %s370, 31
      %s375 = smul.addr %s372, 32
      %s376 = sadd.s32 %s374, %s375
      %s377 = smul.addr %s376, 8
      %s378 = scalar_lea.vmem %s9, %s377
      %s379 = smul.u32 32, %s26
      %p380 = scmp.lt.s32.totalorder %s25, 1
      %s381 = scalar_select %p380, %s25, 1
      %p382 = scmp.lt.s32.totalorder %s379, 31
      %s383 = scalar_select %p382, %s379, 31
      %s384 = smul.addr %s381, 32
      %s385 = sadd.s32 %s383, %s384
      %s386 = smul.addr %s385, 8
      %s387 = scalar_lea.vmem %s0, %s386
      %s388 = smul.u32 32, %s26
      %s389 = smul.u32 32, %s26
      %p390 = scmp.lt.s32.totalorder %s25, 1
      %s391 = scalar_select %p390, %s25, 1
      %p392 = scmp.lt.s32.totalorder %s389, 31
      %s393 = scalar_select %p392, %s389, 31
      %s394 = smul.addr %s391, 32
      %s395 = sadd.s32 %s393, %s394
      %s396 = smul.addr %s395, 8
      %s397 = scalar_lea.vmem %s7, %s396
      %s398 = smul.u32 32, %s26
      %s399 = smul.u32 32, %s26
      %p400 = scmp.lt.s32.totalorder %s25, 1
      %s401 = scalar_select %p400, %s25, 1
      %p402 = scmp.lt.s32.totalorder %s399, 31
      %s403 = scalar_select %p402, %s399, 31
      %s404 = smul.addr %s401, 32
      %s405 = sadd.s32 %s403, %s404
      %s406 = smul.addr %s405, 8
      %s407 = scalar_lea.vmem %s8, %s406
      %s408 = smul.u32 32, %s26
      %s409 = smul.u32 32, %s26
      %p410 = scmp.lt.s32.totalorder %s25, 1
      %s411 = scalar_select %p410, %s25, 1
      %p412 = scmp.lt.s32.totalorder %s409, 31
      %s413 = scalar_select %p412, %s409, 31
      %s414 = smul.addr %s411, 32
      %s415 = sadd.s32 %s413, %s414
      %s416 = smul.addr %s415, 8
      %s417 = scalar_lea.vmem %s9, %s416
      %s418 = smul.u32 32, %s26
      %v419 = vld [vmem:[%s387] sm:$0xff]
      %v420 = vld [vmem:[%s387 + $0x8] sm:$0xff]
      %v421 = vld [vmem:[%s387 + $0x10] sm:$0xff]
      %v422 = vld [vmem:[%s387 + $0x18] sm:$0xff]
      %v423 = vld [vmem:[%s387 + $0x20] sm:$0xff]
      %v424 = vld [vmem:[%s387 + $0x28] sm:$0xff]
      %v425 = vld [vmem:[%s387 + $0x30] sm:$0xff]
      %v426 = vld [vmem:[%s387 + $0x38] sm:$0xff]
      %v427 = vld [vmem:[%s387 + $0x40] sm:$0xff]
      %v428 = vld [vmem:[%s387 + $0x48] sm:$0xff]
      %v429 = vld [vmem:[%s387 + $0x50] sm:$0xff]
      %v430 = vld [vmem:[%s387 + $0x58] sm:$0xff]
      %v431 = vld [vmem:[%s387 + $0x60] sm:$0xff]
      %v432 = vld [vmem:[%s387 + $0x68] sm:$0xff]
      %v433 = vld [vmem:[%s387 + $0x70] sm:$0xff]
      %v434 = vld [vmem:[%s387 + $0x78] sm:$0xff]
      %v435 = vld [vmem:[%s387 + $0x80] sm:$0xff]
      %v436 = vld [vmem:[%s387 + $0x88] sm:$0xff]
      %v437 = vld [vmem:[%s387 + $0x90] sm:$0xff]
      %v438 = vld [vmem:[%s387 + $0x98] sm:$0xff]
      %v439 = vld [vmem:[%s387 + $0xa0] sm:$0xff]
      %v440 = vld [vmem:[%s387 + $0xa8] sm:$0xff]
      %v441 = vld [vmem:[%s387 + $0xb0] sm:$0xff]
      %v442 = vld [vmem:[%s387 + $0xb8] sm:$0xff]
      %v443 = vld [vmem:[%s387 + $0xc0] sm:$0xff]
      %v444 = vld [vmem:[%s387 + $0xc8] sm:$0xff]
      %v445 = vld [vmem:[%s387 + $0xd0] sm:$0xff]
      %v446 = vld [vmem:[%s387 + $0xd8] sm:$0xff]
      %v447 = vld [vmem:[%s387 + $0xe0] sm:$0xff]
      %v448 = vld [vmem:[%s387 + $0xe8] sm:$0xff]
      %v449 = vld [vmem:[%s387 + $0xf0] sm:$0xff]
      %v450 = vld [vmem:[%s387 + $0xf8] sm:$0xff]
      %v451 = vld [vmem:[%s1] sm:$0xff]
      %v452 = vld [vmem:[%s1 + $0x8] sm:$0xff]
      %v453 = vld [vmem:[%s1 + $0x10] sm:$0xff]
      %v454 = vld [vmem:[%s1 + $0x18] sm:$0xff]
      %v455 = vld [vmem:[%s1 + $0x20] sm:$0xff]
      %v456 = vld [vmem:[%s1 + $0x28] sm:$0xff]
      %v457 = vld [vmem:[%s1 + $0x30] sm:$0xff]
      %v458 = vld [vmem:[%s1 + $0x38] sm:$0xff]
      %v459 = vld [vmem:[%s1 + $0x40] sm:$0xff]
      %v460 = vld [vmem:[%s1 + $0x48] sm:$0xff]
      %v461 = vld [vmem:[%s1 + $0x50] sm:$0xff]
      %v462 = vld [vmem:[%s1 + $0x58] sm:$0xff]
      %v463 = vld [vmem:[%s1 + $0x60] sm:$0xff]
      %v464 = vld [vmem:[%s1 + $0x68] sm:$0xff]
      %v465 = vld [vmem:[%s1 + $0x70] sm:$0xff]
      %v466 = vld [vmem:[%s1 + $0x78] sm:$0xff]
      %v467 = vld [vmem:[%s2] sm:$0x1]
      %v469 = vperm.slane %v467, 0
      %471 = vmatpush.msra.mxu0 %v466
      %472 = vmatpush.msra.mxu0 %v465
      %473 = vmatpush.msra.mxu0 %v464
      %474 = vmatpush.msra.mxu0 %v463
      %475 = vmatpush.msra.mxu0 %v462
      %476 = vmatpush.msra.mxu0 %v461
      %477 = vmatpush.msra.mxu0 %v460
      %478 = vmatpush.msra.mxu0 %v459
      %479 = vmatpush.msra.mxu0 %v458
      %480 = vmatpush.msra.mxu0 %v457
      %481 = vmatpush.msra.mxu0 %v456
      %482 = vmatpush.msra.mxu0 %v455
      %483 = vmatpush.msra.mxu0 %v454
      %484 = vmatpush.msra.mxu0 %v453
      %485 = vmatpush.msra.mxu0 %v452
      %486 = vmatpush.msra.mxu0 %v451
      %487 = vmatmul.f32.gmra.mxu0 %v419
      %v488 = vpop.f32.mrf.mxu0
      %v489 = vadd.f32 %v469, %v488
      %490 = vmatmul.f32.gmra.mxu0 %v420
      %v491 = vpop.f32.mrf.mxu0
      %v492 = vadd.f32 %v469, %v491
      %493 = vmatmul.f32.gmra.mxu0 %v421
      %v494 = vpop.f32.mrf.mxu0
      %v495 = vadd.f32 %v469, %v494
      %496 = vmatmul.f32.gmra.mxu0 %v422
      %v497 = vpop.f32.mrf.mxu0
      %v498 = vadd.f32 %v469, %v497
      %499 = vmatmul.f32.gmra.mxu0 %v423
      %v500 = vpop.f32.mrf.mxu0
      %v501 = vadd.f32 %v469, %v500
      %502 = vmatmul.f32.gmra.mxu0 %v424
      %v503 = vpop.f32.mrf.mxu0
      %v504 = vadd.f32 %v469, %v503
      %505 = vmatmul.f32.gmra.mxu0 %v425
      %v506 = vpop.f32.mrf.mxu0
      %v507 = vadd.f32 %v469, %v506
      %508 = vmatmul.f32.gmra.mxu0 %v426
      %v509 = vpop.f32.mrf.mxu0
      %v510 = vadd.f32 %v469, %v509
      %511 = vmatmul.f32.gmra.mxu0 %v427
      %v512 = vpop.f32.mrf.mxu0
      %v513 = vadd.f32 %v469, %v512
      %514 = vmatmul.f32.gmra.mxu0 %v428
      %v515 = vpop.f32.mrf.mxu0
      %v516 = vadd.f32 %v469, %v515
      %517 = vmatmul.f32.gmra.mxu0 %v429
      %v518 = vpop.f32.mrf.mxu0
      %v519 = vadd.f32 %v469, %v518
      %520 = vmatmul.f32.gmra.mxu0 %v430
      %v521 = vpop.f32.mrf.mxu0
      %v522 = vadd.f32 %v469, %v521
      %523 = vmatmul.f32.gmra.mxu0 %v431
      %v524 = vpop.f32.mrf.mxu0
      %v525 = vadd.f32 %v469, %v524
      %526 = vmatmul.f32.gmra.mxu0 %v432
      %v527 = vpop.f32.mrf.mxu0
      %v528 = vadd.f32 %v469, %v527
      %529 = vmatmul.f32.gmra.mxu0 %v433
      %v530 = vpop.f32.mrf.mxu0
      %v531 = vadd.f32 %v469, %v530
      %532 = vmatmul.f32.gmra.mxu0 %v434
      %v533 = vpop.f32.mrf.mxu0
      %v534 = vadd.f32 %v469, %v533
      %535 = vmatmul.f32.gmra.mxu0 %v435
      %v536 = vpop.f32.mrf.mxu0
      %v537 = vadd.f32 %v469, %v536
      %538 = vmatmul.f32.gmra.mxu0 %v436
      %v539 = vpop.f32.mrf.mxu0
      %v540 = vadd.f32 %v469, %v539
      %541 = vmatmul.f32.gmra.mxu0 %v437
      %v542 = vpop.f32.mrf.mxu0
      %v543 = vadd.f32 %v469, %v542
      %544 = vmatmul.f32.gmra.mxu0 %v438
      %v545 = vpop.f32.mrf.mxu0
      %v546 = vadd.f32 %v469, %v545
      %547 = vmatmul.f32.gmra.mxu0 %v439
      %v548 = vpop.f32.mrf.mxu0
      %v549 = vadd.f32 %v469, %v548
      %550 = vmatmul.f32.gmra.mxu0 %v440
      %v551 = vpop.f32.mrf.mxu0
      %v552 = vadd.f32 %v469, %v551
      %553 = vmatmul.f32.gmra.mxu0 %v441
      %v554 = vpop.f32.mrf.mxu0
      %v555 = vadd.f32 %v469, %v554
      %556 = vmatmul.f32.gmra.mxu0 %v442
      %v557 = vpop.f32.mrf.mxu0
      %v558 = vadd.f32 %v469, %v557
      %559 = vmatmul.f32.gmra.mxu0 %v443
      %v560 = vpop.f32.mrf.mxu0
      %v561 = vadd.f32 %v469, %v560
      %562 = vmatmul.f32.gmra.mxu0 %v444
      %v563 = vpop.f32.mrf.mxu0
      %v564 = vadd.f32 %v469, %v563
      %565 = vmatmul.f32.gmra.mxu0 %v445
      %v566 = vpop.f32.mrf.mxu0
      %v567 = vadd.f32 %v469, %v566
      %568 = vmatmul.f32.gmra.mxu0 %v446
      %v569 = vpop.f32.mrf.mxu0
      %v570 = vadd.f32 %v469, %v569
      %571 = vmatmul.f32.gmra.mxu0 %v447
      %v572 = vpop.f32.mrf.mxu0
      %v573 = vadd.f32 %v469, %v572
      %574 = vmatmul.f32.gmra.mxu0 %v448
      %v575 = vpop.f32.mrf.mxu0
      %v576 = vadd.f32 %v469, %v575
      %577 = vmatmul.f32.gmra.mxu0 %v449
      %v578 = vpop.f32.mrf.mxu0
      %v579 = vadd.f32 %v469, %v578
      %580 = vmatmul.f32.gmra.mxu0 %v450
      %v581 = vpop.f32.mrf.mxu0
      %v582 = vadd.f32 %v469, %v581
      %583 = vdwg.mxu0
      %v584 = vld [vmem:[%s3] sm:$0xff]
      %v585 = vld [vmem:[%s3 + $0x8] sm:$0xff]
      %v586 = vld [vmem:[%s3 + $0x10] sm:$0xff]
      %v587 = vld [vmem:[%s3 + $0x18] sm:$0xff]
      %v588 = vld [vmem:[%s3 + $0x20] sm:$0xff]
      %v589 = vld [vmem:[%s3 + $0x28] sm:$0xff]
      %v590 = vld [vmem:[%s3 + $0x30] sm:$0xff]
      %v591 = vld [vmem:[%s3 + $0x38] sm:$0xff]
      %v592 = vld [vmem:[%s3 + $0x40] sm:$0xff]
      %v593 = vld [vmem:[%s3 + $0x48] sm:$0xff]
      %v594 = vld [vmem:[%s3 + $0x50] sm:$0xff]
      %v595 = vld [vmem:[%s3 + $0x58] sm:$0xff]
      %v596 = vld [vmem:[%s3 + $0x60] sm:$0xff]
      %v597 = vld [vmem:[%s3 + $0x68] sm:$0xff]
      %v598 = vld [vmem:[%s3 + $0x70] sm:$0xff]
      %v599 = vld [vmem:[%s3 + $0x78] sm:$0xff]
      %v600 = vld [vmem:[%s4] sm:$0x1]
      %v602 = vperm.slane %v600, 0
      %604 = vmatpush.msra.mxu0 %v599
      %605 = vmatpush.msra.mxu0 %v598
      %606 = vmatpush.msra.mxu0 %v597
      %607 = vmatpush.msra.mxu0 %v596
      %608 = vmatpush.msra.mxu0 %v595
      %609 = vmatpush.msra.mxu0 %v594
      %610 = vmatpush.msra.mxu0 %v593
      %611 = vmatpush.msra.mxu0 %v592
      %612 = vmatpush.msra.mxu0 %v591
      %613 = vmatpush.msra.mxu0 %v590
      %614 = vmatpush.msra.mxu0 %v589
      %615 = vmatpush.msra.mxu0 %v588
      %616 = vmatpush.msra.mxu0 %v587
      %617 = vmatpush.msra.mxu0 %v586
      %618 = vmatpush.msra.mxu0 %v585
      %619 = vmatpush.msra.mxu0 %v584
      %620 = vmatmul.f32.gmra.mxu0 %v419
      %v621 = vpop.f32.mrf.mxu0
      %v622 = vadd.f32 %v602, %v621
      %623 = vmatmul.f32.gmra.mxu0 %v420
      %v624 = vpop.f32.mrf.mxu0
      %v625 = vadd.f32 %v602, %v624
      %626 = vmatmul.f32.gmra.mxu0 %v421
      %v627 = vpop.f32.mrf.mxu0
      %v628 = vadd.f32 %v602, %v627
      %629 = vmatmul.f32.gmra.mxu0 %v422
      %v630 = vpop.f32.mrf.mxu0
      %v631 = vadd.f32 %v602, %v630
      %632 = vmatmul.f32.gmra.mxu0 %v423
      %v633 = vpop.f32.mrf.mxu0
      %v634 = vadd.f32 %v602, %v633
      %635 = vmatmul.f32.gmra.mxu0 %v424
      %v636 = vpop.f32.mrf.mxu0
      %v637 = vadd.f32 %v602, %v636
      %638 = vmatmul.f32.gmra.mxu0 %v425
      %v639 = vpop.f32.mrf.mxu0
      %v640 = vadd.f32 %v602, %v639
      %641 = vmatmul.f32.gmra.mxu0 %v426
      %v642 = vpop.f32.mrf.mxu0
      %v643 = vadd.f32 %v602, %v642
      %644 = vmatmul.f32.gmra.mxu0 %v427
      %v645 = vpop.f32.mrf.mxu0
      %v646 = vadd.f32 %v602, %v645
      %647 = vmatmul.f32.gmra.mxu0 %v428
      %v648 = vpop.f32.mrf.mxu0
      %v649 = vadd.f32 %v602, %v648
      %650 = vmatmul.f32.gmra.mxu0 %v429
      %v651 = vpop.f32.mrf.mxu0
      %v652 = vadd.f32 %v602, %v651
      %653 = vmatmul.f32.gmra.mxu0 %v430
      %v654 = vpop.f32.mrf.mxu0
      %v655 = vadd.f32 %v602, %v654
      %656 = vmatmul.f32.gmra.mxu0 %v431
      %v657 = vpop.f32.mrf.mxu0
      %v658 = vadd.f32 %v602, %v657
      %659 = vmatmul.f32.gmra.mxu0 %v432
      %v660 = vpop.f32.mrf.mxu0
      %v661 = vadd.f32 %v602, %v660
      %662 = vmatmul.f32.gmra.mxu0 %v433
      %v663 = vpop.f32.mrf.mxu0
      %v664 = vadd.f32 %v602, %v663
      %665 = vmatmul.f32.gmra.mxu0 %v434
      %v666 = vpop.f32.mrf.mxu0
      %v667 = vadd.f32 %v602, %v666
      %668 = vmatmul.f32.gmra.mxu0 %v435
      %v669 = vpop.f32.mrf.mxu0
      %v670 = vadd.f32 %v602, %v669
      %671 = vmatmul.f32.gmra.mxu0 %v436
      %v672 = vpop.f32.mrf.mxu0
      %v673 = vadd.f32 %v602, %v672
      %674 = vmatmul.f32.gmra.mxu0 %v437
      %v675 = vpop.f32.mrf.mxu0
      %v676 = vadd.f32 %v602, %v675
      %677 = vmatmul.f32.gmra.mxu0 %v438
      %v678 = vpop.f32.mrf.mxu0
      %v679 = vadd.f32 %v602, %v678
      %680 = vmatmul.f32.gmra.mxu0 %v439
      %v681 = vpop.f32.mrf.mxu0
      %v682 = vadd.f32 %v602, %v681
      %683 = vmatmul.f32.gmra.mxu0 %v440
      %v684 = vpop.f32.mrf.mxu0
      %v685 = vadd.f32 %v602, %v684
      %686 = vmatmul.f32.gmra.mxu0 %v441
      %v687 = vpop.f32.mrf.mxu0
      %v688 = vadd.f32 %v602, %v687
      %689 = vmatmul.f32.gmra.mxu0 %v442
      %v690 = vpop.f32.mrf.mxu0
      %v691 = vadd.f32 %v602, %v690
      %692 = vmatmul.f32.gmra.mxu0 %v443
      %v693 = vpop.f32.mrf.mxu0
      %v694 = vadd.f32 %v602, %v693
      %695 = vmatmul.f32.gmra.mxu0 %v444
      %v696 = vpop.f32.mrf.mxu0
      %v697 = vadd.f32 %v602, %v696
      %698 = vmatmul.f32.gmra.mxu0 %v445
      %v699 = vpop.f32.mrf.mxu0
      %v700 = vadd.f32 %v602, %v699
      %701 = vmatmul.f32.gmra.mxu0 %v446
      %v702 = vpop.f32.mrf.mxu0
      %v703 = vadd.f32 %v602, %v702
      %704 = vmatmul.f32.gmra.mxu0 %v447
      %v705 = vpop.f32.mrf.mxu0
      %v706 = vadd.f32 %v602, %v705
      %707 = vmatmul.f32.gmra.mxu0 %v448
      %v708 = vpop.f32.mrf.mxu0
      %v709 = vadd.f32 %v602, %v708
      %710 = vmatmul.f32.gmra.mxu0 %v449
      %v711 = vpop.f32.mrf.mxu0
      %v712 = vadd.f32 %v602, %v711
      %713 = vmatmul.f32.gmra.mxu0 %v450
      %v714 = vpop.f32.mrf.mxu0
      %v715 = vadd.f32 %v602, %v714
      %716 = vdwg.mxu0
      %v717 = vld [vmem:[%s5] sm:$0xff]
      %v718 = vld [vmem:[%s5 + $0x8] sm:$0xff]
      %v719 = vld [vmem:[%s5 + $0x10] sm:$0xff]
      %v720 = vld [vmem:[%s5 + $0x18] sm:$0xff]
      %v721 = vld [vmem:[%s5 + $0x20] sm:$0xff]
      %v722 = vld [vmem:[%s5 + $0x28] sm:$0xff]
      %v723 = vld [vmem:[%s5 + $0x30] sm:$0xff]
      %v724 = vld [vmem:[%s5 + $0x38] sm:$0xff]
      %v725 = vld [vmem:[%s5 + $0x40] sm:$0xff]
      %v726 = vld [vmem:[%s5 + $0x48] sm:$0xff]
      %v727 = vld [vmem:[%s5 + $0x50] sm:$0xff]
      %v728 = vld [vmem:[%s5 + $0x58] sm:$0xff]
      %v729 = vld [vmem:[%s5 + $0x60] sm:$0xff]
      %v730 = vld [vmem:[%s5 + $0x68] sm:$0xff]
      %v731 = vld [vmem:[%s5 + $0x70] sm:$0xff]
      %v732 = vld [vmem:[%s5 + $0x78] sm:$0xff]
      %v733 = vld [vmem:[%s6] sm:$0x1]
      %v735 = vperm.slane %v733, 0
      %737 = vmatpush.msra.mxu0 %v732
      %738 = vmatpush.msra.mxu0 %v731
      %739 = vmatpush.msra.mxu0 %v730
      %740 = vmatpush.msra.mxu0 %v729
      %741 = vmatpush.msra.mxu0 %v728
      %742 = vmatpush.msra.mxu0 %v727
      %743 = vmatpush.msra.mxu0 %v726
      %744 = vmatpush.msra.mxu0 %v725
      %745 = vmatpush.msra.mxu0 %v724
      %746 = vmatpush.msra.mxu0 %v723
      %747 = vmatpush.msra.mxu0 %v722
      %748 = vmatpush.msra.mxu0 %v721
      %749 = vmatpush.msra.mxu0 %v720
      %750 = vmatpush.msra.mxu0 %v719
      %751 = vmatpush.msra.mxu0 %v718
      %752 = vmatpush.msra.mxu0 %v717
      %753 = vmatmul.f32.gmra.mxu0 %v419
      %v754 = vpop.f32.mrf.mxu0
      %v755 = vadd.f32 %v735, %v754
      %756 = vmatmul.f32.gmra.mxu0 %v420
      %v757 = vpop.f32.mrf.mxu0
      %v758 = vadd.f32 %v735, %v757
      %759 = vmatmul.f32.gmra.mxu0 %v421
      %v760 = vpop.f32.mrf.mxu0
      %v761 = vadd.f32 %v735, %v760
      %762 = vmatmul.f32.gmra.mxu0 %v422
      %v763 = vpop.f32.mrf.mxu0
      %v764 = vadd.f32 %v735, %v763
      %765 = vmatmul.f32.gmra.mxu0 %v423
      %v766 = vpop.f32.mrf.mxu0
      %v767 = vadd.f32 %v735, %v766
      %768 = vmatmul.f32.gmra.mxu0 %v424
      %v769 = vpop.f32.mrf.mxu0
      %v770 = vadd.f32 %v735, %v769
      %771 = vmatmul.f32.gmra.mxu0 %v425
      %v772 = vpop.f32.mrf.mxu0
      %v773 = vadd.f32 %v735, %v772
      %774 = vmatmul.f32.gmra.mxu0 %v426
      %v775 = vpop.f32.mrf.mxu0
      %v776 = vadd.f32 %v735, %v775
      %777 = vmatmul.f32.gmra.mxu0 %v427
      %v778 = vpop.f32.mrf.mxu0
      %v779 = vadd.f32 %v735, %v778
      %780 = vmatmul.f32.gmra.mxu0 %v428
      %v781 = vpop.f32.mrf.mxu0
      %v782 = vadd.f32 %v735, %v781
      %783 = vmatmul.f32.gmra.mxu0 %v429
      %v784 = vpop.f32.mrf.mxu0
      %v785 = vadd.f32 %v735, %v784
      %786 = vmatmul.f32.gmra.mxu0 %v430
      %v787 = vpop.f32.mrf.mxu0
      %v788 = vadd.f32 %v735, %v787
      %789 = vmatmul.f32.gmra.mxu0 %v431
      %v790 = vpop.f32.mrf.mxu0
      %v791 = vadd.f32 %v735, %v790
      %792 = vmatmul.f32.gmra.mxu0 %v432
      %v793 = vpop.f32.mrf.mxu0
      %v794 = vadd.f32 %v735, %v793
      %795 = vmatmul.f32.gmra.mxu0 %v433
      %v796 = vpop.f32.mrf.mxu0
      %v797 = vadd.f32 %v735, %v796
      %798 = vmatmul.f32.gmra.mxu0 %v434
      %v799 = vpop.f32.mrf.mxu0
      %v800 = vadd.f32 %v735, %v799
      %801 = vmatmul.f32.gmra.mxu0 %v435
      %v802 = vpop.f32.mrf.mxu0
      %v803 = vadd.f32 %v735, %v802
      %804 = vmatmul.f32.gmra.mxu0 %v436
      %v805 = vpop.f32.mrf.mxu0
      %v806 = vadd.f32 %v735, %v805
      %807 = vmatmul.f32.gmra.mxu0 %v437
      %v808 = vpop.f32.mrf.mxu0
      %v809 = vadd.f32 %v735, %v808
      %810 = vmatmul.f32.gmra.mxu0 %v438
      %v811 = vpop.f32.mrf.mxu0
      %v812 = vadd.f32 %v735, %v811
      %813 = vmatmul.f32.gmra.mxu0 %v439
      %v814 = vpop.f32.mrf.mxu0
      %v815 = vadd.f32 %v735, %v814
      %816 = vmatmul.f32.gmra.mxu0 %v440
      %v817 = vpop.f32.mrf.mxu0
      %v818 = vadd.f32 %v735, %v817
      %819 = vmatmul.f32.gmra.mxu0 %v441
      %v820 = vpop.f32.mrf.mxu0
      %v821 = vadd.f32 %v735, %v820
      %822 = vmatmul.f32.gmra.mxu0 %v442
      %v823 = vpop.f32.mrf.mxu0
      %v824 = vadd.f32 %v735, %v823
      %825 = vmatmul.f32.gmra.mxu0 %v443
      %v826 = vpop.f32.mrf.mxu0
      %v827 = vadd.f32 %v735, %v826
      %828 = vmatmul.f32.gmra.mxu0 %v444
      %v829 = vpop.f32.mrf.mxu0
      %v830 = vadd.f32 %v735, %v829
      %831 = vmatmul.f32.gmra.mxu0 %v445
      %v832 = vpop.f32.mrf.mxu0
      %v833 = vadd.f32 %v735, %v832
      %834 = vmatmul.f32.gmra.mxu0 %v446
      %v835 = vpop.f32.mrf.mxu0
      %v836 = vadd.f32 %v735, %v835
      %837 = vmatmul.f32.gmra.mxu0 %v447
      %v838 = vpop.f32.mrf.mxu0
      %v839 = vadd.f32 %v735, %v838
      %840 = vmatmul.f32.gmra.mxu0 %v448
      %v841 = vpop.f32.mrf.mxu0
      %v842 = vadd.f32 %v735, %v841
      %843 = vmatmul.f32.gmra.mxu0 %v449
      %v844 = vpop.f32.mrf.mxu0
      %v845 = vadd.f32 %v735, %v844
      %846 = vmatmul.f32.gmra.mxu0 %v450
      %v847 = vpop.f32.mrf.mxu0
      %v848 = vadd.f32 %v735, %v847
      %849 = vdwg.mxu0
      %850 = vst [vmem:[%s397] sm:$0xff] %v489
      %851 = vst [vmem:[%s397 + $0x8] sm:$0xff] %v492
      %852 = vst [vmem:[%s397 + $0x10] sm:$0xff] %v495
      %853 = vst [vmem:[%s397 + $0x18] sm:$0xff] %v498
      %854 = vst [vmem:[%s397 + $0x20] sm:$0xff] %v501
      %855 = vst [vmem:[%s397 + $0x28] sm:$0xff] %v504
      %856 = vst [vmem:[%s397 + $0x30] sm:$0xff] %v507
      %857 = vst [vmem:[%s397 + $0x38] sm:$0xff] %v510
      %858 = vst [vmem:[%s397 + $0x40] sm:$0xff] %v513
      %859 = vst [vmem:[%s397 + $0x48] sm:$0xff] %v516
      %860 = vst [vmem:[%s397 + $0x50] sm:$0xff] %v519
      %861 = vst [vmem:[%s397 + $0x58] sm:$0xff] %v522
      %862 = vst [vmem:[%s397 + $0x60] sm:$0xff] %v525
      %863 = vst [vmem:[%s397 + $0x68] sm:$0xff] %v528
      %864 = vst [vmem:[%s397 + $0x70] sm:$0xff] %v531
      %865 = vst [vmem:[%s397 + $0x78] sm:$0xff] %v534
      %866 = vst [vmem:[%s397 + $0x80] sm:$0xff] %v537
      %867 = vst [vmem:[%s397 + $0x88] sm:$0xff] %v540
      %868 = vst [vmem:[%s397 + $0x90] sm:$0xff] %v543
      %869 = vst [vmem:[%s397 + $0x98] sm:$0xff] %v546
      %870 = vst [vmem:[%s397 + $0xa0] sm:$0xff] %v549
      %871 = vst [vmem:[%s397 + $0xa8] sm:$0xff] %v552
      %872 = vst [vmem:[%s397 + $0xb0] sm:$0xff] %v555
      %873 = vst [vmem:[%s397 + $0xb8] sm:$0xff] %v558
      %874 = vst [vmem:[%s397 + $0xc0] sm:$0xff] %v561
      %875 = vst [vmem:[%s397 + $0xc8] sm:$0xff] %v564
      %876 = vst [vmem:[%s397 + $0xd0] sm:$0xff] %v567
      %877 = vst [vmem:[%s397 + $0xd8] sm:$0xff] %v570
      %878 = vst [vmem:[%s397 + $0xe0] sm:$0xff] %v573
      %879 = vst [vmem:[%s397 + $0xe8] sm:$0xff] %v576
      %880 = vst [vmem:[%s397 + $0xf0] sm:$0xff] %v579
      %881 = vst [vmem:[%s397 + $0xf8] sm:$0xff] %v582
      %882 = vst [vmem:[%s407] sm:$0xff] %v622
      %883 = vst [vmem:[%s407 + $0x8] sm:$0xff] %v625
      %884 = vst [vmem:[%s407 + $0x10] sm:$0xff] %v628
      %885 = vst [vmem:[%s407 + $0x18] sm:$0xff] %v631
      %886 = vst [vmem:[%s407 + $0x20] sm:$0xff] %v634
      %887 = vst [vmem:[%s407 + $0x28] sm:$0xff] %v637
      %888 = vst [vmem:[%s407 + $0x30] sm:$0xff] %v640
      %889 = vst [vmem:[%s407 + $0x38] sm:$0xff] %v643
      %890 = vst [vmem:[%s407 + $0x40] sm:$0xff] %v646
      %891 = vst [vmem:[%s407 + $0x48] sm:$0xff] %v649
      %892 = vst [vmem:[%s407 + $0x50] sm:$0xff] %v652
      %893 = vst [vmem:[%s407 + $0x58] sm:$0xff] %v655
      %894 = vst [vmem:[%s407 + $0x60] sm:$0xff] %v658
      %895 = vst [vmem:[%s407 + $0x68] sm:$0xff] %v661
      %896 = vst [vmem:[%s407 + $0x70] sm:$0xff] %v664
      %897 = vst [vmem:[%s407 + $0x78] sm:$0xff] %v667
      %898 = vst [vmem:[%s407 + $0x80] sm:$0xff] %v670
      %899 = vst [vmem:[%s407 + $0x88] sm:$0xff] %v673
      %900 = vst [vmem:[%s407 + $0x90] sm:$0xff] %v676
      %901 = vst [vmem:[%s407 + $0x98] sm:$0xff] %v679
      %902 = vst [vmem:[%s407 + $0xa0] sm:$0xff] %v682
      %903 = vst [vmem:[%s407 + $0xa8] sm:$0xff] %v685
      %904 = vst [vmem:[%s407 + $0xb0] sm:$0xff] %v688
      %905 = vst [vmem:[%s407 + $0xb8] sm:$0xff] %v691
      %906 = vst [vmem:[%s407 + $0xc0] sm:$0xff] %v694
      %907 = vst [vmem:[%s407 + $0xc8] sm:$0xff] %v697
      %908 = vst [vmem:[%s407 + $0xd0] sm:$0xff] %v700
      %909 = vst [vmem:[%s407 + $0xd8] sm:$0xff] %v703
      %910 = vst [vmem:[%s407 + $0xe0] sm:$0xff] %v706
      %911 = vst [vmem:[%s407 + $0xe8] sm:$0xff] %v709
      %912 = vst [vmem:[%s407 + $0xf0] sm:$0xff] %v712
      %913 = vst [vmem:[%s407 + $0xf8] sm:$0xff] %v715
      %914 = vst [vmem:[%s417] sm:$0xff] %v755
      %915 = vst [vmem:[%s417 + $0x8] sm:$0xff] %v758
      %916 = vst [vmem:[%s417 + $0x10] sm:$0xff] %v761
      %917 = vst [vmem:[%s417 + $0x18] sm:$0xff] %v764
      %918 = vst [vmem:[%s417 + $0x20] sm:$0xff] %v767
      %919 = vst [vmem:[%s417 + $0x28] sm:$0xff] %v770
      %920 = vst [vmem:[%s417 + $0x30] sm:$0xff] %v773
      %921 = vst [vmem:[%s417 + $0x38] sm:$0xff] %v776
      %922 = vst [vmem:[%s417 + $0x40] sm:$0xff] %v779
      %923 = vst [vmem:[%s417 + $0x48] sm:$0xff] %v782
      %924 = vst [vmem:[%s417 + $0x50] sm:$0xff] %v785
      %925 = vst [vmem:[%s417 + $0x58] sm:$0xff] %v788
      %926 = vst [vmem:[%s417 + $0x60] sm:$0xff] %v791
      %927 = vst [vmem:[%s417 + $0x68] sm:$0xff] %v794
      %928 = vst [vmem:[%s417 + $0x70] sm:$0xff] %v797
      %929 = vst [vmem:[%s417 + $0x78] sm:$0xff] %v800
      %930 = vst [vmem:[%s417 + $0x80] sm:$0xff] %v803
      %931 = vst [vmem:[%s417 + $0x88] sm:$0xff] %v806
      %932 = vst [vmem:[%s417 + $0x90] sm:$0xff] %v809
      %933 = vst [vmem:[%s417 + $0x98] sm:$0xff] %v812
      %934 = vst [vmem:[%s417 + $0xa0] sm:$0xff] %v815
      %935 = vst [vmem:[%s417 + $0xa8] sm:$0xff] %v818
      %936 = vst [vmem:[%s417 + $0xb0] sm:$0xff] %v821
      %937 = vst [vmem:[%s417 + $0xb8] sm:$0xff] %v824
      %938 = vst [vmem:[%s417 + $0xc0] sm:$0xff] %v827
      %939 = vst [vmem:[%s417 + $0xc8] sm:$0xff] %v830
      %940 = vst [vmem:[%s417 + $0xd0] sm:$0xff] %v833
      %941 = vst [vmem:[%s417 + $0xd8] sm:$0xff] %v836
      %942 = vst [vmem:[%s417 + $0xe0] sm:$0xff] %v839
      %943 = vst [vmem:[%s417 + $0xe8] sm:$0xff] %v842
      %944 = vst [vmem:[%s417 + $0xf0] sm:$0xff] %v845
      %945 = vst [vmem:[%s417 + $0xf8] sm:$0xff] %v848
      %s946 = smul.u32 32, %s26
      %p947 = scmp.lt.s32.totalorder %s25, 1
      %s948 = scalar_select %p947, %s25, 1
      %p949 = scmp.lt.s32.totalorder %s946, 31
      %s950 = scalar_select %p949, %s946, 31
      %s951 = smul.addr %s948, 32
      %s952 = sadd.s32 %s950, %s951
      %s953 = smul.addr %s952, 8
      %s954 = scalar_lea.vmem %s7, %s953
      %s955 = smul.u32 32, %s26
      %p956 = scmp.lt.s32.totalorder %s25, 1
      %s957 = scalar_select %p956, %s25, 1
      %p958 = scmp.lt.s32.totalorder %s955, 31
      %s959 = scalar_select %p958, %s955, 31
      %s960 = smul.addr %s957, 32
      %s961 = sadd.s32 %s959, %s960
      %s962 = smul.addr %s961, 8
      %s963 = scalar_lea.vmem %s8, %s962
      %s964 = smul.u32 32, %s26
      %p965 = scmp.lt.s32.totalorder %s25, 1
      %s966 = scalar_select %p965, %s25, 1
      %p967 = scmp.lt.s32.totalorder %s964, 31
      %s968 = scalar_select %p967, %s964, 31
      %s969 = smul.addr %s966, 32
      %s970 = sadd.s32 %s968, %s969
      %s971 = smul.addr %s970, 8
      %s972 = scalar_lea.vmem %s9, %s971
      // Predicated region
      $region49: #{pam_forward.2} parent=47 // pred_check
        %p973 = pneg %p207
      $region50: #{pam_forward.2} parent=47 // pred_check_branch
        %975 = sbr.rel (%p973) target = $region52
      $region51: #{pam_forward.2} parent=47 // pred_region
        %s976 = smul.u32 32, %s26
      $region52: #{pam_forward.2} parent=47 // pred_fallthru
        _
      // Predicated region
      $region53: #{pam_forward.2} parent=47 // pred_check
        %p977 = pneg %p235
      $region54: #{pam_forward.2} parent=47 // pred_check_branch
        %979 = sbr.rel (%p977) target = $region56
      $region55: #{pam_forward.2} parent=47 // pred_region
        %s980 = smul.u32 32, %s26
      $region56: #{pam_forward.2} parent=47 // pred_fallthru
        _
      // Predicated region
      $region57: #{pam_forward.2} parent=47 // pred_check
        %p981 = pneg %p263
      $region58: #{pam_forward.2} parent=47 // pred_check_branch
        %983 = sbr.rel (%p981) target = $region60
      $region59: #{pam_forward.2} parent=47 // pred_region
        %s984 = smul.u32 32, %s26
      $region60: #{pam_forward.2} parent=47 // pred_fallthru
        _
    $region48: #{pam_forward.2} parent=5 // pred_fallthru
      _
    %p985 = scmp.le.s32.totalorder 2, %s16
    // Predicated region
    $region61: #{pam_forward.2} parent=5 // pred_check
      %p986 = pneg %p985
    $region62: #{pam_forward.2} parent=5 // pred_check_branch
      %988 = sbr.rel (%p986) target = $region64
    $region63: #{pam_forward.2} parent=5 // pred_region
      %s989 = ssub.s32 %s16, 2
      // Predicated region
      $region65: #{pam_forward.2} parent=63 // pred_check
        %p990 = pneg %p213
      $region66: #{pam_forward.2} parent=63 // pred_check_branch
        %992 = sbr.rel (%p990) target = $region68
      $region67: #{pam_forward.2} parent=63 // pred_region
        %s993 = smul.u32 32, %s28
        %p994 = scmp.lt.s32.totalorder %s27, 1
        %s995 = scalar_select %p994, %s27, 1
        %p996 = scmp.lt.s32.totalorder %s993, 31
        %s997 = scalar_select %p996, %s993, 31
        %s998 = smul.addr %s995, 32
        %s999 = sadd.s32 %s997, %s998
        %s1000 = smul.addr %s999, 8
        %s1001 = scalar_lea.vmem %s7, %s1000
      $region68: #{pam_forward.2} parent=63 // pred_fallthru
        _
      // Predicated region
      $region69: #{pam_forward.2} parent=63 // pred_check
        %p1002 = pneg %p241
      $region70: #{pam_forward.2} parent=63 // pred_check_branch
        %1004 = sbr.rel (%p1002) target = $region72
      $region71: #{pam_forward.2} parent=63 // pred_region
        %s1005 = smul.u32 32, %s28
        %p1006 = scmp.lt.s32.totalorder %s27, 1
        %s1007 = scalar_select %p1006, %s27, 1
        %p1008 = scmp.lt.s32.totalorder %s1005, 31
        %s1009 = scalar_select %p1008, %s1005, 31
        %s1010 = smul.addr %s1007, 32
        %s1011 = sadd.s32 %s1009, %s1010
        %s1012 = smul.addr %s1011, 8
        %s1013 = scalar_lea.vmem %s8, %s1012
      $region72: #{pam_forward.2} parent=63 // pred_fallthru
        _
      // Predicated region
      $region73: #{pam_forward.2} parent=63 // pred_check
        %p1014 = pneg %p269
      $region74: #{pam_forward.2} parent=63 // pred_check_branch
        %1016 = sbr.rel (%p1014) target = $region76
      $region75: #{pam_forward.2} parent=63 // pred_region
        %s1017 = smul.u32 32, %s28
        %p1018 = scmp.lt.s32.totalorder %s27, 1
        %s1019 = scalar_select %p1018, %s27, 1
        %p1020 = scmp.lt.s32.totalorder %s1017, 31
        %s1021 = scalar_select %p1020, %s1017, 31
        %s1022 = smul.addr %s1019, 32
        %s1023 = sadd.s32 %s1021, %s1022
        %s1024 = smul.addr %s1023, 8
        %s1025 = scalar_lea.vmem %s9, %s1024
      $region76: #{pam_forward.2} parent=63 // pred_fallthru
        _
    $region64: #{pam_forward.2} parent=5 // pred_fallthru
      _
  $region6: #{pam_forward.2} parent=0 // loop_footer
    %s20 = sadd.s32 1, %s16
  $region7: #{pam_forward.2} parent=0 // loop_footer_branch
    %15 = sbr.rel target = $region3
  $region8: #{pam_forward.2} parent=0 // loop_exit
    _

// kernel: pam_forward.3
$region0: #{pam_forward.3}
  #allocation0 [shape = 'u32[]', space=smem, size = 0x4, offset = 0x4, fixed_abs, tag = 'smem constant byte address 0x4 - core index']
  #allocation1 [shape = 'u32[72,128]{1,0:T(1,128)}', space=vmem, size = 0x9000, scoped, tag = 'internal scratch']
  #allocation2 [shape = 'f32[256,1]{1,0:T(8,128)}', space=vmem, size = 0x20000, scoped, tag = 'scratch operand']
  #allocation3 [shape = 'f32[256,1]{1,0:T(8,128)}', space=vmem, size = 0x20000, scoped, tag = 'scratch operand']
  #allocation4 [shape = 'f32[256,128]{1,0:T(8,128)}', space=vmem, size = 0x20000, scoped, tag = 'scratch operand']
  #allocation5 [shape = 'f32[1]{0:T(128)S(6)}', space=smem, size = 0x200, scoped, tag = 'scoped memory for pam_forward.3']
  %s0 = inlined_call_operand.<no memory space> [shape: f32[1], index: 0, kind: input, shape index: {}]
  %s1 = inlined_call_operand.vmem [shape: f32[2,256,128], index: 1, kind: input, shape index: {}]
  %s2 = inlined_call_operand.vmem [shape: f32[2,256,128], index: 2, kind: input, shape index: {}]
  %s3 = inlined_call_operand.vmem [shape: f32[2,256,128], index: 3, kind: input, shape index: {}]
  %s4 = inlined_call_operand.vmem [shape: f32[2,256,128], index: 4, kind: input, shape index: {}]
  %s5 = inlined_call_operand.vmem [shape: f32[2,256,128], index: 5, kind: output, shape index: {}]
  %s6 = sld [smem:[#allocation0]]
  $region61: #{pam_forward.3} parent=0
    _
  %s8 = ssub.s32 1, %s6
  %s9 = scalar_select 0, %s8, %s6
  %10 = sst [smem:[#allocation5]] %s0
  loop: start=0, step=1, limit=4
  $region2: #{pam_forward.3} parent=0 // loop_pre_header
    _
  $region3: #{pam_forward.3} parent=0 // loop_header
    %s12 = sphi 0, %s16
    %p13 = scmp.ge.s32.totalorder %s12, 4
    %s19 = sphi 0, %s38
    %s20 = sphi 0, %s34
    %s21 = sphi 0, %s30
    %s22 = sphi 0, %s19
    %s23 = sphi 0, %s20
    %s24 = sphi 0, %s21
    %s25 = sphi 0, %s22
    %s26 = sphi 0, %s23
    %s27 = sphi 0, %s24
    %s39 = sphi 0, %s39
    %s41 = sphi 0, %s39
    %s42 = sphi 0, %s41
    %s56 = sphi 0, %s42
    %s64 = sphi 0, %s66
    %s67 = sphi 0, %s64
    %s68 = sphi 0, %s67
    %s84 = sphi 0, %s68
    %s92 = sphi 0, %s94
    %s95 = sphi 0, %s92
    %s96 = sphi 0, %s95
    %s112 = sphi 0, %s96
    %s120 = sphi 0, %s122
    %s123 = sphi 0, %s120
    %s124 = sphi 0, %s123
    %s140 = sphi 0, %s124
    %s148 = sphi 0, %s150
    %s151 = sphi 0, %s148
    %s152 = sphi 0, %s151
    %s168 = sphi 0, %s152
    %s176 = sphi 0, %s178
    %s179 = sphi 0, %s176
    %s180 = sphi 0, %s179
    %s196 = sphi 0, %s180
  $region4: #{pam_forward.3} parent=0 // loop_header_branch
    %15 = sbr.rel (%p13) target = $region8
  $region5: #{pam_forward.3} parent=0 // loop_body
    %s17 = ssub.s32 %s12, 1
    %s18 = ssub.s32 %s12, 2
    %s28 = sadd.s32 1, %s21
    %p29 = scmp.ge.s32.totalorder %s28, 1
    %s30 = scalar_select %p29, 0, %s28
    %s31 = sadd.s32 1, %s20
    %s32 = scalar_select %p29, %s31, %s20
    %p33 = scmp.ge.s32.totalorder %s32, 1
    %s34 = scalar_select %p33, 0, %s32
    %s35 = sadd.s32 1, %s19
    %s36 = scalar_select %p33, %s35, %s19
    %p37 = scmp.ge.s32.totalorder %s36, 2
    %s38 = scalar_select %p37, 0, %s36
    %s40 = sadd.s32 %s39, 1
    %p43 = scmp.eq.s32.totalorder %s12, 1
    %p44 = scmp.ne.s32.totalorder %s39, %s41
    %p45 = scmp.eq.s32.totalorder %s12, 0
    %p46 = por %p44, %p45
    %p47 = scmp.ne.s32.totalorder %s39, %s41
    %p48 = scmp.eq.s32.totalorder %s17, 1
    %p49 = por %p47, %p48
    %p50 = scmp.ne.s32.totalorder %s41, %s42
    %p51 = scmp.eq.s32.totalorder %s17, 0
    %p52 = por %p50, %p51
    %p53 = scmp.ne.s32.totalorder %s41, %s42
    %p54 = scmp.eq.s32.totalorder %s18, 1
    %p55 = por %p53, %p54
    %p57 = scmp.ne.s32.totalorder %s42, %s56
    %p58 = scmp.eq.s32.totalorder %s18, 0
    %p59 = por %p57, %p58
    %s60 = ssub.s32 %s19, %s38
    %s61 = ssub.s32 %s20, %s34
    %s62 = sor.u32 %s60, %s61
    %p63 = scmp.eq.s32.totalorder %s62, 0
    %s65 = sadd.s32 %s64, 1
    %s66 = scalar_select %p63, %s64, %s65
    %p69 = pneg %p63
    %p70 = scmp.eq.s32.totalorder %s12, 1
    %p71 = por %p69, %p70
    %p72 = scmp.ne.s32.totalorder %s64, %s67
    %p73 = scmp.eq.s32.totalorder %s12, 0
    %p74 = por %p72, %p73
    %p75 = scmp.ne.s32.totalorder %s64, %s67
    %p76 = scmp.eq.s32.totalorder %s17, 1
    %p77 = por %p75, %p76
    %p78 = scmp.ne.s32.totalorder %s67, %s68
    %p79 = scmp.eq.s32.totalorder %s17, 0
    %p80 = por %p78, %p79
    %p81 = scmp.ne.s32.totalorder %s67, %s68
    %p82 = scmp.eq.s32.totalorder %s18, 1
    %p83 = por %p81, %p82
    %p85 = scmp.ne.s32.totalorder %s68, %s84
    %p86 = scmp.eq.s32.totalorder %s18, 0
    %p87 = por %p85, %p86
    %s88 = ssub.s32 %s19, %s38
    %s89 = ssub.s32 %s21, %s30
    %s90 = sor.u32 %s88, %s89
    %p91 = scmp.eq.s32.totalorder %s90, 0
    %s93 = sadd.s32 %s92, 1
    %s94 = scalar_select %p91, %s92, %s93
    %p97 = pneg %p91
    %p98 = scmp.eq.s32.totalorder %s12, 1
    %p99 = por %p97, %p98
    %p100 = scmp.ne.s32.totalorder %s92, %s95
    %p101 = scmp.eq.s32.totalorder %s12, 0
    %p102 = por %p100, %p101
    %p103 = scmp.ne.s32.totalorder %s92, %s95
    %p104 = scmp.eq.s32.totalorder %s17, 1
    %p105 = por %p103, %p104
    %p106 = scmp.ne.s32.totalorder %s95, %s96
    %p107 = scmp.eq.s32.totalorder %s17, 0
    %p108 = por %p106, %p107
    %p109 = scmp.ne.s32.totalorder %s95, %s96
    %p110 = scmp.eq.s32.totalorder %s18, 1
    %p111 = por %p109, %p110
    %p113 = scmp.ne.s32.totalorder %s96, %s112
    %p114 = scmp.eq.s32.totalorder %s18, 0
    %p115 = por %p113, %p114
    %s116 = ssub.s32 %s19, %s38
    %s117 = ssub.s32 %s21, %s30
    %s118 = sor.u32 %s116, %s117
    %p119 = scmp.eq.s32.totalorder %s118, 0
    %s121 = sadd.s32 %s120, 1
    %s122 = scalar_select %p119, %s120, %s121
    %p125 = pneg %p119
    %p126 = scmp.eq.s32.totalorder %s12, 1
    %p127 = por %p125, %p126
    %p128 = scmp.ne.s32.totalorder %s120, %s123
    %p129 = scmp.eq.s32.totalorder %s12, 0
    %p130 = por %p128, %p129
    %p131 = scmp.ne.s32.totalorder %s120, %s123
    %p132 = scmp.eq.s32.totalorder %s17, 1
    %p133 = por %p131, %p132
    %p134 = scmp.ne.s32.totalorder %s123, %s124
    %p135 = scmp.eq.s32.totalorder %s17, 0
    %p136 = por %p134, %p135
    %p137 = scmp.ne.s32.totalorder %s123, %s124
    %p138 = scmp.eq.s32.totalorder %s18, 1
    %p139 = por %p137, %p138
    %p141 = scmp.ne.s32.totalorder %s124, %s140
    %p142 = scmp.eq.s32.totalorder %s18, 0
    %p143 = por %p141, %p142
    %s144 = ssub.s32 %s19, %s38
    %s145 = ssub.s32 %s20, %s34
    %s146 = sor.u32 %s144, %s145
    %p147 = scmp.eq.s32.totalorder %s146, 0
    %s149 = sadd.s32 %s148, 1
    %s150 = scalar_select %p147, %s148, %s149
    %p153 = pneg %p147
    %p154 = scmp.eq.s32.totalorder %s12, 1
    %p155 = por %p153, %p154
    %p156 = scmp.ne.s32.totalorder %s148, %s151
    %p157 = scmp.eq.s32.totalorder %s12, 0
    %p158 = por %p156, %p157
    %p159 = scmp.ne.s32.totalorder %s148, %s151
    %p160 = scmp.eq.s32.totalorder %s17, 1
    %p161 = por %p159, %p160
    %p162 = scmp.ne.s32.totalorder %s151, %s152
    %p163 = scmp.eq.s32.totalorder %s17, 0
    %p164 = por %p162, %p163
    %p165 = scmp.ne.s32.totalorder %s151, %s152
    %p166 = scmp.eq.s32.totalorder %s18, 1
    %p167 = por %p165, %p166
    %p169 = scmp.ne.s32.totalorder %s152, %s168
    %p170 = scmp.eq.s32.totalorder %s18, 0
    %p171 = por %p169, %p170
    %s172 = ssub.s32 %s19, %s38
    %s173 = ssub.s32 %s20, %s34
    %s174 = sor.u32 %s172, %s173
    %p175 = scmp.eq.s32.totalorder %s174, 0
    %s177 = sadd.s32 %s176, 1
    %s178 = scalar_select %p175, %s176, %s177
    %p181 = pneg %p175
    %p182 = scmp.eq.s32.totalorder %s12, 1
    %p183 = por %p181, %p182
    %p184 = scmp.ne.s32.totalorder %s176, %s179
    %p185 = scmp.eq.s32.totalorder %s12, 0
    %p186 = por %p184, %p185
    %p187 = scmp.ne.s32.totalorder %s176, %s179
    %p188 = scmp.eq.s32.totalorder %s17, 1
    %p189 = por %p187, %p188
    %p190 = scmp.ne.s32.totalorder %s179, %s180
    %p191 = scmp.eq.s32.totalorder %s17, 0
    %p192 = por %p190, %p191
    %p193 = scmp.ne.s32.totalorder %s179, %s180
    %p194 = scmp.eq.s32.totalorder %s18, 1
    %p195 = por %p193, %p194
    %p197 = scmp.ne.s32.totalorder %s180, %s196
    %p198 = scmp.eq.s32.totalorder %s18, 0
    %p199 = por %p197, %p198
    %p200 = scmp.le.s32.totalorder 1, %s12
    %p201 = scmp.lt.s32.totalorder %s12, 3
    %p202 = pnand %p200, %p201
    %p203 = pneg %p202
    // Predicated region
    $region9: #{pam_forward.3} parent=5 // pred_check
      _
    $region10: #{pam_forward.3} parent=5 // pred_check_branch
      %205 = sbr.rel (%p202) target = $region12
    $region11: #{pam_forward.3} parent=5 // pred_region
      %s206 = ssub.s32 %s12, 1
      // Predicated region
      $region13: #{pam_forward.3} parent=11 // pred_check
        %p207 = pneg %p52
      $region14: #{pam_forward.3} parent=11 // pred_check_branch
        %209 = sbr.rel (%p207) target = $region16
      $region15: #{pam_forward.3} parent=11 // pred_region
        _
      $region16: #{pam_forward.3} parent=11 // pred_fallthru
        _
    $region12: #{pam_forward.3} parent=5 // pred_fallthru
      _
    %p210 = scmp.lt.s32.totalorder %s12, 2
    // Predicated region
    $region17: #{pam_forward.3} parent=5 // pred_check
      %p211 = pneg %p210
    $region18: #{pam_forward.3} parent=5 // pred_check_branch
      %213 = sbr.rel (%p211) target = $region20
    $region19: #{pam_forward.3} parent=5 // pred_region
      // Predicated region
      $region21: #{pam_forward.3} parent=19 // pred_check
        %p214 = pneg %p74
      $region22: #{pam_forward.3} parent=19 // pred_check_branch
        %216 = sbr.rel (%p214) target = $region24
      $region23: #{pam_forward.3} parent=19 // pred_region
        %s217 = smul.u32 32, %s20
        %p218 = scmp.lt.s32.totalorder %s19, 1
        %s219 = scalar_select %p218, %s19, 1
        %p220 = scmp.lt.s32.totalorder %s217, 31
        %s221 = scalar_select %p220, %s217, 31
        %s222 = smul.addr %s219, 32
        %s223 = sadd.s32 %s221, %s222
        %s224 = smul.addr %s223, 8
        %s225 = scalar_lea.vmem %s1, %s224
        %s226 = smul.u32 32, %s20
      $region24: #{pam_forward.3} parent=19 // pred_fallthru
        _
      // Predicated region
      $region25: #{pam_forward.3} parent=19 // pred_check
        %p227 = pneg %p102
      $region26: #{pam_forward.3} parent=19 // pred_check_branch
        %229 = sbr.rel (%p227) target = $region28
      $region27: #{pam_forward.3} parent=19 // pred_region
        %s230 = smul.u32 32, %s21
        %p231 = scmp.lt.s32.totalorder %s19, 1
        %s232 = scalar_select %p231, %s19, 1
        %p233 = scmp.lt.s32.totalorder %s230, 31
        %s234 = scalar_select %p233, %s230, 31
        %s235 = smul.addr %s232, 32
        %s236 = sadd.s32 %s234, %s235
        %s237 = smul.addr %s236, 8
        %s238 = scalar_lea.vmem %s2, %s237
        %s239 = smul.u32 32, %s21
      $region28: #{pam_forward.3} parent=19 // pred_fallthru
        _
      // Predicated region
      $region29: #{pam_forward.3} parent=19 // pred_check
        %p240 = pneg %p130
      $region30: #{pam_forward.3} parent=19 // pred_check_branch
        %242 = sbr.rel (%p240) target = $region32
      $region31: #{pam_forward.3} parent=19 // pred_region
        %s243 = smul.u32 32, %s21
        %p244 = scmp.lt.s32.totalorder %s19, 1
        %s245 = scalar_select %p244, %s19, 1
        %p246 = scmp.lt.s32.totalorder %s243, 31
        %s247 = scalar_select %p246, %s243, 31
        %s248 = smul.addr %s245, 32
        %s249 = sadd.s32 %s247, %s248
        %s250 = smul.addr %s249, 8
        %s251 = scalar_lea.vmem %s3, %s250
        %s252 = smul.u32 32, %s21
      $region32: #{pam_forward.3} parent=19 // pred_fallthru
        _
      // Predicated region
      $region33: #{pam_forward.3} parent=19 // pred_check
        %p253 = pneg %p158
      $region34: #{pam_forward.3} parent=19 // pred_check_branch
        %255 = sbr.rel (%p253) target = $region36
      $region35: #{pam_forward.3} parent=19 // pred_region
        %s256 = smul.u32 32, %s20
        %p257 = scmp.lt.s32.totalorder %s19, 1
        %s258 = scalar_select %p257, %s19, 1
        %p259 = scmp.lt.s32.totalorder %s256, 31
        %s260 = scalar_select %p259, %s256, 31
        %s261 = smul.addr %s258, 32
        %s262 = sadd.s32 %s260, %s261
        %s263 = smul.addr %s262, 8
        %s264 = scalar_lea.vmem %s4, %s263
        %s265 = smul.u32 32, %s20
      $region36: #{pam_forward.3} parent=19 // pred_fallthru
        _
    $region20: #{pam_forward.3} parent=5 // pred_fallthru
      _
    %p266 = scmp.le.s32.totalorder 1, %s12
    %p267 = scmp.lt.s32.totalorder %s12, 3
    %p268 = pnand %p266, %p267
    %p269 = pneg %p268
    // Predicated region
    $region37: #{pam_forward.3} parent=5 // pred_check
      _
    $region38: #{pam_forward.3} parent=5 // pred_check_branch
      %271 = sbr.rel (%p268) target = $region40
    $region39: #{pam_forward.3} parent=5 // pred_region
      %s272 = ssub.s32 %s12, 1
      %p273 = pneg %p52
      %p274 = pneg %p49
      %s275 = smul.u32 32, %s23
      %p276 = scmp.lt.s32.totalorder %s22, 1
      %s277 = scalar_select %p276, %s22, 1
      %p278 = scmp.lt.s32.totalorder %s275, 31
      %s279 = scalar_select %p278, %s275, 31
      %s280 = smul.addr %s277, 32
      %s281 = sadd.s32 %s279, %s280
      %s282 = smul.addr %s281, 8
      %s283 = scalar_lea.vmem %s1, %s282
      %p284 = pneg %p80
      %p285 = pneg %p77
      %s286 = smul.u32 32, %s24
      %p287 = scmp.lt.s32.totalorder %s22, 1
      %s288 = scalar_select %p287, %s22, 1
      %p289 = scmp.lt.s32.totalorder %s286, 31
      %s290 = scalar_select %p289, %s286, 31
      %s291 = smul.addr %s288, 32
      %s292 = sadd.s32 %s290, %s291
      %s293 = smul.addr %s292, 8
      %s294 = scalar_lea.vmem %s2, %s293
      %p295 = pneg %p108
      %p296 = pneg %p105
      %s297 = smul.u32 32, %s24
      %p298 = scmp.lt.s32.totalorder %s22, 1
      %s299 = scalar_select %p298, %s22, 1
      %p300 = scmp.lt.s32.totalorder %s297, 31
      %s301 = scalar_select %p300, %s297, 31
      %s302 = smul.addr %s299, 32
      %s303 = sadd.s32 %s301, %s302
      %s304 = smul.addr %s303, 8
      %s305 = scalar_lea.vmem %s3, %s304
      %p306 = pneg %p136
      %p307 = pneg %p133
      %s308 = smul.u32 32, %s23
      %p309 = scmp.lt.s32.totalorder %s22, 1
      %s310 = scalar_select %p309, %s22, 1
      %p311 = scmp.lt.s32.totalorder %s308, 31
      %s312 = scalar_select %p311, %s308, 31
      %s313 = smul.addr %s310, 32
      %s314 = sadd.s32 %s312, %s313
      %s315 = smul.addr %s314, 8
      %s316 = scalar_lea.vmem %s4, %s315
      %p317 = pneg %p164
      %p318 = pneg %p161
      %p319 = pneg %p192
      %p320 = pneg %p189
      %s321 = smul.u32 32, %s23
      %p322 = scmp.lt.s32.totalorder %s22, 1
      %s323 = scalar_select %p322, %s22, 1
      %p324 = scmp.lt.s32.totalorder %s321, 31
      %s325 = scalar_select %p324, %s321, 31
      %s326 = smul.addr %s323, 32
      %s327 = sadd.s32 %s325, %s326
      %s328 = smul.addr %s327, 8
      %s329 = scalar_lea.vmem %s5, %s328
      %s330 = smul.u32 32, %s23
      %p331 = scmp.lt.s32.totalorder %s22, 1
      %s332 = scalar_select %p331, %s22, 1
      %p333 = scmp.lt.s32.totalorder %s330, 31
      %s334 = scalar_select %p333, %s330, 31
      %s335 = smul.addr %s332, 32
      %s336 = sadd.s32 %s334, %s335
      %s337 = smul.addr %s336, 8
      %s338 = scalar_lea.vmem %s1, %s337
      %s339 = smul.u32 32, %s23
      %s340 = smul.u32 32, %s24
      %p341 = scmp.lt.s32.totalorder %s22, 1
      %s342 = scalar_select %p341, %s22, 1
      %p343 = scmp.lt.s32.totalorder %s340, 31
      %s344 = scalar_select %p343, %s340, 31
      %s345 = smul.addr %s342, 32
      %s346 = sadd.s32 %s344, %s345
      %s347 = smul.addr %s346, 8
      %s348 = scalar_lea.vmem %s2, %s347
      %s349 = smul.u32 32, %s24
      %s350 = smul.u32 32, %s24
      %p351 = scmp.lt.s32.totalorder %s22, 1
      %s352 = scalar_select %p351, %s22, 1
      %p353 = scmp.lt.s32.totalorder %s350, 31
      %s354 = scalar_select %p353, %s350, 31
      %s355 = smul.addr %s352, 32
      %s356 = sadd.s32 %s354, %s355
      %s357 = smul.addr %s356, 8
      %s358 = scalar_lea.vmem %s3, %s357
      %s359 = smul.u32 32, %s24
      %s360 = smul.u32 32, %s23
      %p361 = scmp.lt.s32.totalorder %s22, 1
      %s362 = scalar_select %p361, %s22, 1
      %p363 = scmp.lt.s32.totalorder %s360, 31
      %s364 = scalar_select %p363, %s360, 31
      %s365 = smul.addr %s362, 32
      %s366 = sadd.s32 %s364, %s365
      %s367 = smul.addr %s366, 8
      %s368 = scalar_lea.vmem %s4, %s367
      %s369 = smul.u32 32, %s23
      %s370 = smul.u32 32, %s23
      %p371 = scmp.lt.s32.totalorder %s22, 1
      %s372 = scalar_select %p371, %s22, 1
      %p373 = scmp.lt.s32.totalorder %s370, 31
      %s374 = scalar_select %p373, %s370, 31
      %s375 = smul.addr %s372, 32
      %s376 = sadd.s32 %s374, %s375
      %s377 = smul.addr %s376, 8
      %s378 = scalar_lea.vmem %s5, %s377
      %s379 = smul.u32 32, %s23
      %p380 = scmp.eq.s32.totalorder %s24, 0
      // Predicated region
      $region41: #{pam_forward.3} parent=39 // pred_check
        %p381 = pneg %p380
      $region42: #{pam_forward.3} parent=39 // pred_check_branch
        %383 = sbr.rel (%p381) target = $region44
      $region43: #{pam_forward.3} parent=39 // pred_region
        %vm384 = vcmask 7168
        %385 = vst.msk [vmem:[#allocation2] sm:$0xff] %vm384, -inf
        %386 = vst.msk [vmem:[#allocation2 + $0x8] sm:$0xff] %vm384, -inf
        %387 = vst.msk [vmem:[#allocation2 + $0x10] sm:$0xff] %vm384, -inf
        %388 = vst.msk [vmem:[#allocation2 + $0x18] sm:$0xff] %vm384, -inf
        %389 = vst.msk [vmem:[#allocation2 + $0x20] sm:$0xff] %vm384, -inf
        %390 = vst.msk [vmem:[#allocation2 + $0x28] sm:$0xff] %vm384, -inf
        %391 = vst.msk [vmem:[#allocation2 + $0x30] sm:$0xff] %vm384, -inf
        %392 = vst.msk [vmem:[#allocation2 + $0x38] sm:$0xff] %vm384, -inf
        %393 = vst.msk [vmem:[#allocation2 + $0x40] sm:$0xff] %vm384, -inf
        %394 = vst.msk [vmem:[#allocation2 + $0x48] sm:$0xff] %vm384, -inf
        %395 = vst.msk [vmem:[#allocation2 + $0x50] sm:$0xff] %vm384, -inf
        %396 = vst.msk [vmem:[#allocation2 + $0x58] sm:$0xff] %vm384, -inf
        %397 = vst.msk [vmem:[#allocation2 + $0x60] sm:$0xff] %vm384, -inf
        %398 = vst.msk [vmem:[#allocation2 + $0x68] sm:$0xff] %vm384, -inf
        %399 = vst.msk [vmem:[#allocation2 + $0x70] sm:$0xff] %vm384, -inf
        %400 = vst.msk [vmem:[#allocation2 + $0x78] sm:$0xff] %vm384, -inf
        %401 = vst.msk [vmem:[#allocation2 + $0x80] sm:$0xff] %vm384, -inf
        %402 = vst.msk [vmem:[#allocation2 + $0x88] sm:$0xff] %vm384, -inf
        %403 = vst.msk [vmem:[#allocation2 + $0x90] sm:$0xff] %vm384, -inf
        %404 = vst.msk [vmem:[#allocation2 + $0x98] sm:$0xff] %vm384, -inf
        %405 = vst.msk [vmem:[#allocation2 + $0xa0] sm:$0xff] %vm384, -inf
        %406 = vst.msk [vmem:[#allocation2 + $0xa8] sm:$0xff] %vm384, -inf
        %407 = vst.msk [vmem:[#allocation2 + $0xb0] sm:$0xff] %vm384, -inf
        %408 = vst.msk [vmem:[#allocation2 + $0xb8] sm:$0xff] %vm384, -inf
        %409 = vst.msk [vmem:[#allocation2 + $0xc0] sm:$0xff] %vm384, -inf
        %410 = vst.msk [vmem:[#allocation2 + $0xc8] sm:$0xff] %vm384, -inf
        %411 = vst.msk [vmem:[#allocation2 + $0xd0] sm:$0xff] %vm384, -inf
        %412 = vst.msk [vmem:[#allocation2 + $0xd8] sm:$0xff] %vm384, -inf
        %413 = vst.msk [vmem:[#allocation2 + $0xe0] sm:$0xff] %vm384, -inf
        %414 = vst.msk [vmem:[#allocation2 + $0xe8] sm:$0xff] %vm384, -inf
        %415 = vst.msk [vmem:[#allocation2 + $0xf0] sm:$0xff] %vm384, -inf
        %416 = vst.msk [vmem:[#allocation2 + $0xf8] sm:$0xff] %vm384, -inf
        %417 = vst.msk [vmem:[#allocation3] sm:$0xff] %vm384, 0.0
        %418 = vst.msk [vmem:[#allocation3 + $0x8] sm:$0xff] %vm384, 0.0
        %419 = vst.msk [vmem:[#allocation3 + $0x10] sm:$0xff] %vm384, 0.0
        %420 = vst.msk [vmem:[#allocation3 + $0x18] sm:$0xff] %vm384, 0.0
        %421 = vst.msk [vmem:[#allocation3 + $0x20] sm:$0xff] %vm384, 0.0
        %422 = vst.msk [vmem:[#allocation3 + $0x28] sm:$0xff] %vm384, 0.0
        %423 = vst.msk [vmem:[#allocation3 + $0x30] sm:$0xff] %vm384, 0.0
        %424 = vst.msk [vmem:[#allocation3 + $0x38] sm:$0xff] %vm384, 0.0
        %425 = vst.msk [vmem:[#allocation3 + $0x40] sm:$0xff] %vm384, 0.0
        %426 = vst.msk [vmem:[#allocation3 + $0x48] sm:$0xff] %vm384, 0.0
        %427 = vst.msk [vmem:[#allocation3 + $0x50] sm:$0xff] %vm384, 0.0
        %428 = vst.msk [vmem:[#allocation3 + $0x58] sm:$0xff] %vm384, 0.0
        %429 = vst.msk [vmem:[#allocation3 + $0x60] sm:$0xff] %vm384, 0.0
        %430 = vst.msk [vmem:[#allocation3 + $0x68] sm:$0xff] %vm384, 0.0
        %431 = vst.msk [vmem:[#allocation3 + $0x70] sm:$0xff] %vm384, 0.0
        %432 = vst.msk [vmem:[#allocation3 + $0x78] sm:$0xff] %vm384, 0.0
        %433 = vst.msk [vmem:[#allocation3 + $0x80] sm:$0xff] %vm384, 0.0
        %434 = vst.msk [vmem:[#allocation3 + $0x88] sm:$0xff] %vm384, 0.0
        %435 = vst.msk [vmem:[#allocation3 + $0x90] sm:$0xff] %vm384, 0.0
        %436 = vst.msk [vmem:[#allocation3 + $0x98] sm:$0xff] %vm384, 0.0
        %437 = vst.msk [vmem:[#allocation3 + $0xa0] sm:$0xff] %vm384, 0.0
        %438 = vst.msk [vmem:[#allocation3 + $0xa8] sm:$0xff] %vm384, 0.0
        %439 = vst.msk [vmem:[#allocation3 + $0xb0] sm:$0xff] %vm384, 0.0
        %440 = vst.msk [vmem:[#allocation3 + $0xb8] sm:$0xff] %vm384, 0.0
        %441 = vst.msk [vmem:[#allocation3 + $0xc0] sm:$0xff] %vm384, 0.0
        %442 = vst.msk [vmem:[#allocation3 + $0xc8] sm:$0xff] %vm384, 0.0
        %443 = vst.msk [vmem:[#allocation3 + $0xd0] sm:$0xff] %vm384, 0.0
        %444 = vst.msk [vmem:[#allocation3 + $0xd8] sm:$0xff] %vm384, 0.0
        %445 = vst.msk [vmem:[#allocation3 + $0xe0] sm:$0xff] %vm384, 0.0
        %446 = vst.msk [vmem:[#allocation3 + $0xe8] sm:$0xff] %vm384, 0.0
        %447 = vst.msk [vmem:[#allocation3 + $0xf0] sm:$0xff] %vm384, 0.0
        %448 = vst.msk [vmem:[#allocation3 + $0xf8] sm:$0xff] %vm384, 0.0
        %449 = vst [vmem:[#allocation4] sm:$0xff] 0.0
        %450 = vst [vmem:[#allocation4 + $0x8] sm:$0xff] 0.0
        %451 = vst [vmem:[#allocation4 + $0x10] sm:$0xff] 0.0
        %452 = vst [vmem:[#allocation4 + $0x18] sm:$0xff] 0.0
        %453 = vst [vmem:[#allocation4 + $0x20] sm:$0xff] 0.0
        %454 = vst [vmem:[#allocation4 + $0x28] sm:$0xff] 0.0
        %455 = vst [vmem:[#allocation4 + $0x30] sm:$0xff] 0.0
        %456 = vst [vmem:[#allocation4 + $0x38] sm:$0xff] 0.0
        %457 = vst [vmem:[#allocation4 + $0x40] sm:$0xff] 0.0
        %458 = vst [vmem:[#allocation4 + $0x48] sm:$0xff] 0.0
        %459 = vst [vmem:[#allocation4 + $0x50] sm:$0xff] 0.0
        %460 = vst [vmem:[#allocation4 + $0x58] sm:$0xff] 0.0
        %461 = vst [vmem:[#allocation4 + $0x60] sm:$0xff] 0.0
        %462 = vst [vmem:[#allocation4 + $0x68] sm:$0xff] 0.0
        %463 = vst [vmem:[#allocation4 + $0x70] sm:$0xff] 0.0
        %464 = vst [vmem:[#allocation4 + $0x78] sm:$0xff] 0.0
        %465 = vst [vmem:[#allocation4 + $0x80] sm:$0xff] 0.0
        %466 = vst [vmem:[#allocation4 + $0x88] sm:$0xff] 0.0
        %467 = vst [vmem:[#allocation4 + $0x90] sm:$0xff] 0.0
        %468 = vst [vmem:[#allocation4 + $0x98] sm:$0xff] 0.0
        %469 = vst [vmem:[#allocation4 + $0xa0] sm:$0xff] 0.0
        %470 = vst [vmem:[#allocation4 + $0xa8] sm:$0xff] 0.0
        %471 = vst [vmem:[#allocation4 + $0xb0] sm:$0xff] 0.0
        %472 = vst [vmem:[#allocation4 + $0xb8] sm:$0xff] 0.0
        %473 = vst [vmem:[#allocation4 + $0xc0] sm:$0xff] 0.0
        %474 = vst [vmem:[#allocation4 + $0xc8] sm:$0xff] 0.0
        %475 = vst [vmem:[#allocation4 + $0xd0] sm:$0xff] 0.0
        %476 = vst [vmem:[#allocation4 + $0xd8] sm:$0xff] 0.0
        %477 = vst [vmem:[#allocation4 + $0xe0] sm:$0xff] 0.0
        %478 = vst [vmem:[#allocation4 + $0xe8] sm:$0xff] 0.0
        %479 = vst [vmem:[#allocation4 + $0xf0] sm:$0xff] 0.0
        %480 = vst [vmem:[#allocation4 + $0xf8] sm:$0xff] 0.0
      $region44: #{pam_forward.3} parent=39 // pred_fallthru
        _
      %v481 = vld [vmem:[%s338] sm:$0xff]
      %v482 = vld [vmem:[%s338 + $0x8] sm:$0xff]
      %v483 = vld [vmem:[%s338 + $0x10] sm:$0xff]
      %v484 = vld [vmem:[%s338 + $0x18] sm:$0xff]
      %v485 = vld [vmem:[%s338 + $0x20] sm:$0xff]
      %v486 = vld [vmem:[%s338 + $0x28] sm:$0xff]
      %v487 = vld [vmem:[%s338 + $0x30] sm:$0xff]
      %v488 = vld [vmem:[%s338 + $0x38] sm:$0xff]
      %v489 = vld [vmem:[%s338 + $0x40] sm:$0xff]
      %v490 = vld [vmem:[%s338 + $0x48] sm:$0xff]
      %v491 = vld [vmem:[%s338 + $0x50] sm:$0xff]
      %v492 = vld [vmem:[%s338 + $0x58] sm:$0xff]
      %v493 = vld [vmem:[%s338 + $0x60] sm:$0xff]
      %v494 = vld [vmem:[%s338 + $0x68] sm:$0xff]
      %v495 = vld [vmem:[%s338 + $0x70] sm:$0xff]
      %v496 = vld [vmem:[%s338 + $0x78] sm:$0xff]
      %v497 = vld [vmem:[%s338 + $0x80] sm:$0xff]
      %v498 = vld [vmem:[%s338 + $0x88] sm:$0xff]
      %v499 = vld [vmem:[%s338 + $0x90] sm:$0xff]
      %v500 = vld [vmem:[%s338 + $0x98] sm:$0xff]
      %v501 = vld [vmem:[%s338 + $0xa0] sm:$0xff]
      %v502 = vld [vmem:[%s338 + $0xa8] sm:$0xff]
      %v503 = vld [vmem:[%s338 + $0xb0] sm:$0xff]
      %v504 = vld [vmem:[%s338 + $0xb8] sm:$0xff]
      %v505 = vld [vmem:[%s338 + $0xc0] sm:$0xff]
      %v506 = vld [vmem:[%s338 + $0xc8] sm:$0xff]
      %v507 = vld [vmem:[%s338 + $0xd0] sm:$0xff]
      %v508 = vld [vmem:[%s338 + $0xd8] sm:$0xff]
      %v509 = vld [vmem:[%s338 + $0xe0] sm:$0xff]
      %v510 = vld [vmem:[%s338 + $0xe8] sm:$0xff]
      %v511 = vld [vmem:[%s338 + $0xf0] sm:$0xff]
      %v512 = vld [vmem:[%s338 + $0xf8] sm:$0xff]
      %v513 = vld [vmem:[%s348] sm:$0xff]
      %v514 = vld [vmem:[%s348 + $0x8] sm:$0xff]
      %v515 = vld [vmem:[%s348 + $0x10] sm:$0xff]
      %v516 = vld [vmem:[%s348 + $0x18] sm:$0xff]
      %v517 = vld [vmem:[%s348 + $0x20] sm:$0xff]
      %v518 = vld [vmem:[%s348 + $0x28] sm:$0xff]
      %v519 = vld [vmem:[%s348 + $0x30] sm:$0xff]
      %v520 = vld [vmem:[%s348 + $0x38] sm:$0xff]
      %v521 = vld [vmem:[%s348 + $0x40] sm:$0xff]
      %v522 = vld [vmem:[%s348 + $0x48] sm:$0xff]
      %v523 = vld [vmem:[%s348 + $0x50] sm:$0xff]
      %v524 = vld [vmem:[%s348 + $0x58] sm:$0xff]
      %v525 = vld [vmem:[%s348 + $0x60] sm:$0xff]
      %v526 = vld [vmem:[%s348 + $0x68] sm:$0xff]
      %v527 = vld [vmem:[%s348 + $0x70] sm:$0xff]
      %v528 = vld [vmem:[%s348 + $0x78] sm:$0xff]
      %v529 = vld [vmem:[%s348 + $0x80] sm:$0xff]
      %v530 = vld [vmem:[%s348 + $0x88] sm:$0xff]
      %v531 = vld [vmem:[%s348 + $0x90] sm:$0xff]
      %v532 = vld [vmem:[%s348 + $0x98] sm:$0xff]
      %v533 = vld [vmem:[%s348 + $0xa0] sm:$0xff]
      %v534 = vld [vmem:[%s348 + $0xa8] sm:$0xff]
      %v535 = vld [vmem:[%s348 + $0xb0] sm:$0xff]
      %v536 = vld [vmem:[%s348 + $0xb8] sm:$0xff]
      %v537 = vld [vmem:[%s348 + $0xc0] sm:$0xff]
      %v538 = vld [vmem:[%s348 + $0xc8] sm:$0xff]
      %v539 = vld [vmem:[%s348 + $0xd0] sm:$0xff]
      %v540 = vld [vmem:[%s348 + $0xd8] sm:$0xff]
      %v541 = vld [vmem:[%s348 + $0xe0] sm:$0xff]
      %v542 = vld [vmem:[%s348 + $0xe8] sm:$0xff]
      %v543 = vld [vmem:[%s348 + $0xf0] sm:$0xff]
      %v544 = vld [vmem:[%s348 + $0xf8] sm:$0xff]
      %v545 = vld [vmem:[%s358] sm:$0xff]
      %v546 = vld [vmem:[%s358 + $0x8] sm:$0xff]
      %v547 = vld [vmem:[%s358 + $0x10] sm:$0xff]
      %v548 = vld [vmem:[%s358 + $0x18] sm:$0xff]
      %v549 = vld [vmem:[%s358 + $0x20] sm:$0xff]
      %v550 = vld [vmem:[%s358 + $0x28] sm:$0xff]
      %v551 = vld [vmem:[%s358 + $0x30] sm:$0xff]
      %v552 = vld [vmem:[%s358 + $0x38] sm:$0xff]
      %v553 = vld [vmem:[%s358 + $0x40] sm:$0xff]
      %v554 = vld [vmem:[%s358 + $0x48] sm:$0xff]
      %v555 = vld [vmem:[%s358 + $0x50] sm:$0xff]
      %v556 = vld [vmem:[%s358 + $0x58] sm:$0xff]
      %v557 = vld [vmem:[%s358 + $0x60] sm:$0xff]
      %v558 = vld [vmem:[%s358 + $0x68] sm:$0xff]
      %v559 = vld [vmem:[%s358 + $0x70] sm:$0xff]
      %v560 = vld [vmem:[%s358 + $0x78] sm:$0xff]
      %v561 = vld [vmem:[%s358 + $0x80] sm:$0xff]
      %v562 = vld [vmem:[%s358 + $0x88] sm:$0xff]
      %v563 = vld [vmem:[%s358 + $0x90] sm:$0xff]
      %v564 = vld [vmem:[%s358 + $0x98] sm:$0xff]
      %v565 = vld [vmem:[%s358 + $0xa0] sm:$0xff]
      %v566 = vld [vmem:[%s358 + $0xa8] sm:$0xff]
      %v567 = vld [vmem:[%s358 + $0xb0] sm:$0xff]
      %v568 = vld [vmem:[%s358 + $0xb8] sm:$0xff]
      %v569 = vld [vmem:[%s358 + $0xc0] sm:$0xff]
      %v570 = vld [vmem:[%s358 + $0xc8] sm:$0xff]
      %v571 = vld [vmem:[%s358 + $0xd0] sm:$0xff]
      %v572 = vld [vmem:[%s358 + $0xd8] sm:$0xff]
      %v573 = vld [vmem:[%s358 + $0xe0] sm:$0xff]
      %v574 = vld [vmem:[%s358 + $0xe8] sm:$0xff]
      %v575 = vld [vmem:[%s358 + $0xf0] sm:$0xff]
      %v576 = vld [vmem:[%s358 + $0xf8] sm:$0xff]
      %577 = vmatpush.xpose.msra.mxu0 %v528
      %578 = vmatpush.xpose.msra.mxu0 %v527
      %579 = vmatpush.xpose.msra.mxu0 %v526
      %580 = vmatpush.xpose.msra.mxu0 %v525
      %581 = vmatpush.xpose.msra.mxu0 %v524
      %582 = vmatpush.xpose.msra.mxu0 %v523
      %583 = vmatpush.xpose.msra.mxu0 %v522
      %584 = vmatpush.xpose.msra.mxu0 %v521
      %585 = vmatpush.xpose.msra.mxu0 %v520
      %586 = vmatpush.xpose.msra.mxu0 %v519
      %587 = vmatpush.xpose.msra.mxu0 %v518
      %588 = vmatpush.xpose.msra.mxu0 %v517
      %589 = vmatpush.xpose.msra.mxu0 %v516
      %590 = vmatpush.xpose.msra.mxu0 %v515
      %591 = vmatpush.xpose.msra.mxu0 %v514
      %592 = vmatpush.xpose.msra.mxu0 %v513
      %593 = vmatmul.f32.gmra.mxu0 %v481
      %v594 = vpop.f32.mrf.mxu0
      %v595 = vadd.f32 0.0, %v594
      %596 = vmatmul.f32.gmra.mxu0 %v482
      %v597 = vpop.f32.mrf.mxu0
      %v598 = vadd.f32 0.0, %v597
      %599 = vmatmul.f32.gmra.mxu0 %v483
      %v600 = vpop.f32.mrf.mxu0
      %v601 = vadd.f32 0.0, %v600
      %602 = vmatmul.f32.gmra.mxu0 %v484
      %v603 = vpop.f32.mrf.mxu0
      %v604 = vadd.f32 0.0, %v603
      %605 = vmatmul.f32.gmra.mxu0 %v485
      %v606 = vpop.f32.mrf.mxu0
      %v607 = vadd.f32 0.0, %v606
      %608 = vmatmul.f32.gmra.mxu0 %v486
      %v609 = vpop.f32.mrf.mxu0
      %v610 = vadd.f32 0.0, %v609
      %611 = vmatmul.f32.gmra.mxu0 %v487
      %v612 = vpop.f32.mrf.mxu0
      %v613 = vadd.f32 0.0, %v612
      %614 = vmatmul.f32.gmra.mxu0 %v488
      %v615 = vpop.f32.mrf.mxu0
      %v616 = vadd.f32 0.0, %v615
      %617 = vmatmul.f32.gmra.mxu0 %v489
      %v618 = vpop.f32.mrf.mxu0
      %v619 = vadd.f32 0.0, %v618
      %620 = vmatmul.f32.gmra.mxu0 %v490
      %v621 = vpop.f32.mrf.mxu0
      %v622 = vadd.f32 0.0, %v621
      %623 = vmatmul.f32.gmra.mxu0 %v491
      %v624 = vpop.f32.mrf.mxu0
      %v625 = vadd.f32 0.0, %v624
      %626 = vmatmul.f32.gmra.mxu0 %v492
      %v627 = vpop.f32.mrf.mxu0
      %v628 = vadd.f32 0.0, %v627
      %629 = vmatmul.f32.gmra.mxu0 %v493
      %v630 = vpop.f32.mrf.mxu0
      %v631 = vadd.f32 0.0, %v630
      %632 = vmatmul.f32.gmra.mxu0 %v494
      %v633 = vpop.f32.mrf.mxu0
      %v634 = vadd.f32 0.0, %v633
      %635 = vmatmul.f32.gmra.mxu0 %v495
      %v636 = vpop.f32.mrf.mxu0
      %v637 = vadd.f32 0.0, %v636
      %638 = vmatmul.f32.gmra.mxu0 %v496
      %v639 = vpop.f32.mrf.mxu0
      %v640 = vadd.f32 0.0, %v639
      %641 = vmatmul.f32.gmra.mxu0 %v497
      %v642 = vpop.f32.mrf.mxu0
      %v643 = vadd.f32 0.0, %v642
      %644 = vmatmul.f32.gmra.mxu0 %v498
      %v645 = vpop.f32.mrf.mxu0
      %v646 = vadd.f32 0.0, %v645
      %647 = vmatmul.f32.gmra.mxu0 %v499
      %v648 = vpop.f32.mrf.mxu0
      %v649 = vadd.f32 0.0, %v648
      %650 = vmatmul.f32.gmra.mxu0 %v500
      %v651 = vpop.f32.mrf.mxu0
      %v652 = vadd.f32 0.0, %v651
      %653 = vmatmul.f32.gmra.mxu0 %v501
      %v654 = vpop.f32.mrf.mxu0
      %v655 = vadd.f32 0.0, %v654
      %656 = vmatmul.f32.gmra.mxu0 %v502
      %v657 = vpop.f32.mrf.mxu0
      %v658 = vadd.f32 0.0, %v657
      %659 = vmatmul.f32.gmra.mxu0 %v503
      %v660 = vpop.f32.mrf.mxu0
      %v661 = vadd.f32 0.0, %v660
      %662 = vmatmul.f32.gmra.mxu0 %v504
      %v663 = vpop.f32.mrf.mxu0
      %v664 = vadd.f32 0.0, %v663
      %665 = vmatmul.f32.gmra.mxu0 %v505
      %v666 = vpop.f32.mrf.mxu0
      %v667 = vadd.f32 0.0, %v666
      %668 = vmatmul.f32.gmra.mxu0 %v506
      %v669 = vpop.f32.mrf.mxu0
      %v670 = vadd.f32 0.0, %v669
      %671 = vmatmul.f32.gmra.mxu0 %v507
      %v672 = vpop.f32.mrf.mxu0
      %v673 = vadd.f32 0.0, %v672
      %674 = vmatmul.f32.gmra.mxu0 %v508
      %v675 = vpop.f32.mrf.mxu0
      %v676 = vadd.f32 0.0, %v675
      %677 = vmatmul.f32.gmra.mxu0 %v509
      %v678 = vpop.f32.mrf.mxu0
      %v679 = vadd.f32 0.0, %v678
      %680 = vmatmul.f32.gmra.mxu0 %v510
      %v681 = vpop.f32.mrf.mxu0
      %v682 = vadd.f32 0.0, %v681
      %683 = vmatmul.f32.gmra.mxu0 %v511
      %v684 = vpop.f32.mrf.mxu0
      %v685 = vadd.f32 0.0, %v684
      %686 = vmatmul.f32.gmra.mxu0 %v512
      %v687 = vpop.f32.mrf.mxu0
      %v688 = vadd.f32 0.0, %v687
      %689 = vdwg.mxu0
      %690 = vmatpush.xpose.msra.mxu0 %v544
      %691 = vmatpush.xpose.msra.mxu0 %v543
      %692 = vmatpush.xpose.msra.mxu0 %v542
      %693 = vmatpush.xpose.msra.mxu0 %v541
      %694 = vmatpush.xpose.msra.mxu0 %v540
      %695 = vmatpush.xpose.msra.mxu0 %v539
      %696 = vmatpush.xpose.msra.mxu0 %v538
      %697 = vmatpush.xpose.msra.mxu0 %v537
      %698 = vmatpush.xpose.msra.mxu0 %v536
      %699 = vmatpush.xpose.msra.mxu0 %v535
      %700 = vmatpush.xpose.msra.mxu0 %v534
      %701 = vmatpush.xpose.msra.mxu0 %v533
      %702 = vmatpush.xpose.msra.mxu0 %v532
      %703 = vmatpush.xpose.msra.mxu0 %v531
      %704 = vmatpush.xpose.msra.mxu0 %v530
      %705 = vmatpush.xpose.msra.mxu0 %v529
      %706 = vmatmul.f32.gmra.mxu0 %v481
      %v707 = vpop.f32.mrf.mxu0
      %v708 = vadd.f32 0.0, %v707
      %709 = vmatmul.f32.gmra.mxu0 %v482
      %v710 = vpop.f32.mrf.mxu0
      %v711 = vadd.f32 0.0, %v710
      %712 = vmatmul.f32.gmra.mxu0 %v483
      %v713 = vpop.f32.mrf.mxu0
      %v714 = vadd.f32 0.0, %v713
      %715 = vmatmul.f32.gmra.mxu0 %v484
      %v716 = vpop.f32.mrf.mxu0
      %v717 = vadd.f32 0.0, %v716
      %718 = vmatmul.f32.gmra.mxu0 %v485
      %v719 = vpop.f32.mrf.mxu0
      %v720 = vadd.f32 0.0, %v719
      %721 = vmatmul.f32.gmra.mxu0 %v486
      %v722 = vpop.f32.mrf.mxu0
      %v723 = vadd.f32 0.0, %v722
      %724 = vmatmul.f32.gmra.mxu0 %v487
      %v725 = vpop.f32.mrf.mxu0
      %v726 = vadd.f32 0.0, %v725
      %727 = vmatmul.f32.gmra.mxu0 %v488
      %v728 = vpop.f32.mrf.mxu0
      %v729 = vadd.f32 0.0, %v728
      %730 = vmatmul.f32.gmra.mxu0 %v489
      %v731 = vpop.f32.mrf.mxu0
      %v732 = vadd.f32 0.0, %v731
      %733 = vmatmul.f32.gmra.mxu0 %v490
      %v734 = vpop.f32.mrf.mxu0
      %v735 = vadd.f32 0.0, %v734
      %736 = vmatmul.f32.gmra.mxu0 %v491
      %v737 = vpop.f32.mrf.mxu0
      %v738 = vadd.f32 0.0, %v737
      %739 = vmatmul.f32.gmra.mxu0 %v492
      %v740 = vpop.f32.mrf.mxu0
      %v741 = vadd.f32 0.0, %v740
      %742 = vmatmul.f32.gmra.mxu0 %v493
      %v743 = vpop.f32.mrf.mxu0
      %v744 = vadd.f32 0.0, %v743
      %745 = vmatmul.f32.gmra.mxu0 %v494
      %v746 = vpop.f32.mrf.mxu0
      %v747 = vadd.f32 0.0, %v746
      %748 = vmatmul.f32.gmra.mxu0 %v495
      %v749 = vpop.f32.mrf.mxu0
      %v750 = vadd.f32 0.0, %v749
      %751 = vmatmul.f32.gmra.mxu0 %v496
      %v752 = vpop.f32.mrf.mxu0
      %v753 = vadd.f32 0.0, %v752
      %754 = vmatmul.f32.gmra.mxu0 %v497
      %v755 = vpop.f32.mrf.mxu0
      %v756 = vadd.f32 0.0, %v755
      %757 = vmatmul.f32.gmra.mxu0 %v498
      %v758 = vpop.f32.mrf.mxu0
      %v759 = vadd.f32 0.0, %v758
      %760 = vmatmul.f32.gmra.mxu0 %v499
      %v761 = vpop.f32.mrf.mxu0
      %v762 = vadd.f32 0.0, %v761
      %763 = vmatmul.f32.gmra.mxu0 %v500
      %v764 = vpop.f32.mrf.mxu0
      %v765 = vadd.f32 0.0, %v764
      %766 = vmatmul.f32.gmra.mxu0 %v501
      %v767 = vpop.f32.mrf.mxu0
      %v768 = vadd.f32 0.0, %v767
      %769 = vmatmul.f32.gmra.mxu0 %v502
      %v770 = vpop.f32.mrf.mxu0
      %v771 = vadd.f32 0.0, %v770
      %772 = vmatmul.f32.gmra.mxu0 %v503
      %v773 = vpop.f32.mrf.mxu0
      %v774 = vadd.f32 0.0, %v773
      %775 = vmatmul.f32.gmra.mxu0 %v504
      %v776 = vpop.f32.mrf.mxu0
      %v777 = vadd.f32 0.0, %v776
      %778 = vmatmul.f32.gmra.mxu0 %v505
      %v779 = vpop.f32.mrf.mxu0
      %v780 = vadd.f32 0.0, %v779
      %781 = vmatmul.f32.gmra.mxu0 %v506
      %v782 = vpop.f32.mrf.mxu0
      %v783 = vadd.f32 0.0, %v782
      %784 = vmatmul.f32.gmra.mxu0 %v507
      %v785 = vpop.f32.mrf.mxu0
      %v786 = vadd.f32 0.0, %v785
      %787 = vmatmul.f32.gmra.mxu0 %v508
      %v788 = vpop.f32.mrf.mxu0
      %v789 = vadd.f32 0.0, %v788
      %790 = vmatmul.f32.gmra.mxu0 %v509
      %v791 = vpop.f32.mrf.mxu0
      %v792 = vadd.f32 0.0, %v791
      %793 = vmatmul.f32.gmra.mxu0 %v510
      %v794 = vpop.f32.mrf.mxu0
      %v795 = vadd.f32 0.0, %v794
      %796 = vmatmul.f32.gmra.mxu0 %v511
      %v797 = vpop.f32.mrf.mxu0
      %v798 = vadd.f32 0.0, %v797
      %799 = vmatmul.f32.gmra.mxu0 %v512
      %v800 = vpop.f32.mrf.mxu0
      %v801 = vadd.f32 0.0, %v800
      %802 = vdwg.mxu0
      %v803 = vld [vmem:[#allocation2] sm:$0xff]
      %v804 = vld [vmem:[#allocation2 + $0x8] sm:$0xff]
      %v805 = vld [vmem:[#allocation2 + $0x10] sm:$0xff]
      %v806 = vld [vmem:[#allocation2 + $0x18] sm:$0xff]
      %v807 = vld [vmem:[#allocation2 + $0x20] sm:$0xff]
      %v808 = vld [vmem:[#allocation2 + $0x28] sm:$0xff]
      %v809 = vld [vmem:[#allocation2 + $0x30] sm:$0xff]
      %v810 = vld [vmem:[#allocation2 + $0x38] sm:$0xff]
      %v811 = vld [vmem:[#allocation2 + $0x40] sm:$0xff]
      %v812 = vld [vmem:[#allocation2 + $0x48] sm:$0xff]
      %v813 = vld [vmem:[#allocation2 + $0x50] sm:$0xff]
      %v814 = vld [vmem:[#allocation2 + $0x58] sm:$0xff]
      %v815 = vld [vmem:[#allocation2 + $0x60] sm:$0xff]
      %v816 = vld [vmem:[#allocation2 + $0x68] sm:$0xff]
      %v817 = vld [vmem:[#allocation2 + $0x70] sm:$0xff]
      %v818 = vld [vmem:[#allocation2 + $0x78] sm:$0xff]
      %v819 = vld [vmem:[#allocation2 + $0x80] sm:$0xff]
      %v820 = vld [vmem:[#allocation2 + $0x88] sm:$0xff]
      %v821 = vld [vmem:[#allocation2 + $0x90] sm:$0xff]
      %v822 = vld [vmem:[#allocation2 + $0x98] sm:$0xff]
      %v823 = vld [vmem:[#allocation2 + $0xa0] sm:$0xff]
      %v824 = vld [vmem:[#allocation2 + $0xa8] sm:$0xff]
      %v825 = vld [vmem:[#allocation2 + $0xb0] sm:$0xff]
      %v826 = vld [vmem:[#allocation2 + $0xb8] sm:$0xff]
      %v827 = vld [vmem:[#allocation2 + $0xc0] sm:$0xff]
      %v828 = vld [vmem:[#allocation2 + $0xc8] sm:$0xff]
      %v829 = vld [vmem:[#allocation2 + $0xd0] sm:$0xff]
      %v830 = vld [vmem:[#allocation2 + $0xd8] sm:$0xff]
      %v831 = vld [vmem:[#allocation2 + $0xe0] sm:$0xff]
      %v832 = vld [vmem:[#allocation2 + $0xe8] sm:$0xff]
      %v833 = vld [vmem:[#allocation2 + $0xf0] sm:$0xff]
      %v834 = vld [vmem:[#allocation2 + $0xf8] sm:$0xff]
      %v835 = vmax.f32 %v595, %v708
      %836 = vmax.xlane.f32.xlu0 %v835
      %v837 = vpop.xlane.xlu0 %836
      %v838 = vmax.f32 %v598, %v711
      %839 = vmax.xlane.f32.xlu0 %v838
      %v840 = vpop.xlane.xlu0 %839
      %v841 = vmax.f32 %v601, %v714
      %842 = vmax.xlane.f32.xlu0 %v841
      %v843 = vpop.xlane.xlu0 %842
      %v844 = vmax.f32 %v604, %v717
      %845 = vmax.xlane.f32.xlu0 %v844
      %v846 = vpop.xlane.xlu0 %845
      %v847 = vmax.f32 %v607, %v720
      %848 = vmax.xlane.f32.xlu0 %v847
      %v849 = vpop.xlane.xlu0 %848
      %v850 = vmax.f32 %v610, %v723
      %851 = vmax.xlane.f32.xlu0 %v850
      %v852 = vpop.xlane.xlu0 %851
      %v853 = vmax.f32 %v613, %v726
      %854 = vmax.xlane.f32.xlu0 %v853
      %v855 = vpop.xlane.xlu0 %854
      %v856 = vmax.f32 %v616, %v729
      %857 = vmax.xlane.f32.xlu0 %v856
      %v858 = vpop.xlane.xlu0 %857
      %v859 = vmax.f32 %v619, %v732
      %860 = vmax.xlane.f32.xlu0 %v859
      %v861 = vpop.xlane.xlu0 %860
      %v862 = vmax.f32 %v622, %v735
      %863 = vmax.xlane.f32.xlu0 %v862
      %v864 = vpop.xlane.xlu0 %863
      %v865 = vmax.f32 %v625, %v738
      %866 = vmax.xlane.f32.xlu0 %v865
      %v867 = vpop.xlane.xlu0 %866
      %v868 = vmax.f32 %v628, %v741
      %869 = vmax.xlane.f32.xlu0 %v868
      %v870 = vpop.xlane.xlu0 %869
      %v871 = vmax.f32 %v631, %v744
      %872 = vmax.xlane.f32.xlu0 %v871
      %v873 = vpop.xlane.xlu0 %872
      %v874 = vmax.f32 %v634, %v747
      %875 = vmax.xlane.f32.xlu0 %v874
      %v876 = vpop.xlane.xlu0 %875
      %v877 = vmax.f32 %v637, %v750
      %878 = vmax.xlane.f32.xlu0 %v877
      %v879 = vpop.xlane.xlu0 %878
      %v880 = vmax.f32 %v640, %v753
      %881 = vmax.xlane.f32.xlu0 %v880
      %v882 = vpop.xlane.xlu0 %881
      %v883 = vmax.f32 %v643, %v756
      %884 = vmax.xlane.f32.xlu0 %v883
      %v885 = vpop.xlane.xlu0 %884
      %v886 = vmax.f32 %v646, %v759
      %887 = vmax.xlane.f32.xlu0 %v886
      %v888 = vpop.xlane.xlu0 %887
      %v889 = vmax.f32 %v649, %v762
      %890 = vmax.xlane.f32.xlu0 %v889
      %v891 = vpop.xlane.xlu0 %890
      %v892 = vmax.f32 %v652, %v765
      %893 = vmax.xlane.f32.xlu0 %v892
      %v894 = vpop.xlane.xlu0 %893
      %v895 = vmax.f32 %v655, %v768
      %896 = vmax.xlane.f32.xlu0 %v895
      %v897 = vpop.xlane.xlu0 %896
      %v898 = vmax.f32 %v658, %v771
      %899 = vmax.xlane.f32.xlu0 %v898
      %v900 = vpop.xlane.xlu0 %899
      %v901 = vmax.f32 %v661, %v774
      %902 = vmax.xlane.f32.xlu0 %v901
      %v903 = vpop.xlane.xlu0 %902
      %v904 = vmax.f32 %v664, %v777
      %905 = vmax.xlane.f32.xlu0 %v904
      %v906 = vpop.xlane.xlu0 %905
      %v907 = vmax.f32 %v667, %v780
      %908 = vmax.xlane.f32.xlu0 %v907
      %v909 = vpop.xlane.xlu0 %908
      %v910 = vmax.f32 %v670, %v783
      %911 = vmax.xlane.f32.xlu0 %v910
      %v912 = vpop.xlane.xlu0 %911
      %v913 = vmax.f32 %v673, %v786
      %914 = vmax.xlane.f32.xlu0 %v913
      %v915 = vpop.xlane.xlu0 %914
      %v916 = vmax.f32 %v676, %v789
      %917 = vmax.xlane.f32.xlu0 %v916
      %v918 = vpop.xlane.xlu0 %917
      %v919 = vmax.f32 %v679, %v792
      %920 = vmax.xlane.f32.xlu0 %v919
      %v921 = vpop.xlane.xlu0 %920
      %v922 = vmax.f32 %v682, %v795
      %923 = vmax.xlane.f32.xlu0 %v922
      %v924 = vpop.xlane.xlu0 %923
      %v925 = vmax.f32 %v685, %v798
      %926 = vmax.xlane.f32.xlu0 %v925
      %v927 = vpop.xlane.xlu0 %926
      %v928 = vmax.f32 %v688, %v801
      %929 = vmax.xlane.f32.xlu0 %v928
      %v930 = vpop.xlane.xlu0 %929
      %v931 = vmax.f32 %v803, %v837
      %v932 = vmax.f32 %v804, %v840
      %v933 = vmax.f32 %v805, %v843
      %v934 = vmax.f32 %v806, %v846
      %v935 = vmax.f32 %v807, %v849
      %v936 = vmax.f32 %v808, %v852
      %v937 = vmax.f32 %v809, %v855
      %v938 = vmax.f32 %v810, %v858
      %v939 = vmax.f32 %v811, %v861
      %v940 = vmax.f32 %v812, %v864
      %v941 = vmax.f32 %v813, %v867
      %v942 = vmax.f32 %v814, %v870
      %v943 = vmax.f32 %v815, %v873
      %v944 = vmax.f32 %v816, %v876
      %v945 = vmax.f32 %v817, %v879
      %v946 = vmax.f32 %v818, %v882
      %v947 = vmax.f32 %v819, %v885
      %v948 = vmax.f32 %v820, %v888
      %v949 = vmax.f32 %v821, %v891
      %v950 = vmax.f32 %v822, %v894
      %v951 = vmax.f32 %v823, %v897
      %v952 = vmax.f32 %v824, %v900
      %v953 = vmax.f32 %v825, %v903
      %v954 = vmax.f32 %v826, %v906
      %v955 = vmax.f32 %v827, %v909
      %v956 = vmax.f32 %v828, %v912
      %v957 = vmax.f32 %v829, %v915
      %v958 = vmax.f32 %v830, %v918
      %v959 = vmax.f32 %v831, %v921
      %v960 = vmax.f32 %v832, %v924
      %v961 = vmax.f32 %v833, %v927
      %v962 = vmax.f32 %v834, %v930
      %v963 = vsub.f32 %v803, %v931
      %v964 = vsub.f32 %v804, %v932
      %v965 = vsub.f32 %v805, %v933
      %v966 = vsub.f32 %v806, %v934
      %v967 = vsub.f32 %v807, %v935
      %v968 = vsub.f32 %v808, %v936
      %v969 = vsub.f32 %v809, %v937
      %v970 = vsub.f32 %v810, %v938
      %v971 = vsub.f32 %v811, %v939
      %v972 = vsub.f32 %v812, %v940
      %v973 = vsub.f32 %v813, %v941
      %v974 = vsub.f32 %v814, %v942
      %v975 = vsub.f32 %v815, %v943
      %v976 = vsub.f32 %v816, %v944
      %v977 = vsub.f32 %v817, %v945
      %v978 = vsub.f32 %v818, %v946
      %v979 = vsub.f32 %v819, %v947
      %v980 = vsub.f32 %v820, %v948
      %v981 = vsub.f32 %v821, %v949
      %v982 = vsub.f32 %v822, %v950
      %v983 = vsub.f32 %v823, %v951
      %v984 = vsub.f32 %v824, %v952
      %v985 = vsub.f32 %v825, %v953
      %v986 = vsub.f32 %v826, %v954
      %v987 = vsub.f32 %v827, %v955
      %v988 = vsub.f32 %v828, %v956
      %v989 = vsub.f32 %v829, %v957
      %v990 = vsub.f32 %v830, %v958
      %v991 = vsub.f32 %v831, %v959
      %v992 = vsub.f32 %v832, %v960
      %v993 = vsub.f32 %v833, %v961
      %v994 = vsub.f32 %v834, %v962
      %v995 = vmul.f32 %v963, 1.442695
      %v996 = vpow.pop %v995
      %v997 = vmul.f32 %v964, 1.442695
      %v998 = vpow.pop %v997
      %v999 = vmul.f32 %v965, 1.442695
      %v1000 = vpow.pop %v999
      %v1001 = vmul.f32 %v966, 1.442695
      %v1002 = vpow.pop %v1001
      %v1003 = vmul.f32 %v967, 1.442695
      %v1004 = vpow.pop %v1003
      %v1005 = vmul.f32 %v968, 1.442695
      %v1006 = vpow.pop %v1005
      %v1007 = vmul.f32 %v969, 1.442695
      %v1008 = vpow.pop %v1007
      %v1009 = vmul.f32 %v970, 1.442695
      %v1010 = vpow.pop %v1009
      %v1011 = vmul.f32 %v971, 1.442695
      %v1012 = vpow.pop %v1011
      %v1013 = vmul.f32 %v972, 1.442695
      %v1014 = vpow.pop %v1013
      %v1015 = vmul.f32 %v973, 1.442695
      %v1016 = vpow.pop %v1015
      %v1017 = vmul.f32 %v974, 1.442695
      %v1018 = vpow.pop %v1017
      %v1019 = vmul.f32 %v975, 1.442695
      %v1020 = vpow.pop %v1019
      %v1021 = vmul.f32 %v976, 1.442695
      %v1022 = vpow.pop %v1021
      %v1023 = vmul.f32 %v977, 1.442695
      %v1024 = vpow.pop %v1023
      %v1025 = vmul.f32 %v978, 1.442695
      %v1026 = vpow.pop %v1025
      %v1027 = vmul.f32 %v979, 1.442695
      %v1028 = vpow.pop %v1027
      %v1029 = vmul.f32 %v980, 1.442695
      %v1030 = vpow.pop %v1029
      %v1031 = vmul.f32 %v981, 1.442695
      %v1032 = vpow.pop %v1031
      %v1033 = vmul.f32 %v982, 1.442695
      %v1034 = vpow.pop %v1033
      %v1035 = vmul.f32 %v983, 1.442695
      %v1036 = vpow.pop %v1035
      %v1037 = vmul.f32 %v984, 1.442695
      %v1038 = vpow.pop %v1037
      %v1039 = vmul.f32 %v985, 1.442695
      %v1040 = vpow.pop %v1039
      %v1041 = vmul.f32 %v986, 1.442695
      %v1042 = vpow.pop %v1041
      %v1043 = vmul.f32 %v987, 1.442695
      %v1044 = vpow.pop %v1043
      %v1045 = vmul.f32 %v988, 1.442695
      %v1046 = vpow.pop %v1045
      %v1047 = vmul.f32 %v989, 1.442695
      %v1048 = vpow.pop %v1047
      %v1049 = vmul.f32 %v990, 1.442695
      %v1050 = vpow.pop %v1049
      %v1051 = vmul.f32 %v991, 1.442695
      %v1052 = vpow.pop %v1051
      %v1053 = vmul.f32 %v992, 1.442695
      %v1054 = vpow.pop %v1053
      %v1055 = vmul.f32 %v993, 1.442695
      %v1056 = vpow.pop %v1055
      %v1057 = vmul.f32 %v994, 1.442695
      %v1058 = vpow.pop %v1057
      %1060 = vset.pattern.permute.xlu0 0
      %1061 = vperm.xlu0 %1060, %v931
      %v1062 = vpop.permute.xlu0 %1061
      %1065 = vset.pattern.permute.xlu0 0
      %1066 = vperm.xlu0 %1065, %v932
      %v1067 = vpop.permute.xlu0 %1066
      %1070 = vset.pattern.permute.xlu0 0
      %1071 = vperm.xlu0 %1070, %v933
      %v1072 = vpop.permute.xlu0 %1071
      %1075 = vset.pattern.permute.xlu0 0
      %1076 = vperm.xlu0 %1075, %v934
      %v1077 = vpop.permute.xlu0 %1076
      %1080 = vset.pattern.permute.xlu0 0
      %1081 = vperm.xlu0 %1080, %v935
      %v1082 = vpop.permute.xlu0 %1081
      %1085 = vset.pattern.permute.xlu0 0
      %1086 = vperm.xlu0 %1085, %v936
      %v1087 = vpop.permute.xlu0 %1086
      %1090 = vset.pattern.permute.xlu0 0
      %1091 = vperm.xlu0 %1090, %v937
      %v1092 = vpop.permute.xlu0 %1091
      %1095 = vset.pattern.permute.xlu0 0
      %1096 = vperm.xlu0 %1095, %v938
      %v1097 = vpop.permute.xlu0 %1096
      %1100 = vset.pattern.permute.xlu0 0
      %1101 = vperm.xlu0 %1100, %v939
      %v1102 = vpop.permute.xlu0 %1101
      %1105 = vset.pattern.permute.xlu0 0
      %1106 = vperm.xlu0 %1105, %v940
      %v1107 = vpop.permute.xlu0 %1106
      %1110 = vset.pattern.permute.xlu0 0
      %1111 = vperm.xlu0 %1110, %v941
      %v1112 = vpop.permute.xlu0 %1111
      %1115 = vset.pattern.permute.xlu0 0
      %1116 = vperm.xlu0 %1115, %v942
      %v1117 = vpop.permute.xlu0 %1116
      %1120 = vset.pattern.permute.xlu0 0
      %1121 = vperm.xlu0 %1120, %v943
      %v1122 = vpop.permute.xlu0 %1121
      %1125 = vset.pattern.permute.xlu0 0
      %1126 = vperm.xlu0 %1125, %v944
      %v1127 = vpop.permute.xlu0 %1126
      %1130 = vset.pattern.permute.xlu0 0
      %1131 = vperm.xlu0 %1130, %v945
      %v1132 = vpop.permute.xlu0 %1131
      %1135 = vset.pattern.permute.xlu0 0
      %1136 = vperm.xlu0 %1135, %v946
      %v1137 = vpop.permute.xlu0 %1136
      %1140 = vset.pattern.permute.xlu0 0
      %1141 = vperm.xlu0 %1140, %v947
      %v1142 = vpop.permute.xlu0 %1141
      %1145 = vset.pattern.permute.xlu0 0
      %1146 = vperm.xlu0 %1145, %v948
      %v1147 = vpop.permute.xlu0 %1146
      %1150 = vset.pattern.permute.xlu0 0
      %1151 = vperm.xlu0 %1150, %v949
      %v1152 = vpop.permute.xlu0 %1151
      %1155 = vset.pattern.permute.xlu0 0
      %1156 = vperm.xlu0 %1155, %v950
      %v1157 = vpop.permute.xlu0 %1156
      %1160 = vset.pattern.permute.xlu0 0
      %1161 = vperm.xlu0 %1160, %v951
      %v1162 = vpop.permute.xlu0 %1161
      %1165 = vset.pattern.permute.xlu0 0
      %1166 = vperm.xlu0 %1165, %v952
      %v1167 = vpop.permute.xlu0 %1166
      %1170 = vset.pattern.permute.xlu0 0
      %1171 = vperm.xlu0 %1170, %v953
      %v1172 = vpop.permute.xlu0 %1171
      %1175 = vset.pattern.permute.xlu0 0
      %1176 = vperm.xlu0 %1175, %v954
      %v1177 = vpop.permute.xlu0 %1176
      %1180 = vset.pattern.permute.xlu0 0
      %1181 = vperm.xlu0 %1180, %v955
      %v1182 = vpop.permute.xlu0 %1181
      %1185 = vset.pattern.permute.xlu0 0
      %1186 = vperm.xlu0 %1185, %v956
      %v1187 = vpop.permute.xlu0 %1186
      %1190 = vset.pattern.permute.xlu0 0
      %1191 = vperm.xlu0 %1190, %v957
      %v1192 = vpop.permute.xlu0 %1191
      %1195 = vset.pattern.permute.xlu0 0
      %1196 = vperm.xlu0 %1195, %v958
      %v1197 = vpop.permute.xlu0 %1196
      %1200 = vset.pattern.permute.xlu0 0
      %1201 = vperm.xlu0 %1200, %v959
      %v1202 = vpop.permute.xlu0 %1201
      %1205 = vset.pattern.permute.xlu0 0
      %1206 = vperm.xlu0 %1205, %v960
      %v1207 = vpop.permute.xlu0 %1206
      %1210 = vset.pattern.permute.xlu0 0
      %1211 = vperm.xlu0 %1210, %v961
      %v1212 = vpop.permute.xlu0 %1211
      %1215 = vset.pattern.permute.xlu0 0
      %1216 = vperm.xlu0 %1215, %v962
      %v1217 = vpop.permute.xlu0 %1216
      %v1219 = vsub.f32 %v595, %v1062
      %v1220 = vsub.f32 %v708, %v1062
      %v1221 = vsub.f32 %v598, %v1067
      %v1222 = vsub.f32 %v711, %v1067
      %v1223 = vsub.f32 %v601, %v1072
      %v1224 = vsub.f32 %v714, %v1072
      %v1225 = vsub.f32 %v604, %v1077
      %v1226 = vsub.f32 %v717, %v1077
      %v1227 = vsub.f32 %v607, %v1082
      %v1228 = vsub.f32 %v720, %v1082
      %v1229 = vsub.f32 %v610, %v1087
      %v1230 = vsub.f32 %v723, %v1087
      %v1231 = vsub.f32 %v613, %v1092
      %v1232 = vsub.f32 %v726, %v1092
      %v1233 = vsub.f32 %v616, %v1097
      %v1234 = vsub.f32 %v729, %v1097
      %v1235 = vsub.f32 %v619, %v1102
      %v1236 = vsub.f32 %v732, %v1102
      %v1237 = vsub.f32 %v622, %v1107
      %v1238 = vsub.f32 %v735, %v1107
      %v1239 = vsub.f32 %v625, %v1112
      %v1240 = vsub.f32 %v738, %v1112
      %v1241 = vsub.f32 %v628, %v1117
      %v1242 = vsub.f32 %v741, %v1117
      %v1243 = vsub.f32 %v631, %v1122
      %v1244 = vsub.f32 %v744, %v1122
      %v1245 = vsub.f32 %v634, %v1127
      %v1246 = vsub.f32 %v747, %v1127
      %v1247 = vsub.f32 %v637, %v1132
      %v1248 = vsub.f32 %v750, %v1132
      %v1249 = vsub.f32 %v640, %v1137
      %v1250 = vsub.f32 %v753, %v1137
      %v1251 = vsub.f32 %v643, %v1142
      %v1252 = vsub.f32 %v756, %v1142
      %v1253 = vsub.f32 %v646, %v1147
      %v1254 = vsub.f32 %v759, %v1147
      %v1255 = vsub.f32 %v649, %v1152
      %v1256 = vsub.f32 %v762, %v1152
      %v1257 = vsub.f32 %v652, %v1157
      %v1258 = vsub.f32 %v765, %v1157
      %v1259 = vsub.f32 %v655, %v1162
      %v1260 = vsub.f32 %v768, %v1162
      %v1261 = vsub.f32 %v658, %v1167
      %v1262 = vsub.f32 %v771, %v1167
      %v1263 = vsub.f32 %v661, %v1172
      %v1264 = vsub.f32 %v774, %v1172
      %v1265 = vsub.f32 %v664, %v1177
      %v1266 = vsub.f32 %v777, %v1177
      %v1267 = vsub.f32 %v667, %v1182
      %v1268 = vsub.f32 %v780, %v1182
      %v1269 = vsub.f32 %v670, %v1187
      %v1270 = vsub.f32 %v783, %v1187
      %v1271 = vsub.f32 %v673, %v1192
      %v1272 = vsub.f32 %v786, %v1192
      %v1273 = vsub.f32 %v676, %v1197
      %v1274 = vsub.f32 %v789, %v1197
      %v1275 = vsub.f32 %v679, %v1202
      %v1276 = vsub.f32 %v792, %v1202
      %v1277 = vsub.f32 %v682, %v1207
      %v1278 = vsub.f32 %v795, %v1207
      %v1279 = vsub.f32 %v685, %v1212
      %v1280 = vsub.f32 %v798, %v1212
      %v1281 = vsub.f32 %v688, %v1217
      %v1282 = vsub.f32 %v801, %v1217
      %v1283 = vmul.f32 %v1219, 1.442695
      %v1284 = vpow.pop %v1283
      %v1285 = vmul.f32 %v1220, 1.442695
      %v1286 = vpow.pop %v1285
      %v1287 = vmul.f32 %v1221, 1.442695
      %v1288 = vpow.pop %v1287
      %v1289 = vmul.f32 %v1222, 1.442695
      %v1290 = vpow.pop %v1289
      %v1291 = vmul.f32 %v1223, 1.442695
      %v1292 = vpow.pop %v1291
      %v1293 = vmul.f32 %v1224, 1.442695
      %v1294 = vpow.pop %v1293
      %v1295 = vmul.f32 %v1225, 1.442695
      %v1296 = vpow.pop %v1295
      %v1297 = vmul.f32 %v1226, 1.442695
      %v1298 = vpow.pop %v1297
      %v1299 = vmul.f32 %v1227, 1.442695
      %v1300 = vpow.pop %v1299
      %v1301 = vmul.f32 %v1228, 1.442695
      %v1302 = vpow.pop %v1301
      %v1303 = vmul.f32 %v1229, 1.442695
      %v1304 = vpow.pop %v1303
      %v1305 = vmul.f32 %v1230, 1.442695
      %v1306 = vpow.pop %v1305
      %v1307 = vmul.f32 %v1231, 1.442695
      %v1308 = vpow.pop %v1307
      %v1309 = vmul.f32 %v1232, 1.442695
      %v1310 = vpow.pop %v1309
      %v1311 = vmul.f32 %v1233, 1.442695
      %v1312 = vpow.pop %v1311
      %v1313 = vmul.f32 %v1234, 1.442695
      %v1314 = vpow.pop %v1313
      %v1315 = vmul.f32 %v1235, 1.442695
      %v1316 = vpow.pop %v1315
      %v1317 = vmul.f32 %v1236, 1.442695
      %v1318 = vpow.pop %v1317
      %v1319 = vmul.f32 %v1237, 1.442695
      %v1320 = vpow.pop %v1319
      %v1321 = vmul.f32 %v1238, 1.442695
      %v1322 = vpow.pop %v1321
      %v1323 = vmul.f32 %v1239, 1.442695
      %v1324 = vpow.pop %v1323
      %v1325 = vmul.f32 %v1240, 1.442695
      %v1326 = vpow.pop %v1325
      %v1327 = vmul.f32 %v1241, 1.442695
      %v1328 = vpow.pop %v1327
      %v1329 = vmul.f32 %v1242, 1.442695
      %v1330 = vpow.pop %v1329
      %v1331 = vmul.f32 %v1243, 1.442695
      %v1332 = vpow.pop %v1331
      %v1333 = vmul.f32 %v1244, 1.442695
      %v1334 = vpow.pop %v1333
      %v1335 = vmul.f32 %v1245, 1.442695
      %v1336 = vpow.pop %v1335
      %v1337 = vmul.f32 %v1246, 1.442695
      %v1338 = vpow.pop %v1337
      %v1339 = vmul.f32 %v1247, 1.442695
      %v1340 = vpow.pop %v1339
      %v1341 = vmul.f32 %v1248, 1.442695
      %v1342 = vpow.pop %v1341
      %v1343 = vmul.f32 %v1249, 1.442695
      %v1344 = vpow.pop %v1343
      %v1345 = vmul.f32 %v1250, 1.442695
      %v1346 = vpow.pop %v1345
      %v1347 = vmul.f32 %v1251, 1.442695
      %v1348 = vpow.pop %v1347
      %v1349 = vmul.f32 %v1252, 1.442695
      %v1350 = vpow.pop %v1349
      %v1351 = vmul.f32 %v1253, 1.442695
      %v1352 = vpow.pop %v1351
      %v1353 = vmul.f32 %v1254, 1.442695
      %v1354 = vpow.pop %v1353
      %v1355 = vmul.f32 %v1255, 1.442695
      %v1356 = vpow.pop %v1355
      %v1357 = vmul.f32 %v1256, 1.442695
      %v1358 = vpow.pop %v1357
      %v1359 = vmul.f32 %v1257, 1.442695
      %v1360 = vpow.pop %v1359
      %v1361 = vmul.f32 %v1258, 1.442695
      %v1362 = vpow.pop %v1361
      %v1363 = vmul.f32 %v1259, 1.442695
      %v1364 = vpow.pop %v1363
      %v1365 = vmul.f32 %v1260, 1.442695
      %v1366 = vpow.pop %v1365
      %v1367 = vmul.f32 %v1261, 1.442695
      %v1368 = vpow.pop %v1367
      %v1369 = vmul.f32 %v1262, 1.442695
      %v1370 = vpow.pop %v1369
      %v1371 = vmul.f32 %v1263, 1.442695
      %v1372 = vpow.pop %v1371
      %v1373 = vmul.f32 %v1264, 1.442695
      %v1374 = vpow.pop %v1373
      %v1375 = vmul.f32 %v1265, 1.442695
      %v1376 = vpow.pop %v1375
      %v1377 = vmul.f32 %v1266, 1.442695
      %v1378 = vpow.pop %v1377
      %v1379 = vmul.f32 %v1267, 1.442695
      %v1380 = vpow.pop %v1379
      %v1381 = vmul.f32 %v1268, 1.442695
      %v1382 = vpow.pop %v1381
      %v1383 = vmul.f32 %v1269, 1.442695
      %v1384 = vpow.pop %v1383
      %v1385 = vmul.f32 %v1270, 1.442695
      %v1386 = vpow.pop %v1385
      %v1387 = vmul.f32 %v1271, 1.442695
      %v1388 = vpow.pop %v1387
      %v1389 = vmul.f32 %v1272, 1.442695
      %v1390 = vpow.pop %v1389
      %v1391 = vmul.f32 %v1273, 1.442695
      %v1392 = vpow.pop %v1391
      %v1393 = vmul.f32 %v1274, 1.442695
      %v1394 = vpow.pop %v1393
      %v1395 = vmul.f32 %v1275, 1.442695
      %v1396 = vpow.pop %v1395
      %v1397 = vmul.f32 %v1276, 1.442695
      %v1398 = vpow.pop %v1397
      %v1399 = vmul.f32 %v1277, 1.442695
      %v1400 = vpow.pop %v1399
      %v1401 = vmul.f32 %v1278, 1.442695
      %v1402 = vpow.pop %v1401
      %v1403 = vmul.f32 %v1279, 1.442695
      %v1404 = vpow.pop %v1403
      %v1405 = vmul.f32 %v1280, 1.442695
      %v1406 = vpow.pop %v1405
      %v1407 = vmul.f32 %v1281, 1.442695
      %v1408 = vpow.pop %v1407
      %v1409 = vmul.f32 %v1282, 1.442695
      %v1410 = vpow.pop %v1409
      %v1411 = vld [vmem:[#allocation3] sm:$0xff]
      %v1412 = vld [vmem:[#allocation3 + $0x8] sm:$0xff]
      %v1413 = vld [vmem:[#allocation3 + $0x10] sm:$0xff]
      %v1414 = vld [vmem:[#allocation3 + $0x18] sm:$0xff]
      %v1415 = vld [vmem:[#allocation3 + $0x20] sm:$0xff]
      %v1416 = vld [vmem:[#allocation3 + $0x28] sm:$0xff]
      %v1417 = vld [vmem:[#allocation3 + $0x30] sm:$0xff]
      %v1418 = vld [vmem:[#allocation3 + $0x38] sm:$0xff]
      %v1419 = vld [vmem:[#allocation3 + $0x40] sm:$0xff]
      %v1420 = vld [vmem:[#allocation3 + $0x48] sm:$0xff]
      %v1421 = vld [vmem:[#allocation3 + $0x50] sm:$0xff]
      %v1422 = vld [vmem:[#allocation3 + $0x58] sm:$0xff]
      %v1423 = vld [vmem:[#allocation3 + $0x60] sm:$0xff]
      %v1424 = vld [vmem:[#allocation3 + $0x68] sm:$0xff]
      %v1425 = vld [vmem:[#allocation3 + $0x70] sm:$0xff]
      %v1426 = vld [vmem:[#allocation3 + $0x78] sm:$0xff]
      %v1427 = vld [vmem:[#allocation3 + $0x80] sm:$0xff]
      %v1428 = vld [vmem:[#allocation3 + $0x88] sm:$0xff]
      %v1429 = vld [vmem:[#allocation3 + $0x90] sm:$0xff]
      %v1430 = vld [vmem:[#allocation3 + $0x98] sm:$0xff]
      %v1431 = vld [vmem:[#allocation3 + $0xa0] sm:$0xff]
      %v1432 = vld [vmem:[#allocation3 + $0xa8] sm:$0xff]
      %v1433 = vld [vmem:[#allocation3 + $0xb0] sm:$0xff]
      %v1434 = vld [vmem:[#allocation3 + $0xb8] sm:$0xff]
      %v1435 = vld [vmem:[#allocation3 + $0xc0] sm:$0xff]
      %v1436 = vld [vmem:[#allocation3 + $0xc8] sm:$0xff]
      %v1437 = vld [vmem:[#allocation3 + $0xd0] sm:$0xff]
      %v1438 = vld [vmem:[#allocation3 + $0xd8] sm:$0xff]
      %v1439 = vld [vmem:[#allocation3 + $0xe0] sm:$0xff]
      %v1440 = vld [vmem:[#allocation3 + $0xe8] sm:$0xff]
      %v1441 = vld [vmem:[#allocation3 + $0xf0] sm:$0xff]
      %v1442 = vld [vmem:[#allocation3 + $0xf8] sm:$0xff]
      %v1443 = vmul.f32 %v996, %v1411
      %v1444 = vmul.f32 %v998, %v1412
      %v1445 = vmul.f32 %v1000, %v1413
      %v1446 = vmul.f32 %v1002, %v1414
      %v1447 = vmul.f32 %v1004, %v1415
      %v1448 = vmul.f32 %v1006, %v1416
      %v1449 = vmul.f32 %v1008, %v1417
      %v1450 = vmul.f32 %v1010, %v1418
      %v1451 = vmul.f32 %v1012, %v1419
      %v1452 = vmul.f32 %v1014, %v1420
      %v1453 = vmul.f32 %v1016, %v1421
      %v1454 = vmul.f32 %v1018, %v1422
      %v1455 = vmul.f32 %v1020, %v1423
      %v1456 = vmul.f32 %v1022, %v1424
      %v1457 = vmul.f32 %v1024, %v1425
      %v1458 = vmul.f32 %v1026, %v1426
      %v1459 = vmul.f32 %v1028, %v1427
      %v1460 = vmul.f32 %v1030, %v1428
      %v1461 = vmul.f32 %v1032, %v1429
      %v1462 = vmul.f32 %v1034, %v1430
      %v1463 = vmul.f32 %v1036, %v1431
      %v1464 = vmul.f32 %v1038, %v1432
      %v1465 = vmul.f32 %v1040, %v1433
      %v1466 = vmul.f32 %v1042, %v1434
      %v1467 = vmul.f32 %v1044, %v1435
      %v1468 = vmul.f32 %v1046, %v1436
      %v1469 = vmul.f32 %v1048, %v1437
      %v1470 = vmul.f32 %v1050, %v1438
      %v1471 = vmul.f32 %v1052, %v1439
      %v1472 = vmul.f32 %v1054, %v1440
      %v1473 = vmul.f32 %v1056, %v1441
      %v1474 = vmul.f32 %v1058, %v1442
      %v1475 = vadd.f32 %v1284, %v1286
      %1476 = vadd.xlane.f32.xlu0 %v1475
      %v1477 = vpop.xlane.xlu0 %1476
      %v1478 = vadd.f32 %v1288, %v1290
      %1479 = vadd.xlane.f32.xlu0 %v1478
      %v1480 = vpop.xlane.xlu0 %1479
      %v1481 = vadd.f32 %v1292, %v1294
      %1482 = vadd.xlane.f32.xlu0 %v1481
      %v1483 = vpop.xlane.xlu0 %1482
      %v1484 = vadd.f32 %v1296, %v1298
      %1485 = vadd.xlane.f32.xlu0 %v1484
      %v1486 = vpop.xlane.xlu0 %1485
      %v1487 = vadd.f32 %v1300, %v1302
      %1488 = vadd.xlane.f32.xlu0 %v1487
      %v1489 = vpop.xlane.xlu0 %1488
      %v1490 = vadd.f32 %v1304, %v1306
      %1491 = vadd.xlane.f32.xlu0 %v1490
      %v1492 = vpop.xlane.xlu0 %1491
      %v1493 = vadd.f32 %v1308, %v1310
      %1494 = vadd.xlane.f32.xlu0 %v1493
      %v1495 = vpop.xlane.xlu0 %1494
      %v1496 = vadd.f32 %v1312, %v1314
      %1497 = vadd.xlane.f32.xlu0 %v1496
      %v1498 = vpop.xlane.xlu0 %1497
      %v1499 = vadd.f32 %v1316, %v1318
      %1500 = vadd.xlane.f32.xlu0 %v1499
      %v1501 = vpop.xlane.xlu0 %1500
      %v1502 = vadd.f32 %v1320, %v1322
      %1503 = vadd.xlane.f32.xlu0 %v1502
      %v1504 = vpop.xlane.xlu0 %1503
      %v1505 = vadd.f32 %v1324, %v1326
      %1506 = vadd.xlane.f32.xlu0 %v1505
      %v1507 = vpop.xlane.xlu0 %1506
      %v1508 = vadd.f32 %v1328, %v1330
      %1509 = vadd.xlane.f32.xlu0 %v1508
      %v1510 = vpop.xlane.xlu0 %1509
      %v1511 = vadd.f32 %v1332, %v1334
      %1512 = vadd.xlane.f32.xlu0 %v1511
      %v1513 = vpop.xlane.xlu0 %1512
      %v1514 = vadd.f32 %v1336, %v1338
      %1515 = vadd.xlane.f32.xlu0 %v1514
      %v1516 = vpop.xlane.xlu0 %1515
      %v1517 = vadd.f32 %v1340, %v1342
      %1518 = vadd.xlane.f32.xlu0 %v1517
      %v1519 = vpop.xlane.xlu0 %1518
      %v1520 = vadd.f32 %v1344, %v1346
      %1521 = vadd.xlane.f32.xlu0 %v1520
      %v1522 = vpop.xlane.xlu0 %1521
      %v1523 = vadd.f32 %v1348, %v1350
      %1524 = vadd.xlane.f32.xlu0 %v1523
      %v1525 = vpop.xlane.xlu0 %1524
      %v1526 = vadd.f32 %v1352, %v1354
      %1527 = vadd.xlane.f32.xlu0 %v1526
      %v1528 = vpop.xlane.xlu0 %1527
      %v1529 = vadd.f32 %v1356, %v1358
      %1530 = vadd.xlane.f32.xlu0 %v1529
      %v1531 = vpop.xlane.xlu0 %1530
      %v1532 = vadd.f32 %v1360, %v1362
      %1533 = vadd.xlane.f32.xlu0 %v1532
      %v1534 = vpop.xlane.xlu0 %1533
      %v1535 = vadd.f32 %v1364, %v1366
      %1536 = vadd.xlane.f32.xlu0 %v1535
      %v1537 = vpop.xlane.xlu0 %1536
      %v1538 = vadd.f32 %v1368, %v1370
      %1539 = vadd.xlane.f32.xlu0 %v1538
      %v1540 = vpop.xlane.xlu0 %1539
      %v1541 = vadd.f32 %v1372, %v1374
      %1542 = vadd.xlane.f32.xlu0 %v1541
      %v1543 = vpop.xlane.xlu0 %1542
      %v1544 = vadd.f32 %v1376, %v1378
      %1545 = vadd.xlane.f32.xlu0 %v1544
      %v1546 = vpop.xlane.xlu0 %1545
      %v1547 = vadd.f32 %v1380, %v1382
      %1548 = vadd.xlane.f32.xlu0 %v1547
      %v1549 = vpop.xlane.xlu0 %1548
      %v1550 = vadd.f32 %v1384, %v1386
      %1551 = vadd.xlane.f32.xlu0 %v1550
      %v1552 = vpop.xlane.xlu0 %1551
      %v1553 = vadd.f32 %v1388, %v1390
      %1554 = vadd.xlane.f32.xlu0 %v1553
      %v1555 = vpop.xlane.xlu0 %1554
      %v1556 = vadd.f32 %v1392, %v1394
      %1557 = vadd.xlane.f32.xlu0 %v1556
      %v1558 = vpop.xlane.xlu0 %1557
      %v1559 = vadd.f32 %v1396, %v1398
      %1560 = vadd.xlane.f32.xlu0 %v1559
      %v1561 = vpop.xlane.xlu0 %1560
      %v1562 = vadd.f32 %v1400, %v1402
      %1563 = vadd.xlane.f32.xlu0 %v1562
      %v1564 = vpop.xlane.xlu0 %1563
      %v1565 = vadd.f32 %v1404, %v1406
      %1566 = vadd.xlane.f32.xlu0 %v1565
      %v1567 = vpop.xlane.xlu0 %1566
      %v1568 = vadd.f32 %v1408, %v1410
      %1569 = vadd.xlane.f32.xlu0 %v1568
      %v1570 = vpop.xlane.xlu0 %1569
      %v1571 = vadd.f32 %v1443, %v1477
      %v1572 = vadd.f32 %v1444, %v1480
      %v1573 = vadd.f32 %v1445, %v1483
      %v1574 = vadd.f32 %v1446, %v1486
      %v1575 = vadd.f32 %v1447, %v1489
      %v1576 = vadd.f32 %v1448, %v1492
      %v1577 = vadd.f32 %v1449, %v1495
      %v1578 = vadd.f32 %v1450, %v1498
      %v1579 = vadd.f32 %v1451, %v1501
      %v1580 = vadd.f32 %v1452, %v1504
      %v1581 = vadd.f32 %v1453, %v1507
      %v1582 = vadd.f32 %v1454, %v1510
      %v1583 = vadd.f32 %v1455, %v1513
      %v1584 = vadd.f32 %v1456, %v1516
      %v1585 = vadd.f32 %v1457, %v1519
      %v1586 = vadd.f32 %v1458, %v1522
      %v1587 = vadd.f32 %v1459, %v1525
      %v1588 = vadd.f32 %v1460, %v1528
      %v1589 = vadd.f32 %v1461, %v1531
      %v1590 = vadd.f32 %v1462, %v1534
      %v1591 = vadd.f32 %v1463, %v1537
      %v1592 = vadd.f32 %v1464, %v1540
      %v1593 = vadd.f32 %v1465, %v1543
      %v1594 = vadd.f32 %v1466, %v1546
      %v1595 = vadd.f32 %v1467, %v1549
      %v1596 = vadd.f32 %v1468, %v1552
      %v1597 = vadd.f32 %v1469, %v1555
      %v1598 = vadd.f32 %v1470, %v1558
      %v1599 = vadd.f32 %v1471, %v1561
      %v1600 = vadd.f32 %v1472, %v1564
      %v1601 = vadd.f32 %v1473, %v1567
      %v1602 = vadd.f32 %v1474, %v1570
      %vm1603 = vcmask 7168
      %1604 = vst.msk [vmem:[#allocation3] sm:$0xff] %vm1603, %v1571
      %1605 = vst.msk [vmem:[#allocation3 + $0x8] sm:$0xff] %vm1603, %v1572
      %1606 = vst.msk [vmem:[#allocation3 + $0x10] sm:$0xff] %vm1603, %v1573
      %1607 = vst.msk [vmem:[#allocation3 + $0x18] sm:$0xff] %vm1603, %v1574
      %1608 = vst.msk [vmem:[#allocation3 + $0x20] sm:$0xff] %vm1603, %v1575
      %1609 = vst.msk [vmem:[#allocation3 + $0x28] sm:$0xff] %vm1603, %v1576
      %1610 = vst.msk [vmem:[#allocation3 + $0x30] sm:$0xff] %vm1603, %v1577
      %1611 = vst.msk [vmem:[#allocation3 + $0x38] sm:$0xff] %vm1603, %v1578
      %1612 = vst.msk [vmem:[#allocation3 + $0x40] sm:$0xff] %vm1603, %v1579
      %1613 = vst.msk [vmem:[#allocation3 + $0x48] sm:$0xff] %vm1603, %v1580
      %1614 = vst.msk [vmem:[#allocation3 + $0x50] sm:$0xff] %vm1603, %v1581
      %1615 = vst.msk [vmem:[#allocation3 + $0x58] sm:$0xff] %vm1603, %v1582
      %1616 = vst.msk [vmem:[#allocation3 + $0x60] sm:$0xff] %vm1603, %v1583
      %1617 = vst.msk [vmem:[#allocation3 + $0x68] sm:$0xff] %vm1603, %v1584
      %1618 = vst.msk [vmem:[#allocation3 + $0x70] sm:$0xff] %vm1603, %v1585
      %1619 = vst.msk [vmem:[#allocation3 + $0x78] sm:$0xff] %vm1603, %v1586
      %1620 = vst.msk [vmem:[#allocation3 + $0x80] sm:$0xff] %vm1603, %v1587
      %1621 = vst.msk [vmem:[#allocation3 + $0x88] sm:$0xff] %vm1603, %v1588
      %1622 = vst.msk [vmem:[#allocation3 + $0x90] sm:$0xff] %vm1603, %v1589
      %1623 = vst.msk [vmem:[#allocation3 + $0x98] sm:$0xff] %vm1603, %v1590
      %1624 = vst.msk [vmem:[#allocation3 + $0xa0] sm:$0xff] %vm1603, %v1591
      %1625 = vst.msk [vmem:[#allocation3 + $0xa8] sm:$0xff] %vm1603, %v1592
      %1626 = vst.msk [vmem:[#allocation3 + $0xb0] sm:$0xff] %vm1603, %v1593
      %1627 = vst.msk [vmem:[#allocation3 + $0xb8] sm:$0xff] %vm1603, %v1594
      %1628 = vst.msk [vmem:[#allocation3 + $0xc0] sm:$0xff] %vm1603, %v1595
      %1629 = vst.msk [vmem:[#allocation3 + $0xc8] sm:$0xff] %vm1603, %v1596
      %1630 = vst.msk [vmem:[#allocation3 + $0xd0] sm:$0xff] %vm1603, %v1597
      %1631 = vst.msk [vmem:[#allocation3 + $0xd8] sm:$0xff] %vm1603, %v1598
      %1632 = vst.msk [vmem:[#allocation3 + $0xe0] sm:$0xff] %vm1603, %v1599
      %1633 = vst.msk [vmem:[#allocation3 + $0xe8] sm:$0xff] %vm1603, %v1600
      %1634 = vst.msk [vmem:[#allocation3 + $0xf0] sm:$0xff] %vm1603, %v1601
      %1635 = vst.msk [vmem:[#allocation3 + $0xf8] sm:$0xff] %vm1603, %v1602
      %v1636 = vld [vmem:[#allocation4] sm:$0xff]
      %v1637 = vld [vmem:[#allocation4 + $0x8] sm:$0xff]
      %v1638 = vld [vmem:[#allocation4 + $0x10] sm:$0xff]
      %v1639 = vld [vmem:[#allocation4 + $0x18] sm:$0xff]
      %v1640 = vld [vmem:[#allocation4 + $0x20] sm:$0xff]
      %v1641 = vld [vmem:[#allocation4 + $0x28] sm:$0xff]
      %v1642 = vld [vmem:[#allocation4 + $0x30] sm:$0xff]
      %v1643 = vld [vmem:[#allocation4 + $0x38] sm:$0xff]
      %v1644 = vld [vmem:[#allocation4 + $0x40] sm:$0xff]
      %v1645 = vld [vmem:[#allocation4 + $0x48] sm:$0xff]
      %v1646 = vld [vmem:[#allocation4 + $0x50] sm:$0xff]
      %v1647 = vld [vmem:[#allocation4 + $0x58] sm:$0xff]
      %v1648 = vld [vmem:[#allocation4 + $0x60] sm:$0xff]
      %v1649 = vld [vmem:[#allocation4 + $0x68] sm:$0xff]
      %v1650 = vld [vmem:[#allocation4 + $0x70] sm:$0xff]
      %v1651 = vld [vmem:[#allocation4 + $0x78] sm:$0xff]
      %v1652 = vld [vmem:[#allocation4 + $0x80] sm:$0xff]
      %v1653 = vld [vmem:[#allocation4 + $0x88] sm:$0xff]
      %v1654 = vld [vmem:[#allocation4 + $0x90] sm:$0xff]
      %v1655 = vld [vmem:[#allocation4 + $0x98] sm:$0xff]
      %v1656 = vld [vmem:[#allocation4 + $0xa0] sm:$0xff]
      %v1657 = vld [vmem:[#allocation4 + $0xa8] sm:$0xff]
      %v1658 = vld [vmem:[#allocation4 + $0xb0] sm:$0xff]
      %v1659 = vld [vmem:[#allocation4 + $0xb8] sm:$0xff]
      %v1660 = vld [vmem:[#allocation4 + $0xc0] sm:$0xff]
      %v1661 = vld [vmem:[#allocation4 + $0xc8] sm:$0xff]
      %v1662 = vld [vmem:[#allocation4 + $0xd0] sm:$0xff]
      %v1663 = vld [vmem:[#allocation4 + $0xd8] sm:$0xff]
      %v1664 = vld [vmem:[#allocation4 + $0xe0] sm:$0xff]
      %v1665 = vld [vmem:[#allocation4 + $0xe8] sm:$0xff]
      %v1666 = vld [vmem:[#allocation4 + $0xf0] sm:$0xff]
      %v1667 = vld [vmem:[#allocation4 + $0xf8] sm:$0xff]
      %1669 = vset.pattern.permute.xlu0 0
      %1670 = vperm.xlu0 %1669, %v996
      %v1671 = vpop.permute.xlu0 %1670
      %1674 = vset.pattern.permute.xlu0 0
      %1675 = vperm.xlu0 %1674, %v998
      %v1676 = vpop.permute.xlu0 %1675
      %1679 = vset.pattern.permute.xlu0 0
      %1680 = vperm.xlu0 %1679, %v1000
      %v1681 = vpop.permute.xlu0 %1680
      %1684 = vset.pattern.permute.xlu0 0
      %1685 = vperm.xlu0 %1684, %v1002
      %v1686 = vpop.permute.xlu0 %1685
      %1689 = vset.pattern.permute.xlu0 0
      %1690 = vperm.xlu0 %1689, %v1004
      %v1691 = vpop.permute.xlu0 %1690
      %1694 = vset.pattern.permute.xlu0 0
      %1695 = vperm.xlu0 %1694, %v1006
      %v1696 = vpop.permute.xlu0 %1695
      %1699 = vset.pattern.permute.xlu0 0
      %1700 = vperm.xlu0 %1699, %v1008
      %v1701 = vpop.permute.xlu0 %1700
      %1704 = vset.pattern.permute.xlu0 0
      %1705 = vperm.xlu0 %1704, %v1010
      %v1706 = vpop.permute.xlu0 %1705
      %1709 = vset.pattern.permute.xlu0 0
      %1710 = vperm.xlu0 %1709, %v1012
      %v1711 = vpop.permute.xlu0 %1710
      %1714 = vset.pattern.permute.xlu0 0
      %1715 = vperm.xlu0 %1714, %v1014
      %v1716 = vpop.permute.xlu0 %1715
      %1719 = vset.pattern.permute.xlu0 0
      %1720 = vperm.xlu0 %1719, %v1016
      %v1721 = vpop.permute.xlu0 %1720
      %1724 = vset.pattern.permute.xlu0 0
      %1725 = vperm.xlu0 %1724, %v1018
      %v1726 = vpop.permute.xlu0 %1725
      %1729 = vset.pattern.permute.xlu0 0
      %1730 = vperm.xlu0 %1729, %v1020
      %v1731 = vpop.permute.xlu0 %1730
      %1734 = vset.pattern.permute.xlu0 0
      %1735 = vperm.xlu0 %1734, %v1022
      %v1736 = vpop.permute.xlu0 %1735
      %1739 = vset.pattern.permute.xlu0 0
      %1740 = vperm.xlu0 %1739, %v1024
      %v1741 = vpop.permute.xlu0 %1740
      %1744 = vset.pattern.permute.xlu0 0
      %1745 = vperm.xlu0 %1744, %v1026
      %v1746 = vpop.permute.xlu0 %1745
      %1749 = vset.pattern.permute.xlu0 0
      %1750 = vperm.xlu0 %1749, %v1028
      %v1751 = vpop.permute.xlu0 %1750
      %1754 = vset.pattern.permute.xlu0 0
      %1755 = vperm.xlu0 %1754, %v1030
      %v1756 = vpop.permute.xlu0 %1755
      %1759 = vset.pattern.permute.xlu0 0
      %1760 = vperm.xlu0 %1759, %v1032
      %v1761 = vpop.permute.xlu0 %1760
      %1764 = vset.pattern.permute.xlu0 0
      %1765 = vperm.xlu0 %1764, %v1034
      %v1766 = vpop.permute.xlu0 %1765
      %1769 = vset.pattern.permute.xlu0 0
      %1770 = vperm.xlu0 %1769, %v1036
      %v1771 = vpop.permute.xlu0 %1770
      %1774 = vset.pattern.permute.xlu0 0
      %1775 = vperm.xlu0 %1774, %v1038
      %v1776 = vpop.permute.xlu0 %1775
      %1779 = vset.pattern.permute.xlu0 0
      %1780 = vperm.xlu0 %1779, %v1040
      %v1781 = vpop.permute.xlu0 %1780
      %1784 = vset.pattern.permute.xlu0 0
      %1785 = vperm.xlu0 %1784, %v1042
      %v1786 = vpop.permute.xlu0 %1785
      %1789 = vset.pattern.permute.xlu0 0
      %1790 = vperm.xlu0 %1789, %v1044
      %v1791 = vpop.permute.xlu0 %1790
      %1794 = vset.pattern.permute.xlu0 0
      %1795 = vperm.xlu0 %1794, %v1046
      %v1796 = vpop.permute.xlu0 %1795
      %1799 = vset.pattern.permute.xlu0 0
      %1800 = vperm.xlu0 %1799, %v1048
      %v1801 = vpop.permute.xlu0 %1800
      %1804 = vset.pattern.permute.xlu0 0
      %1805 = vperm.xlu0 %1804, %v1050
      %v1806 = vpop.permute.xlu0 %1805
      %1809 = vset.pattern.permute.xlu0 0
      %1810 = vperm.xlu0 %1809, %v1052
      %v1811 = vpop.permute.xlu0 %1810
      %1814 = vset.pattern.permute.xlu0 0
      %1815 = vperm.xlu0 %1814, %v1054
      %v1816 = vpop.permute.xlu0 %1815
      %1819 = vset.pattern.permute.xlu0 0
      %1820 = vperm.xlu0 %1819, %v1056
      %v1821 = vpop.permute.xlu0 %1820
      %1824 = vset.pattern.permute.xlu0 0
      %1825 = vperm.xlu0 %1824, %v1058
      %v1826 = vpop.permute.xlu0 %1825
      %v1828 = vmul.f32 %v1671, %v1636
      %v1829 = vmul.f32 %v1676, %v1637
      %v1830 = vmul.f32 %v1681, %v1638
      %v1831 = vmul.f32 %v1686, %v1639
      %v1832 = vmul.f32 %v1691, %v1640
      %v1833 = vmul.f32 %v1696, %v1641
      %v1834 = vmul.f32 %v1701, %v1642
      %v1835 = vmul.f32 %v1706, %v1643
      %v1836 = vmul.f32 %v1711, %v1644
      %v1837 = vmul.f32 %v1716, %v1645
      %v1838 = vmul.f32 %v1721, %v1646
      %v1839 = vmul.f32 %v1726, %v1647
      %v1840 = vmul.f32 %v1731, %v1648
      %v1841 = vmul.f32 %v1736, %v1649
      %v1842 = vmul.f32 %v1741, %v1650
      %v1843 = vmul.f32 %v1746, %v1651
      %v1844 = vmul.f32 %v1751, %v1652
      %v1845 = vmul.f32 %v1756, %v1653
      %v1846 = vmul.f32 %v1761, %v1654
      %v1847 = vmul.f32 %v1766, %v1655
      %v1848 = vmul.f32 %v1771, %v1656
      %v1849 = vmul.f32 %v1776, %v1657
      %v1850 = vmul.f32 %v1781, %v1658
      %v1851 = vmul.f32 %v1786, %v1659
      %v1852 = vmul.f32 %v1791, %v1660
      %v1853 = vmul.f32 %v1796, %v1661
      %v1854 = vmul.f32 %v1801, %v1662
      %v1855 = vmul.f32 %v1806, %v1663
      %v1856 = vmul.f32 %v1811, %v1664
      %v1857 = vmul.f32 %v1816, %v1665
      %v1858 = vmul.f32 %v1821, %v1666
      %v1859 = vmul.f32 %v1826, %v1667
      %1860 = vmatpush.msra.mxu0 %v560
      %1861 = vmatpush.msra.mxu0 %v559
      %1862 = vmatpush.msra.mxu0 %v558
      %1863 = vmatpush.msra.mxu0 %v557
      %1864 = vmatpush.msra.mxu0 %v556
      %1865 = vmatpush.msra.mxu0 %v555
      %1866 = vmatpush.msra.mxu0 %v554
      %1867 = vmatpush.msra.mxu0 %v553
      %1868 = vmatpush.msra.mxu0 %v552
      %1869 = vmatpush.msra.mxu0 %v551
      %1870 = vmatpush.msra.mxu0 %v550
      %1871 = vmatpush.msra.mxu0 %v549
      %1872 = vmatpush.msra.mxu0 %v548
      %1873 = vmatpush.msra.mxu0 %v547
      %1874 = vmatpush.msra.mxu0 %v546
      %1875 = vmatpush.msra.mxu0 %v545
      %1876 = vmatmul.f32.gmra.mxu0 %v1284
      %v1877 = vpop.f32.mrf.mxu0
      %v1878 = vadd.f32 0.0, %v1877
      %1879 = vmatmul.f32.gmra.mxu0 %v1288
      %v1880 = vpop.f32.mrf.mxu0
      %v1881 = vadd.f32 0.0, %v1880
      %1882 = vmatmul.f32.gmra.mxu0 %v1292
      %v1883 = vpop.f32.mrf.mxu0
      %v1884 = vadd.f32 0.0, %v1883
      %1885 = vmatmul.f32.gmra.mxu0 %v1296
      %v1886 = vpop.f32.mrf.mxu0
      %v1887 = vadd.f32 0.0, %v1886
      %1888 = vmatmul.f32.gmra.mxu0 %v1300
      %v1889 = vpop.f32.mrf.mxu0
      %v1890 = vadd.f32 0.0, %v1889
      %1891 = vmatmul.f32.gmra.mxu0 %v1304
      %v1892 = vpop.f32.mrf.mxu0
      %v1893 = vadd.f32 0.0, %v1892
      %1894 = vmatmul.f32.gmra.mxu0 %v1308
      %v1895 = vpop.f32.mrf.mxu0
      %v1896 = vadd.f32 0.0, %v1895
      %1897 = vmatmul.f32.gmra.mxu0 %v1312
      %v1898 = vpop.f32.mrf.mxu0
      %v1899 = vadd.f32 0.0, %v1898
      %1900 = vmatmul.f32.gmra.mxu0 %v1316
      %v1901 = vpop.f32.mrf.mxu0
      %v1902 = vadd.f32 0.0, %v1901
      %1903 = vmatmul.f32.gmra.mxu0 %v1320
      %v1904 = vpop.f32.mrf.mxu0
      %v1905 = vadd.f32 0.0, %v1904
      %1906 = vmatmul.f32.gmra.mxu0 %v1324
      %v1907 = vpop.f32.mrf.mxu0
      %v1908 = vadd.f32 0.0, %v1907
      %1909 = vmatmul.f32.gmra.mxu0 %v1328
      %v1910 = vpop.f32.mrf.mxu0
      %v1911 = vadd.f32 0.0, %v1910
      %1912 = vmatmul.f32.gmra.mxu0 %v1332
      %v1913 = vpop.f32.mrf.mxu0
      %v1914 = vadd.f32 0.0, %v1913
      %1915 = vmatmul.f32.gmra.mxu0 %v1336
      %v1916 = vpop.f32.mrf.mxu0
      %v1917 = vadd.f32 0.0, %v1916
      %1918 = vmatmul.f32.gmra.mxu0 %v1340
      %v1919 = vpop.f32.mrf.mxu0
      %v1920 = vadd.f32 0.0, %v1919
      %1921 = vmatmul.f32.gmra.mxu0 %v1344
      %v1922 = vpop.f32.mrf.mxu0
      %v1923 = vadd.f32 0.0, %v1922
      %1924 = vmatmul.f32.gmra.mxu0 %v1348
      %v1925 = vpop.f32.mrf.mxu0
      %v1926 = vadd.f32 0.0, %v1925
      %1927 = vmatmul.f32.gmra.mxu0 %v1352
      %v1928 = vpop.f32.mrf.mxu0
      %v1929 = vadd.f32 0.0, %v1928
      %1930 = vmatmul.f32.gmra.mxu0 %v1356
      %v1931 = vpop.f32.mrf.mxu0
      %v1932 = vadd.f32 0.0, %v1931
      %1933 = vmatmul.f32.gmra.mxu0 %v1360
      %v1934 = vpop.f32.mrf.mxu0
      %v1935 = vadd.f32 0.0, %v1934
      %1936 = vmatmul.f32.gmra.mxu0 %v1364
      %v1937 = vpop.f32.mrf.mxu0
      %v1938 = vadd.f32 0.0, %v1937
      %1939 = vmatmul.f32.gmra.mxu0 %v1368
      %v1940 = vpop.f32.mrf.mxu0
      %v1941 = vadd.f32 0.0, %v1940
      %1942 = vmatmul.f32.gmra.mxu0 %v1372
      %v1943 = vpop.f32.mrf.mxu0
      %v1944 = vadd.f32 0.0, %v1943
      %1945 = vmatmul.f32.gmra.mxu0 %v1376
      %v1946 = vpop.f32.mrf.mxu0
      %v1947 = vadd.f32 0.0, %v1946
      %1948 = vmatmul.f32.gmra.mxu0 %v1380
      %v1949 = vpop.f32.mrf.mxu0
      %v1950 = vadd.f32 0.0, %v1949
      %1951 = vmatmul.f32.gmra.mxu0 %v1384
      %v1952 = vpop.f32.mrf.mxu0
      %v1953 = vadd.f32 0.0, %v1952
      %1954 = vmatmul.f32.gmra.mxu0 %v1388
      %v1955 = vpop.f32.mrf.mxu0
      %v1956 = vadd.f32 0.0, %v1955
      %1957 = vmatmul.f32.gmra.mxu0 %v1392
      %v1958 = vpop.f32.mrf.mxu0
      %v1959 = vadd.f32 0.0, %v1958
      %1960 = vmatmul.f32.gmra.mxu0 %v1396
      %v1961 = vpop.f32.mrf.mxu0
      %v1962 = vadd.f32 0.0, %v1961
      %1963 = vmatmul.f32.gmra.mxu0 %v1400
      %v1964 = vpop.f32.mrf.mxu0
      %v1965 = vadd.f32 0.0, %v1964
      %1966 = vmatmul.f32.gmra.mxu0 %v1404
      %v1967 = vpop.f32.mrf.mxu0
      %v1968 = vadd.f32 0.0, %v1967
      %1969 = vmatmul.f32.gmra.mxu0 %v1408
      %v1970 = vpop.f32.mrf.mxu0
      %v1971 = vadd.f32 0.0, %v1970
      %1972 = vdwg.mxu0
      %1973 = vmatpush.msra.mxu0 %v576
      %1974 = vmatpush.msra.mxu0 %v575
      %1975 = vmatpush.msra.mxu0 %v574
      %1976 = vmatpush.msra.mxu0 %v573
      %1977 = vmatpush.msra.mxu0 %v572
      %1978 = vmatpush.msra.mxu0 %v571
      %1979 = vmatpush.msra.mxu0 %v570
      %1980 = vmatpush.msra.mxu0 %v569
      %1981 = vmatpush.msra.mxu0 %v568
      %1982 = vmatpush.msra.mxu0 %v567
      %1983 = vmatpush.msra.mxu0 %v566
      %1984 = vmatpush.msra.mxu0 %v565
      %1985 = vmatpush.msra.mxu0 %v564
      %1986 = vmatpush.msra.mxu0 %v563
      %1987 = vmatpush.msra.mxu0 %v562
      %1988 = vmatpush.msra.mxu0 %v561
      %1989 = vmatmul.f32.gmra.mxu0 %v1286
      %v1990 = vpop.f32.mrf.mxu0
      %v1991 = vadd.f32 %v1878, %v1990
      %1992 = vmatmul.f32.gmra.mxu0 %v1290
      %v1993 = vpop.f32.mrf.mxu0
      %v1994 = vadd.f32 %v1881, %v1993
      %1995 = vmatmul.f32.gmra.mxu0 %v1294
      %v1996 = vpop.f32.mrf.mxu0
      %v1997 = vadd.f32 %v1884, %v1996
      %1998 = vmatmul.f32.gmra.mxu0 %v1298
      %v1999 = vpop.f32.mrf.mxu0
      %v2000 = vadd.f32 %v1887, %v1999
      %2001 = vmatmul.f32.gmra.mxu0 %v1302
      %v2002 = vpop.f32.mrf.mxu0
      %v2003 = vadd.f32 %v1890, %v2002
      %2004 = vmatmul.f32.gmra.mxu0 %v1306
      %v2005 = vpop.f32.mrf.mxu0
      %v2006 = vadd.f32 %v1893, %v2005
      %2007 = vmatmul.f32.gmra.mxu0 %v1310
      %v2008 = vpop.f32.mrf.mxu0
      %v2009 = vadd.f32 %v1896, %v2008
      %2010 = vmatmul.f32.gmra.mxu0 %v1314
      %v2011 = vpop.f32.mrf.mxu0
      %v2012 = vadd.f32 %v1899, %v2011
      %2013 = vmatmul.f32.gmra.mxu0 %v1318
      %v2014 = vpop.f32.mrf.mxu0
      %v2015 = vadd.f32 %v1902, %v2014
      %2016 = vmatmul.f32.gmra.mxu0 %v1322
      %v2017 = vpop.f32.mrf.mxu0
      %v2018 = vadd.f32 %v1905, %v2017
      %2019 = vmatmul.f32.gmra.mxu0 %v1326
      %v2020 = vpop.f32.mrf.mxu0
      %v2021 = vadd.f32 %v1908, %v2020
      %2022 = vmatmul.f32.gmra.mxu0 %v1330
      %v2023 = vpop.f32.mrf.mxu0
      %v2024 = vadd.f32 %v1911, %v2023
      %2025 = vmatmul.f32.gmra.mxu0 %v1334
      %v2026 = vpop.f32.mrf.mxu0
      %v2027 = vadd.f32 %v1914, %v2026
      %2028 = vmatmul.f32.gmra.mxu0 %v1338
      %v2029 = vpop.f32.mrf.mxu0
      %v2030 = vadd.f32 %v1917, %v2029
      %2031 = vmatmul.f32.gmra.mxu0 %v1342
      %v2032 = vpop.f32.mrf.mxu0
      %v2033 = vadd.f32 %v1920, %v2032
      %2034 = vmatmul.f32.gmra.mxu0 %v1346
      %v2035 = vpop.f32.mrf.mxu0
      %v2036 = vadd.f32 %v1923, %v2035
      %2037 = vmatmul.f32.gmra.mxu0 %v1350
      %v2038 = vpop.f32.mrf.mxu0
      %v2039 = vadd.f32 %v1926, %v2038
      %2040 = vmatmul.f32.gmra.mxu0 %v1354
      %v2041 = vpop.f32.mrf.mxu0
      %v2042 = vadd.f32 %v1929, %v2041
      %2043 = vmatmul.f32.gmra.mxu0 %v1358
      %v2044 = vpop.f32.mrf.mxu0
      %v2045 = vadd.f32 %v1932, %v2044
      %2046 = vmatmul.f32.gmra.mxu0 %v1362
      %v2047 = vpop.f32.mrf.mxu0
      %v2048 = vadd.f32 %v1935, %v2047
      %2049 = vmatmul.f32.gmra.mxu0 %v1366
      %v2050 = vpop.f32.mrf.mxu0
      %v2051 = vadd.f32 %v1938, %v2050
      %2052 = vmatmul.f32.gmra.mxu0 %v1370
      %v2053 = vpop.f32.mrf.mxu0
      %v2054 = vadd.f32 %v1941, %v2053
      %2055 = vmatmul.f32.gmra.mxu0 %v1374
      %v2056 = vpop.f32.mrf.mxu0
      %v2057 = vadd.f32 %v1944, %v2056
      %2058 = vmatmul.f32.gmra.mxu0 %v1378
      %v2059 = vpop.f32.mrf.mxu0
      %v2060 = vadd.f32 %v1947, %v2059
      %2061 = vmatmul.f32.gmra.mxu0 %v1382
      %v2062 = vpop.f32.mrf.mxu0
      %v2063 = vadd.f32 %v1950, %v2062
      %2064 = vmatmul.f32.gmra.mxu0 %v1386
      %v2065 = vpop.f32.mrf.mxu0
      %v2066 = vadd.f32 %v1953, %v2065
      %2067 = vmatmul.f32.gmra.mxu0 %v1390
      %v2068 = vpop.f32.mrf.mxu0
      %v2069 = vadd.f32 %v1956, %v2068
      %2070 = vmatmul.f32.gmra.mxu0 %v1394
      %v2071 = vpop.f32.mrf.mxu0
      %v2072 = vadd.f32 %v1959, %v2071
      %2073 = vmatmul.f32.gmra.mxu0 %v1398
      %v2074 = vpop.f32.mrf.mxu0
      %v2075 = vadd.f32 %v1962, %v2074
      %2076 = vmatmul.f32.gmra.mxu0 %v1402
      %v2077 = vpop.f32.mrf.mxu0
      %v2078 = vadd.f32 %v1965, %v2077
      %2079 = vmatmul.f32.gmra.mxu0 %v1406
      %v2080 = vpop.f32.mrf.mxu0
      %v2081 = vadd.f32 %v1968, %v2080
      %2082 = vmatmul.f32.gmra.mxu0 %v1410
      %v2083 = vpop.f32.mrf.mxu0
      %v2084 = vadd.f32 %v1971, %v2083
      %2085 = vdwg.mxu0
      %v2086 = vadd.f32 %v1828, %v1991
      %v2087 = vadd.f32 %v1829, %v1994
      %v2088 = vadd.f32 %v1830, %v1997
      %v2089 = vadd.f32 %v1831, %v2000
      %v2090 = vadd.f32 %v1832, %v2003
      %v2091 = vadd.f32 %v1833, %v2006
      %v2092 = vadd.f32 %v1834, %v2009
      %v2093 = vadd.f32 %v1835, %v2012
      %v2094 = vadd.f32 %v1836, %v2015
      %v2095 = vadd.f32 %v1837, %v2018
      %v2096 = vadd.f32 %v1838, %v2021
      %v2097 = vadd.f32 %v1839, %v2024
      %v2098 = vadd.f32 %v1840, %v2027
      %v2099 = vadd.f32 %v1841, %v2030
      %v2100 = vadd.f32 %v1842, %v2033
      %v2101 = vadd.f32 %v1843, %v2036
      %v2102 = vadd.f32 %v1844, %v2039
      %v2103 = vadd.f32 %v1845, %v2042
      %v2104 = vadd.f32 %v1846, %v2045
      %v2105 = vadd.f32 %v1847, %v2048
      %v2106 = vadd.f32 %v1848, %v2051
      %v2107 = vadd.f32 %v1849, %v2054
      %v2108 = vadd.f32 %v1850, %v2057
      %v2109 = vadd.f32 %v1851, %v2060
      %v2110 = vadd.f32 %v1852, %v2063
      %v2111 = vadd.f32 %v1853, %v2066
      %v2112 = vadd.f32 %v1854, %v2069
      %v2113 = vadd.f32 %v1855, %v2072
      %v2114 = vadd.f32 %v1856, %v2075
      %v2115 = vadd.f32 %v1857, %v2078
      %v2116 = vadd.f32 %v1858, %v2081
      %v2117 = vadd.f32 %v1859, %v2084
      %2118 = vst [vmem:[#allocation4] sm:$0xff] %v2086
      %2119 = vst [vmem:[#allocation4 + $0x8] sm:$0xff] %v2087
      %2120 = vst [vmem:[#allocation4 + $0x10] sm:$0xff] %v2088
      %2121 = vst [vmem:[#allocation4 + $0x18] sm:$0xff] %v2089
      %2122 = vst [vmem:[#allocation4 + $0x20] sm:$0xff] %v2090
      %2123 = vst [vmem:[#allocation4 + $0x28] sm:$0xff] %v2091
      %2124 = vst [vmem:[#allocation4 + $0x30] sm:$0xff] %v2092
      %2125 = vst [vmem:[#allocation4 + $0x38] sm:$0xff] %v2093
      %2126 = vst [vmem:[#allocation4 + $0x40] sm:$0xff] %v2094
      %2127 = vst [vmem:[#allocation4 + $0x48] sm:$0xff] %v2095
      %2128 = vst [vmem:[#allocation4 + $0x50] sm:$0xff] %v2096
      %2129 = vst [vmem:[#allocation4 + $0x58] sm:$0xff] %v2097
      %2130 = vst [vmem:[#allocation4 + $0x60] sm:$0xff] %v2098
      %2131 = vst [vmem:[#allocation4 + $0x68] sm:$0xff] %v2099
      %2132 = vst [vmem:[#allocation4 + $0x70] sm:$0xff] %v2100
      %2133 = vst [vmem:[#allocation4 + $0x78] sm:$0xff] %v2101
      %2134 = vst [vmem:[#allocation4 + $0x80] sm:$0xff] %v2102
      %2135 = vst [vmem:[#allocation4 + $0x88] sm:$0xff] %v2103
      %2136 = vst [vmem:[#allocation4 + $0x90] sm:$0xff] %v2104
      %2137 = vst [vmem:[#allocation4 + $0x98] sm:$0xff] %v2105
      %2138 = vst [vmem:[#allocation4 + $0xa0] sm:$0xff] %v2106
      %2139 = vst [vmem:[#allocation4 + $0xa8] sm:$0xff] %v2107
      %2140 = vst [vmem:[#allocation4 + $0xb0] sm:$0xff] %v2108
      %2141 = vst [vmem:[#allocation4 + $0xb8] sm:$0xff] %v2109
      %2142 = vst [vmem:[#allocation4 + $0xc0] sm:$0xff] %v2110
      %2143 = vst [vmem:[#allocation4 + $0xc8] sm:$0xff] %v2111
      %2144 = vst [vmem:[#allocation4 + $0xd0] sm:$0xff] %v2112
      %2145 = vst [vmem:[#allocation4 + $0xd8] sm:$0xff] %v2113
      %2146 = vst [vmem:[#allocation4 + $0xe0] sm:$0xff] %v2114
      %2147 = vst [vmem:[#allocation4 + $0xe8] sm:$0xff] %v2115
      %2148 = vst [vmem:[#allocation4 + $0xf0] sm:$0xff] %v2116
      %2149 = vst [vmem:[#allocation4 + $0xf8] sm:$0xff] %v2117
      %2150 = vst.msk [vmem:[#allocation2] sm:$0xff] %vm1603, %v931
      %2151 = vst.msk [vmem:[#allocation2 + $0x8] sm:$0xff] %vm1603, %v932
      %2152 = vst.msk [vmem:[#allocation2 + $0x10] sm:$0xff] %vm1603, %v933
      %2153 = vst.msk [vmem:[#allocation2 + $0x18] sm:$0xff] %vm1603, %v934
      %2154 = vst.msk [vmem:[#allocation2 + $0x20] sm:$0xff] %vm1603, %v935
      %2155 = vst.msk [vmem:[#allocation2 + $0x28] sm:$0xff] %vm1603, %v936
      %2156 = vst.msk [vmem:[#allocation2 + $0x30] sm:$0xff] %vm1603, %v937
      %2157 = vst.msk [vmem:[#allocation2 + $0x38] sm:$0xff] %vm1603, %v938
      %2158 = vst.msk [vmem:[#allocation2 + $0x40] sm:$0xff] %vm1603, %v939
      %2159 = vst.msk [vmem:[#allocation2 + $0x48] sm:$0xff] %vm1603, %v940
      %2160 = vst.msk [vmem:[#allocation2 + $0x50] sm:$0xff] %vm1603, %v941
      %2161 = vst.msk [vmem:[#allocation2 + $0x58] sm:$0xff] %vm1603, %v942
      %2162 = vst.msk [vmem:[#allocation2 + $0x60] sm:$0xff] %vm1603, %v943
      %2163 = vst.msk [vmem:[#allocation2 + $0x68] sm:$0xff] %vm1603, %v944
      %2164 = vst.msk [vmem:[#allocation2 + $0x70] sm:$0xff] %vm1603, %v945
      %2165 = vst.msk [vmem:[#allocation2 + $0x78] sm:$0xff] %vm1603, %v946
      %2166 = vst.msk [vmem:[#allocation2 + $0x80] sm:$0xff] %vm1603, %v947
      %2167 = vst.msk [vmem:[#allocation2 + $0x88] sm:$0xff] %vm1603, %v948
      %2168 = vst.msk [vmem:[#allocation2 + $0x90] sm:$0xff] %vm1603, %v949
      %2169 = vst.msk [vmem:[#allocation2 + $0x98] sm:$0xff] %vm1603, %v950
      %2170 = vst.msk [vmem:[#allocation2 + $0xa0] sm:$0xff] %vm1603, %v951
      %2171 = vst.msk [vmem:[#allocation2 + $0xa8] sm:$0xff] %vm1603, %v952
      %2172 = vst.msk [vmem:[#allocation2 + $0xb0] sm:$0xff] %vm1603, %v953
      %2173 = vst.msk [vmem:[#allocation2 + $0xb8] sm:$0xff] %vm1603, %v954
      %2174 = vst.msk [vmem:[#allocation2 + $0xc0] sm:$0xff] %vm1603, %v955
      %2175 = vst.msk [vmem:[#allocation2 + $0xc8] sm:$0xff] %vm1603, %v956
      %2176 = vst.msk [vmem:[#allocation2 + $0xd0] sm:$0xff] %vm1603, %v957
      %2177 = vst.msk [vmem:[#allocation2 + $0xd8] sm:$0xff] %vm1603, %v958
      %2178 = vst.msk [vmem:[#allocation2 + $0xe0] sm:$0xff] %vm1603, %v959
      %2179 = vst.msk [vmem:[#allocation2 + $0xe8] sm:$0xff] %vm1603, %v960
      %2180 = vst.msk [vmem:[#allocation2 + $0xf0] sm:$0xff] %vm1603, %v961
      %2181 = vst.msk [vmem:[#allocation2 + $0xf8] sm:$0xff] %vm1603, %v962
      // Predicated region
      $region45: #{pam_forward.3} parent=39 // pred_check
        %p2182 = pneg %p380
      $region46: #{pam_forward.3} parent=39 // pred_check_branch
        %2184 = sbr.rel (%p2182) target = $region48
      $region47: #{pam_forward.3} parent=39 // pred_region
        %v2185 = vld [vmem:[#allocation4] sm:$0xff]
        %v2186 = vld [vmem:[#allocation4 + $0x8] sm:$0xff]
        %v2187 = vld [vmem:[#allocation4 + $0x10] sm:$0xff]
        %v2188 = vld [vmem:[#allocation4 + $0x18] sm:$0xff]
        %v2189 = vld [vmem:[#allocation4 + $0x20] sm:$0xff]
        %v2190 = vld [vmem:[#allocation4 + $0x28] sm:$0xff]
        %v2191 = vld [vmem:[#allocation4 + $0x30] sm:$0xff]
        %v2192 = vld [vmem:[#allocation4 + $0x38] sm:$0xff]
        %v2193 = vld [vmem:[#allocation4 + $0x40] sm:$0xff]
        %v2194 = vld [vmem:[#allocation4 + $0x48] sm:$0xff]
        %v2195 = vld [vmem:[#allocation4 + $0x50] sm:$0xff]
        %v2196 = vld [vmem:[#allocation4 + $0x58] sm:$0xff]
        %v2197 = vld [vmem:[#allocation4 + $0x60] sm:$0xff]
        %v2198 = vld [vmem:[#allocation4 + $0x68] sm:$0xff]
        %v2199 = vld [vmem:[#allocation4 + $0x70] sm:$0xff]
        %v2200 = vld [vmem:[#allocation4 + $0x78] sm:$0xff]
        %v2201 = vld [vmem:[#allocation4 + $0x80] sm:$0xff]
        %v2202 = vld [vmem:[#allocation4 + $0x88] sm:$0xff]
        %v2203 = vld [vmem:[#allocation4 + $0x90] sm:$0xff]
        %v2204 = vld [vmem:[#allocation4 + $0x98] sm:$0xff]
        %v2205 = vld [vmem:[#allocation4 + $0xa0] sm:$0xff]
        %v2206 = vld [vmem:[#allocation4 + $0xa8] sm:$0xff]
        %v2207 = vld [vmem:[#allocation4 + $0xb0] sm:$0xff]
        %v2208 = vld [vmem:[#allocation4 + $0xb8] sm:$0xff]
        %v2209 = vld [vmem:[#allocation4 + $0xc0] sm:$0xff]
        %v2210 = vld [vmem:[#allocation4 + $0xc8] sm:$0xff]
        %v2211 = vld [vmem:[#allocation4 + $0xd0] sm:$0xff]
        %v2212 = vld [vmem:[#allocation4 + $0xd8] sm:$0xff]
        %v2213 = vld [vmem:[#allocation4 + $0xe0] sm:$0xff]
        %v2214 = vld [vmem:[#allocation4 + $0xe8] sm:$0xff]
        %v2215 = vld [vmem:[#allocation4 + $0xf0] sm:$0xff]
        %v2216 = vld [vmem:[#allocation4 + $0xf8] sm:$0xff]
        %v2217 = vld [vmem:[#allocation3] sm:$0xff]
        %v2218 = vld [vmem:[#allocation3 + $0x8] sm:$0xff]
        %v2219 = vld [vmem:[#allocation3 + $0x10] sm:$0xff]
        %v2220 = vld [vmem:[#allocation3 + $0x18] sm:$0xff]
        %v2221 = vld [vmem:[#allocation3 + $0x20] sm:$0xff]
        %v2222 = vld [vmem:[#allocation3 + $0x28] sm:$0xff]
        %v2223 = vld [vmem:[#allocation3 + $0x30] sm:$0xff]
        %v2224 = vld [vmem:[#allocation3 + $0x38] sm:$0xff]
        %v2225 = vld [vmem:[#allocation3 + $0x40] sm:$0xff]
        %v2226 = vld [vmem:[#allocation3 + $0x48] sm:$0xff]
        %v2227 = vld [vmem:[#allocation3 + $0x50] sm:$0xff]
        %v2228 = vld [vmem:[#allocation3 + $0x58] sm:$0xff]
        %v2229 = vld [vmem:[#allocation3 + $0x60] sm:$0xff]
        %v2230 = vld [vmem:[#allocation3 + $0x68] sm:$0xff]
        %v2231 = vld [vmem:[#allocation3 + $0x70] sm:$0xff]
        %v2232 = vld [vmem:[#allocation3 + $0x78] sm:$0xff]
        %v2233 = vld [vmem:[#allocation3 + $0x80] sm:$0xff]
        %v2234 = vld [vmem:[#allocation3 + $0x88] sm:$0xff]
        %v2235 = vld [vmem:[#allocation3 + $0x90] sm:$0xff]
        %v2236 = vld [vmem:[#allocation3 + $0x98] sm:$0xff]
        %v2237 = vld [vmem:[#allocation3 + $0xa0] sm:$0xff]
        %v2238 = vld [vmem:[#allocation3 + $0xa8] sm:$0xff]
        %v2239 = vld [vmem:[#allocation3 + $0xb0] sm:$0xff]
        %v2240 = vld [vmem:[#allocation3 + $0xb8] sm:$0xff]
        %v2241 = vld [vmem:[#allocation3 + $0xc0] sm:$0xff]
        %v2242 = vld [vmem:[#allocation3 + $0xc8] sm:$0xff]
        %v2243 = vld [vmem:[#allocation3 + $0xd0] sm:$0xff]
        %v2244 = vld [vmem:[#allocation3 + $0xd8] sm:$0xff]
        %v2245 = vld [vmem:[#allocation3 + $0xe0] sm:$0xff]
        %v2246 = vld [vmem:[#allocation3 + $0xe8] sm:$0xff]
        %v2247 = vld [vmem:[#allocation3 + $0xf0] sm:$0xff]
        %v2248 = vld [vmem:[#allocation3 + $0xf8] sm:$0xff]
        %v2249 = vrcp.pop %v2217
        %v2250 = vrcp.pop %v2218
        %v2251 = vrcp.pop %v2219
        %v2252 = vrcp.pop %v2220
        %v2253 = vrcp.pop %v2221
        %v2254 = vrcp.pop %v2222
        %v2255 = vrcp.pop %v2223
        %v2256 = vrcp.pop %v2224
        %v2257 = vrcp.pop %v2225
        %v2258 = vrcp.pop %v2226
        %v2259 = vrcp.pop %v2227
        %v2260 = vrcp.pop %v2228
        %v2261 = vrcp.pop %v2229
        %v2262 = vrcp.pop %v2230
        %v2263 = vrcp.pop %v2231
        %v2264 = vrcp.pop %v2232
        %v2265 = vrcp.pop %v2233
        %v2266 = vrcp.pop %v2234
        %v2267 = vrcp.pop %v2235
        %v2268 = vrcp.pop %v2236
        %v2269 = vrcp.pop %v2237
        %v2270 = vrcp.pop %v2238
        %v2271 = vrcp.pop %v2239
        %v2272 = vrcp.pop %v2240
        %v2273 = vrcp.pop %v2241
        %v2274 = vrcp.pop %v2242
        %v2275 = vrcp.pop %v2243
        %v2276 = vrcp.pop %v2244
        %v2277 = vrcp.pop %v2245
        %v2278 = vrcp.pop %v2246
        %v2279 = vrcp.pop %v2247
        %v2280 = vrcp.pop %v2248
        %2282 = vset.pattern.permute.xlu0 0
        %2283 = vperm.xlu0 %2282, %v2249
        %v2284 = vpop.permute.xlu0 %2283
        %2287 = vset.pattern.permute.xlu0 0
        %2288 = vperm.xlu0 %2287, %v2250
        %v2289 = vpop.permute.xlu0 %2288
        %2292 = vset.pattern.permute.xlu0 0
        %2293 = vperm.xlu0 %2292, %v2251
        %v2294 = vpop.permute.xlu0 %2293
        %2297 = vset.pattern.permute.xlu0 0
        %2298 = vperm.xlu0 %2297, %v2252
        %v2299 = vpop.permute.xlu0 %2298
        %2302 = vset.pattern.permute.xlu0 0
        %2303 = vperm.xlu0 %2302, %v2253
        %v2304 = vpop.permute.xlu0 %2303
        %2307 = vset.pattern.permute.xlu0 0
        %2308 = vperm.xlu0 %2307, %v2254
        %v2309 = vpop.permute.xlu0 %2308
        %2312 = vset.pattern.permute.xlu0 0
        %2313 = vperm.xlu0 %2312, %v2255
        %v2314 = vpop.permute.xlu0 %2313
        %2317 = vset.pattern.permute.xlu0 0
        %2318 = vperm.xlu0 %2317, %v2256
        %v2319 = vpop.permute.xlu0 %2318
        %2322 = vset.pattern.permute.xlu0 0
        %2323 = vperm.xlu0 %2322, %v2257
        %v2324 = vpop.permute.xlu0 %2323
        %2327 = vset.pattern.permute.xlu0 0
        %2328 = vperm.xlu0 %2327, %v2258
        %v2329 = vpop.permute.xlu0 %2328
        %2332 = vset.pattern.permute.xlu0 0
        %2333 = vperm.xlu0 %2332, %v2259
        %v2334 = vpop.permute.xlu0 %2333
        %2337 = vset.pattern.permute.xlu0 0
        %2338 = vperm.xlu0 %2337, %v2260
        %v2339 = vpop.permute.xlu0 %2338
        %2342 = vset.pattern.permute.xlu0 0
        %2343 = vperm.xlu0 %2342, %v2261
        %v2344 = vpop.permute.xlu0 %2343
        %2347 = vset.pattern.permute.xlu0 0
        %2348 = vperm.xlu0 %2347, %v2262
        %v2349 = vpop.permute.xlu0 %2348
        %2352 = vset.pattern.permute.xlu0 0
        %2353 = vperm.xlu0 %2352, %v2263
        %v2354 = vpop.permute.xlu0 %2353
        %2357 = vset.pattern.permute.xlu0 0
        %2358 = vperm.xlu0 %2357, %v2264
        %v2359 = vpop.permute.xlu0 %2358
        %2362 = vset.pattern.permute.xlu0 0
        %2363 = vperm.xlu0 %2362, %v2265
        %v2364 = vpop.permute.xlu0 %2363
        %2367 = vset.pattern.permute.xlu0 0
        %2368 = vperm.xlu0 %2367, %v2266
        %v2369 = vpop.permute.xlu0 %2368
        %2372 = vset.pattern.permute.xlu0 0
        %2373 = vperm.xlu0 %2372, %v2267
        %v2374 = vpop.permute.xlu0 %2373
        %2377 = vset.pattern.permute.xlu0 0
        %2378 = vperm.xlu0 %2377, %v2268
        %v2379 = vpop.permute.xlu0 %2378
        %2382 = vset.pattern.permute.xlu0 0
        %2383 = vperm.xlu0 %2382, %v2269
        %v2384 = vpop.permute.xlu0 %2383
        %2387 = vset.pattern.permute.xlu0 0
        %2388 = vperm.xlu0 %2387, %v2270
        %v2389 = vpop.permute.xlu0 %2388
        %2392 = vset.pattern.permute.xlu0 0
        %2393 = vperm.xlu0 %2392, %v2271
        %v2394 = vpop.permute.xlu0 %2393
        %2397 = vset.pattern.permute.xlu0 0
        %2398 = vperm.xlu0 %2397, %v2272
        %v2399 = vpop.permute.xlu0 %2398
        %2402 = vset.pattern.permute.xlu0 0
        %2403 = vperm.xlu0 %2402, %v2273
        %v2404 = vpop.permute.xlu0 %2403
        %2407 = vset.pattern.permute.xlu0 0
        %2408 = vperm.xlu0 %2407, %v2274
        %v2409 = vpop.permute.xlu0 %2408
        %2412 = vset.pattern.permute.xlu0 0
        %2413 = vperm.xlu0 %2412, %v2275
        %v2414 = vpop.permute.xlu0 %2413
        %2417 = vset.pattern.permute.xlu0 0
        %2418 = vperm.xlu0 %2417, %v2276
        %v2419 = vpop.permute.xlu0 %2418
        %2422 = vset.pattern.permute.xlu0 0
        %2423 = vperm.xlu0 %2422, %v2277
        %v2424 = vpop.permute.xlu0 %2423
        %2427 = vset.pattern.permute.xlu0 0
        %2428 = vperm.xlu0 %2427, %v2278
        %v2429 = vpop.permute.xlu0 %2428
        %2432 = vset.pattern.permute.xlu0 0
        %2433 = vperm.xlu0 %2432, %v2279
        %v2434 = vpop.permute.xlu0 %2433
        %2437 = vset.pattern.permute.xlu0 0
        %2438 = vperm.xlu0 %2437, %v2280
        %v2439 = vpop.permute.xlu0 %2438
        %v2441 = vmul.f32 %v2185, %v2284
        %v2442 = vmul.f32 %v2186, %v2289
        %v2443 = vmul.f32 %v2187, %v2294
        %v2444 = vmul.f32 %v2188, %v2299
        %v2445 = vmul.f32 %v2189, %v2304
        %v2446 = vmul.f32 %v2190, %v2309
        %v2447 = vmul.f32 %v2191, %v2314
        %v2448 = vmul.f32 %v2192, %v2319
        %v2449 = vmul.f32 %v2193, %v2324
        %v2450 = vmul.f32 %v2194, %v2329
        %v2451 = vmul.f32 %v2195, %v2334
        %v2452 = vmul.f32 %v2196, %v2339
        %v2453 = vmul.f32 %v2197, %v2344
        %v2454 = vmul.f32 %v2198, %v2349
        %v2455 = vmul.f32 %v2199, %v2354
        %v2456 = vmul.f32 %v2200, %v2359
        %v2457 = vmul.f32 %v2201, %v2364
        %v2458 = vmul.f32 %v2202, %v2369
        %v2459 = vmul.f32 %v2203, %v2374
        %v2460 = vmul.f32 %v2204, %v2379
        %v2461 = vmul.f32 %v2205, %v2384
        %v2462 = vmul.f32 %v2206, %v2389
        %v2463 = vmul.f32 %v2207, %v2394
        %v2464 = vmul.f32 %v2208, %v2399
        %v2465 = vmul.f32 %v2209, %v2404
        %v2466 = vmul.f32 %v2210, %v2409
        %v2467 = vmul.f32 %v2211, %v2414
        %v2468 = vmul.f32 %v2212, %v2419
        %v2469 = vmul.f32 %v2213, %v2424
        %v2470 = vmul.f32 %v2214, %v2429
        %v2471 = vmul.f32 %v2215, %v2434
        %v2472 = vmul.f32 %v2216, %v2439
        %s2473 = sld [smem:[#allocation5]]
        %v2474 = vstv %s2473
        %v2475 = vmul.f32 %v2474, %v2441
        %v2476 = vmul.f32 %v2474, %v2442
        %v2477 = vmul.f32 %v2474, %v2443
        %v2478 = vmul.f32 %v2474, %v2444
        %v2479 = vmul.f32 %v2474, %v2445
        %v2480 = vmul.f32 %v2474, %v2446
        %v2481 = vmul.f32 %v2474, %v2447
        %v2482 = vmul.f32 %v2474, %v2448
        %v2483 = vmul.f32 %v2474, %v2449
        %v2484 = vmul.f32 %v2474, %v2450
        %v2485 = vmul.f32 %v2474, %v2451
        %v2486 = vmul.f32 %v2474, %v2452
        %v2487 = vmul.f32 %v2474, %v2453
        %v2488 = vmul.f32 %v2474, %v2454
        %v2489 = vmul.f32 %v2474, %v2455
        %v2490 = vmul.f32 %v2474, %v2456
        %v2491 = vmul.f32 %v2474, %v2457
        %v2492 = vmul.f32 %v2474, %v2458
        %v2493 = vmul.f32 %v2474, %v2459
        %v2494 = vmul.f32 %v2474, %v2460
        %v2495 = vmul.f32 %v2474, %v2461
        %v2496 = vmul.f32 %v2474, %v2462
        %v2497 = vmul.f32 %v2474, %v2463
        %v2498 = vmul.f32 %v2474, %v2464
        %v2499 = vmul.f32 %v2474, %v2465
        %v2500 = vmul.f32 %v2474, %v2466
        %v2501 = vmul.f32 %v2474, %v2467
        %v2502 = vmul.f32 %v2474, %v2468
        %v2503 = vmul.f32 %v2474, %v2469
        %v2504 = vmul.f32 %v2474, %v2470
        %v2505 = vmul.f32 %v2474, %v2471
        %v2506 = vmul.f32 %v2474, %v2472
        %v2507 = vld [vmem:[%s368] sm:$0xff]
        %v2508 = vld [vmem:[%s368 + $0x8] sm:$0xff]
        %v2509 = vld [vmem:[%s368 + $0x10] sm:$0xff]
        %v2510 = vld [vmem:[%s368 + $0x18] sm:$0xff]
        %v2511 = vld [vmem:[%s368 + $0x20] sm:$0xff]
        %v2512 = vld [vmem:[%s368 + $0x28] sm:$0xff]
        %v2513 = vld [vmem:[%s368 + $0x30] sm:$0xff]
        %v2514 = vld [vmem:[%s368 + $0x38] sm:$0xff]
        %v2515 = vld [vmem:[%s368 + $0x40] sm:$0xff]
        %v2516 = vld [vmem:[%s368 + $0x48] sm:$0xff]
        %v2517 = vld [vmem:[%s368 + $0x50] sm:$0xff]
        %v2518 = vld [vmem:[%s368 + $0x58] sm:$0xff]
        %v2519 = vld [vmem:[%s368 + $0x60] sm:$0xff]
        %v2520 = vld [vmem:[%s368 + $0x68] sm:$0xff]
        %v2521 = vld [vmem:[%s368 + $0x70] sm:$0xff]
        %v2522 = vld [vmem:[%s368 + $0x78] sm:$0xff]
        %v2523 = vld [vmem:[%s368 + $0x80] sm:$0xff]
        %v2524 = vld [vmem:[%s368 + $0x88] sm:$0xff]
        %v2525 = vld [vmem:[%s368 + $0x90] sm:$0xff]
        %v2526 = vld [vmem:[%s368 + $0x98] sm:$0xff]
        %v2527 = vld [vmem:[%s368 + $0xa0] sm:$0xff]
        %v2528 = vld [vmem:[%s368 + $0xa8] sm:$0xff]
        %v2529 = vld [vmem:[%s368 + $0xb0] sm:$0xff]
        %v2530 = vld [vmem:[%s368 + $0xb8] sm:$0xff]
        %v2531 = vld [vmem:[%s368 + $0xc0] sm:$0xff]
        %v2532 = vld [vmem:[%s368 + $0xc8] sm:$0xff]
        %v2533 = vld [vmem:[%s368 + $0xd0] sm:$0xff]
        %v2534 = vld [vmem:[%s368 + $0xd8] sm:$0xff]
        %v2535 = vld [vmem:[%s368 + $0xe0] sm:$0xff]
        %v2536 = vld [vmem:[%s368 + $0xe8] sm:$0xff]
        %v2537 = vld [vmem:[%s368 + $0xf0] sm:$0xff]
        %v2538 = vld [vmem:[%s368 + $0xf8] sm:$0xff]
        %v2539 = vadd.f32 %v2475, %v2507
        %v2540 = vadd.f32 %v2476, %v2508
        %v2541 = vadd.f32 %v2477, %v2509
        %v2542 = vadd.f32 %v2478, %v2510
        %v2543 = vadd.f32 %v2479, %v2511
        %v2544 = vadd.f32 %v2480, %v2512
        %v2545 = vadd.f32 %v2481, %v2513
        %v2546 = vadd.f32 %v2482, %v2514
        %v2547 = vadd.f32 %v2483, %v2515
        %v2548 = vadd.f32 %v2484, %v2516
        %v2549 = vadd.f32 %v2485, %v2517
        %v2550 = vadd.f32 %v2486, %v2518
        %v2551 = vadd.f32 %v2487, %v2519
        %v2552 = vadd.f32 %v2488, %v2520
        %v2553 = vadd.f32 %v2489, %v2521
        %v2554 = vadd.f32 %v2490, %v2522
        %v2555 = vadd.f32 %v2491, %v2523
        %v2556 = vadd.f32 %v2492, %v2524
        %v2557 = vadd.f32 %v2493, %v2525
        %v2558 = vadd.f32 %v2494, %v2526
        %v2559 = vadd.f32 %v2495, %v2527
        %v2560 = vadd.f32 %v2496, %v2528
        %v2561 = vadd.f32 %v2497, %v2529
        %v2562 = vadd.f32 %v2498, %v2530
        %v2563 = vadd.f32 %v2499, %v2531
        %v2564 = vadd.f32 %v2500, %v2532
        %v2565 = vadd.f32 %v2501, %v2533
        %v2566 = vadd.f32 %v2502, %v2534
        %v2567 = vadd.f32 %v2503, %v2535
        %v2568 = vadd.f32 %v2504, %v2536
        %v2569 = vadd.f32 %v2505, %v2537
        %v2570 = vadd.f32 %v2506, %v2538
        %2571 = vst [vmem:[%s378] sm:$0xff] %v2539
        %2572 = vst [vmem:[%s378 + $0x8] sm:$0xff] %v2540
        %2573 = vst [vmem:[%s378 + $0x10] sm:$0xff] %v2541
        %2574 = vst [vmem:[%s378 + $0x18] sm:$0xff] %v2542
        %2575 = vst [vmem:[%s378 + $0x20] sm:$0xff] %v2543
        %2576 = vst [vmem:[%s378 + $0x28] sm:$0xff] %v2544
        %2577 = vst [vmem:[%s378 + $0x30] sm:$0xff] %v2545
        %2578 = vst [vmem:[%s378 + $0x38] sm:$0xff] %v2546
        %2579 = vst [vmem:[%s378 + $0x40] sm:$0xff] %v2547
        %2580 = vst [vmem:[%s378 + $0x48] sm:$0xff] %v2548
        %2581 = vst [vmem:[%s378 + $0x50] sm:$0xff] %v2549
        %2582 = vst [vmem:[%s378 + $0x58] sm:$0xff] %v2550
        %2583 = vst [vmem:[%s378 + $0x60] sm:$0xff] %v2551
        %2584 = vst [vmem:[%s378 + $0x68] sm:$0xff] %v2552
        %2585 = vst [vmem:[%s378 + $0x70] sm:$0xff] %v2553
        %2586 = vst [vmem:[%s378 + $0x78] sm:$0xff] %v2554
        %2587 = vst [vmem:[%s378 + $0x80] sm:$0xff] %v2555
        %2588 = vst [vmem:[%s378 + $0x88] sm:$0xff] %v2556
        %2589 = vst [vmem:[%s378 + $0x90] sm:$0xff] %v2557
        %2590 = vst [vmem:[%s378 + $0x98] sm:$0xff] %v2558
        %2591 = vst [vmem:[%s378 + $0xa0] sm:$0xff] %v2559
        %2592 = vst [vmem:[%s378 + $0xa8] sm:$0xff] %v2560
        %2593 = vst [vmem:[%s378 + $0xb0] sm:$0xff] %v2561
        %2594 = vst [vmem:[%s378 + $0xb8] sm:$0xff] %v2562
        %2595 = vst [vmem:[%s378 + $0xc0] sm:$0xff] %v2563
        %2596 = vst [vmem:[%s378 + $0xc8] sm:$0xff] %v2564
        %2597 = vst [vmem:[%s378 + $0xd0] sm:$0xff] %v2565
        %2598 = vst [vmem:[%s378 + $0xd8] sm:$0xff] %v2566
        %2599 = vst [vmem:[%s378 + $0xe0] sm:$0xff] %v2567
        %2600 = vst [vmem:[%s378 + $0xe8] sm:$0xff] %v2568
        %2601 = vst [vmem:[%s378 + $0xf0] sm:$0xff] %v2569
        %2602 = vst [vmem:[%s378 + $0xf8] sm:$0xff] %v2570
      $region48: #{pam_forward.3} parent=39 // pred_fallthru
        _
      %s2603 = smul.u32 32, %s23
      %p2604 = scmp.lt.s32.totalorder %s22, 1
      %s2605 = scalar_select %p2604, %s22, 1
      %p2606 = scmp.lt.s32.totalorder %s2603, 31
      %s2607 = scalar_select %p2606, %s2603, 31
      %s2608 = smul.addr %s2605, 32
      %s2609 = sadd.s32 %s2607, %s2608
      %s2610 = smul.addr %s2609, 8
      %s2611 = scalar_lea.vmem %s5, %s2610
      // Predicated region
      $region49: #{pam_forward.3} parent=39 // pred_check
        %p2612 = pneg %p189
      $region50: #{pam_forward.3} parent=39 // pred_check_branch
        %2614 = sbr.rel (%p2612) target = $region52
      $region51: #{pam_forward.3} parent=39 // pred_region
        %s2615 = smul.u32 32, %s23
      $region52: #{pam_forward.3} parent=39 // pred_fallthru
        _
    $region40: #{pam_forward.3} parent=5 // pred_fallthru
      _
    %p2616 = scmp.le.s32.totalorder 2, %s12
    // Predicated region
    $region53: #{pam_forward.3} parent=5 // pred_check
      %p2617 = pneg %p2616
    $region54: #{pam_forward.3} parent=5 // pred_check_branch
      %2619 = sbr.rel (%p2617) target = $region56
    $region55: #{pam_forward.3} parent=5 // pred_region
      %s2620 = ssub.s32 %s12, 2
      // Predicated region
      $region57: #{pam_forward.3} parent=55 // pred_check
        %p2621 = pneg %p195
      $region58: #{pam_forward.3} parent=55 // pred_check_branch
        %2623 = sbr.rel (%p2621) target = $region60
      $region59: #{pam_forward.3} parent=55 // pred_region
        %s2624 = smul.u32 32, %s26
        %p2625 = scmp.lt.s32.totalorder %s25, 1
        %s2626 = scalar_select %p2625, %s25, 1
        %p2627 = scmp.lt.s32.totalorder %s2624, 31
        %s2628 = scalar_select %p2627, %s2624, 31
        %s2629 = smul.addr %s2626, 32
        %s2630 = sadd.s32 %s2628, %s2629
        %s2631 = smul.addr %s2630, 8
        %s2632 = scalar_lea.vmem %s5, %s2631
      $region60: #{pam_forward.3} parent=55 // pred_fallthru
        _
    $region56: #{pam_forward.3} parent=5 // pred_fallthru
      _
  $region6: #{pam_forward.3} parent=0 // loop_footer
    %s16 = sadd.s32 1, %s12
  $region7: #{pam_forward.3} parent=0 // loop_footer_branch
    %11 = sbr.rel target = $region3
  $region8: #{pam_forward.3} parent=0 // loop_exit
    _

</llo_original>
